<compile_context>
chip_gen: v7x
topology: tpu7x:2x2x1
jax: 0.10.0
libtpu: 0.0.40
codegen_flags: <defaults>
</compile_context>

<pallas_src>
import jax
import jax.numpy as jnp
from jax.experimental import pallas as pl
from jax.experimental.pallas import tpu as pltpu


def _round_up(v, m):
    return ((v + m - 1) // m) * m


# ---------------- Fused base-model kernel ------------------------------------
# One call computes, for all BN images at once:
#   3x3 'same' conv (3 MXU matmuls, im2col fused via block-structured weights)
#   + bias + ReLU (f32 VPU)
#   + global-avg-pool + head linear (one bf16 MXU matmul + sublane sum)
def fused_base_kernel(x_ref, w_ref, cb_ref, hw_ref, hb_ref, o_ref):
    G, Hp, WpC = x_ref.shape          # (images, H+2, (W+2)*C)
    H = Hp - 2
    WF = w_ref.shape[-1]              # W * F

    xpad = x_ref[...]                 # (G, Hp, WpC) bf16
    acc = jnp.zeros((G * H, WF), jnp.float32)
    for dy in range(3):               # static unroll: 3 lane-dense MXU matmuls
        view = xpad[:, dy:dy + H, :].reshape(G * H, WpC)     # bf16
        acc = acc + jnp.dot(view, w_ref[dy],
                            preferred_element_type=jnp.float32)

    act = jnp.maximum(acc + cb_ref[...], 0.0)                # f32 bias + ReLU

    # Global-avg-pool + head linear fused: head weight is tiled over W and
    # pre-scaled by 1/(H*W); sum over H afterwards (sublane reduction).
    head = jnp.dot(act.astype(jnp.bfloat16), hw_ref[...],
                   preferred_element_type=jnp.float32)       # (G*H, Op)
    o_ref[...] = head.reshape(G, H, -1).sum(axis=1) + hb_ref[...]


def fused_base_model(xpad, w3, cb, hw, hb):
    BN, Hp, WpC = xpad.shape
    WF = w3.shape[-1]
    Op = hw.shape[-1]
    return pl.pallas_call(
        fused_base_kernel,
        out_shape=jax.ShapeDtypeStruct((BN, Op), jnp.float32),
        grid_spec=pltpu.PrefetchScalarGridSpec(
            num_scalar_prefetch=0,
            grid=(1,),                 # single step: 1 TC on v5e/v6e, tiny work
            in_specs=[
                pl.BlockSpec((BN, Hp, WpC), lambda s: (0, 0, 0)),  # padded input
                pl.BlockSpec((3, WpC, WF), lambda s: (0, 0, 0)),   # conv weights (per dy)
                pl.BlockSpec((1, WF), lambda s: (0, 0)),           # conv bias (tiled over W)
                pl.BlockSpec((WF, Op), lambda s: (0, 0)),          # pooled head weight
                pl.BlockSpec((1, Op), lambda s: (0, 0)),           # head bias
            ],
            out_specs=pl.BlockSpec((BN, Op), lambda s: (0, 0)),
        ),
        compiler_params=pltpu.CompilerParams(
            dimension_semantics=("arbitrary",)),
    )(xpad, w3, cb, hw, hb)


# ---------------- Params ------------------------------------------------------
def make_params(key, C, F, num_images, num_outputs):
    k1, k2, k3, k4, k5, k6 = jax.random.split(key, 6)
    return {
        "conv_w": jax.random.normal(k1, (3, 3, C, F), jnp.float32) * 0.1,  # HWIO
        "conv_b": jax.random.normal(k2, (F,), jnp.float32) * 0.01,
        "head_w": jax.random.normal(k3, (F, num_outputs), jnp.float32) * 0.1,
        "head_b": jax.random.normal(k4, (num_outputs,), jnp.float32) * 0.01,
        "fc_w": jax.random.normal(
            k5, (num_images * num_outputs, num_outputs), jnp.float32) * 0.1,
        "fc_b": jax.random.normal(k6, (num_outputs,), jnp.float32) * 0.01,
    }


def prepare_pallas_params(params, H, W):
    """Build the kernel-layout constants:
      * w3[dy, wp*C + c, w*F + f] = conv_w[dy, wp-w, c, f] (0 <= wp-w < 3)
        — the dx offsets of the 3x3 conv folded into a block-structured GEMM
        weight, one matrix per dy.  bf16 (f32 accumulation in-kernel).
      * conv bias tiled over W; head weight tiled over W and scaled by 1/(H*W)
        (so pooling folds into the head matmul), output padded to 128 lanes.
    """
    conv_w = params["conv_w"]                      # (3, 3, C, F)
    _, _, C, F = conv_w.shape
    O = params["head_w"].shape[1]
    Wp = W + 2
    Op = _round_up(O, 128)

    # shift[dx, wp, w] = 1 iff wp == w + dx
    shift = (jnp.arange(Wp)[None, :, None]
             == (jnp.arange(W)[None, None, :] + jnp.arange(3)[:, None, None])
             ).astype(jnp.float32)                 # (3, Wp, W)
    w3 = jnp.einsum("xpw,yxcf->ypcwf", shift, conv_w)       # (3, Wp, C, W, F)
    w3 = w3.reshape(3, Wp * C, W * F).astype(jnp.bfloat16)

    conv_b_tiled = jnp.tile(params["conv_b"].reshape(1, F), (1, W))   # (1, W*F) f32

    head_w_exp = jnp.tile(params["head_w"], (W, 1)) / float(H * W)    # (W*F, O)
    head_w_exp = jnp.pad(head_w_exp, ((0, 0), (0, Op - O))).astype(jnp.bfloat16)

    head_b_pad = jnp.pad(params["head_b"].reshape(1, O), ((0, 0), (0, Op - O)))

    return {
        "conv_w3": w3,
        "conv_b_tiled": conv_b_tiled,
        "head_w_exp": head_w_exp,
        "head_b_pad": head_b_pad,
        "fc_w": params["fc_w"],
        "fc_b": params["fc_b"],
    }


# ---------------- Forward ------------------------------------------------------
def ensemble_forward(x, p):
    """x: (B, N, C, H, W) float32 (PyTorch NCHW per image). p: prepared params."""
    B, N, C, H, W = x.shape
    BN = B * N
    O = p["fc_w"].shape[1]

    # view(B*N, C, H, W) -> NHWC -> spatial pad -> (BN, H+2, (W+2)*C) bf16.
    # This (tiny) glue replaces the old transpose+stack-of-9+pad+reshape chain.
    x_nhwc = jnp.transpose(x.reshape(BN, C, H, W), (0, 2, 3, 1))
    xpad = jnp.pad(x_nhwc, ((0, 0), (1, 1), (1, 1), (0, 0)))
    xpad = xpad.reshape(BN, H + 2, (W + 2) * C).astype(jnp.bfloat16)

    base = fused_base_model(
        xpad, p["conv_w3"], p["conv_b_tiled"], p["head_w_exp"], p["head_b_pad"]
    )                                              # (BN, Op) f32
    base = base[:, :O]                             # drop lane padding

    # Ensemble FC: (B, N*O) @ (N*O, O) — a few hundred FLOPs, plain jnp.
    ens_in = base.reshape(B, N * O)
    return ens_in @ p["fc_w"] + p["fc_b"].reshape(1, -1)


def ensemble_forward_ref(x, params):
    """Pure-JAX float32 reference (true conv, no Pallas) for verification."""
    B, N, C, H, W = x.shape
    x_nhwc = jnp.transpose(x.reshape(B * N, C, H, W), (0, 2, 3, 1))
    conv = jax.lax.conv_general_dilated(
        x_nhwc, params["conv_w"], window_strides=(1, 1), padding="SAME",
        dimension_numbers=("NHWC", "HWIO", "NHWC"))
    conv = jnp.maximum(conv + params["conv_b"].reshape(1, 1, 1, -1), 0.0)
    pooled = conv.mean(axis=(1, 2))                              # (BN, F)
    base = pooled @ params["head_w"] + params["head_b"].reshape(1, -1)
    ens_in = base.reshape(B, -1)
    return ens_in @ params["fc_w"] + params["fc_b"].reshape(1, -1)


if __name__ == "__main__":
    B, N, C, H, W = 2, 9, 4, 16, 16   # num_images = 9
    F = 32                            # base-model hidden channels
    num_outputs = 1

    key = jax.random.PRNGKey(0)
    kx, kp = jax.random.split(key)
    x = jax.random.normal(kx, (B, N, C, H, W), jnp.float32)
    params = make_params(kp, C, F, N, num_outputs)
    pparams = prepare_pallas_params(params, H, W)

    fwd = jax.jit(ensemble_forward)
    out = jax.block_until_ready(fwd(x, pparams))

    ref = ensemble_forward_ref(x, params)
    assert out.shape == (B, num_outputs), out.shape
    assert jnp.allclose(out, ref, rtol=2e-2, atol=2e-2), "mismatch vs JAX reference"

    print("KERNEL_OK")
</pallas_src>

<mosaic_0001>
module attributes {stable_mosaic.version = 11 : i64} {
  func.func @fused_base_kernel(%arg0: i32, %arg1: memref<18x18x72xbf16, #tpu.memory_space<vmem>>, %arg2: memref<3x72x512xbf16, #tpu.memory_space<vmem>>, %arg3: memref<1x512xf32, #tpu.memory_space<vmem>>, %arg4: memref<512x128xbf16, #tpu.memory_space<vmem>>, %arg5: memref<1x128xf32, #tpu.memory_space<vmem>>, %arg6: memref<18x128xf32, #tpu.memory_space<vmem>>) attributes {dimension_semantics = [#tpu.dimension_semantics<arbitrary>], iteration_bounds = array<i64: 1>, scalar_prefetch = 0 : i64, scratch_operands = 0 : i64, tpu.core_type = #tpu.core_type<tc>, window_params = [{pipeline_mode = #tpu.pipeline_mode<synchronous>, transform_indices = @transform_0, window_bounds = array<i64: 18, 18, 72>}, {pipeline_mode = #tpu.pipeline_mode<synchronous>, transform_indices = @transform_1, window_bounds = array<i64: 3, 72, 512>}, {pipeline_mode = #tpu.pipeline_mode<synchronous>, transform_indices = @transform_2, window_bounds = array<i64: 1, 512>}, {pipeline_mode = #tpu.pipeline_mode<synchronous>, transform_indices = @transform_3, window_bounds = array<i64: 512, 128>}, {pipeline_mode = #tpu.pipeline_mode<synchronous>, transform_indices = @transform_4, window_bounds = array<i64: 1, 128>}, {pipeline_mode = #tpu.pipeline_mode<synchronous>, transform_indices = @transform_5, window_bounds = array<i64: 18, 128>}]} {
    %c0 = arith.constant 0 : index
    %c0_0 = arith.constant 0 : index
    %c0_1 = arith.constant 0 : index
    %0 = vector.load %arg1[%c0, %c0_0, %c0_1] : memref<18x18x72xbf16, #tpu.memory_space<vmem>>, vector<18x18x72xbf16>
    %cst = arith.constant 0.000000e+00 : f32
    %1 = vector.broadcast %cst : f32 to vector<288x512xf32>
    %2 = vector.extract_strided_slice %0 {offsets = [0, 0, 0], sizes = [18, 16, 72], strides = [1, 1, 1]} : vector<18x18x72xbf16> to vector<18x16x72xbf16>
    %3 = vector.shape_cast %2 : vector<18x16x72xbf16> to vector<288x72xbf16>
    %c0_2 = arith.constant 0 : index
    %c0_3 = arith.constant 0 : index
    %c0_4 = arith.constant 0 : index
    %4 = vector.load %arg2[%c0_2, %c0_3, %c0_4] : memref<3x72x512xbf16, #tpu.memory_space<vmem>>, vector<1x72x512xbf16>
    %5 = vector.shape_cast %4 : vector<1x72x512xbf16> to vector<72x512xbf16>
    %cst_5 = arith.constant dense<0.000000e+00> : vector<288x512xf32>
    %6 = tpu.matmul %3, %5, %cst_5 {dimension_numbers = #tpu.dot_dimension_numbers<[1], [0], [0], [1], [0, 0, 1, 1], [], []>} : vector<288x72xbf16>, vector<72x512xbf16>, vector<288x512xf32> -> vector<288x512xf32>
    %7 = arith.addf %1, %6 : vector<288x512xf32>
    %8 = vector.extract_strided_slice %0 {offsets = [0, 1, 0], sizes = [18, 16, 72], strides = [1, 1, 1]} : vector<18x18x72xbf16> to vector<18x16x72xbf16>
    %9 = vector.shape_cast %8 : vector<18x16x72xbf16> to vector<288x72xbf16>
    %c1 = arith.constant 1 : index
    %c0_6 = arith.constant 0 : index
    %c0_7 = arith.constant 0 : index
    %10 = vector.load %arg2[%c1, %c0_6, %c0_7] : memref<3x72x512xbf16, #tpu.memory_space<vmem>>, vector<1x72x512xbf16>
    %11 = vector.shape_cast %10 : vector<1x72x512xbf16> to vector<72x512xbf16>
    %cst_8 = arith.constant dense<0.000000e+00> : vector<288x512xf32>
    %12 = tpu.matmul %9, %11, %cst_8 {dimension_numbers = #tpu.dot_dimension_numbers<[1], [0], [0], [1], [0, 0, 1, 1], [], []>} : vector<288x72xbf16>, vector<72x512xbf16>, vector<288x512xf32> -> vector<288x512xf32>
    %13 = arith.addf %7, %12 : vector<288x512xf32>
    %14 = vector.extract_strided_slice %0 {offsets = [0, 2, 0], sizes = [18, 16, 72], strides = [1, 1, 1]} : vector<18x18x72xbf16> to vector<18x16x72xbf16>
    %15 = vector.shape_cast %14 : vector<18x16x72xbf16> to vector<288x72xbf16>
    %c2 = arith.constant 2 : index
    %c0_9 = arith.constant 0 : index
    %c0_10 = arith.constant 0 : index
    %16 = vector.load %arg2[%c2, %c0_9, %c0_10] : memref<3x72x512xbf16, #tpu.memory_space<vmem>>, vector<1x72x512xbf16>
    %17 = vector.shape_cast %16 : vector<1x72x512xbf16> to vector<72x512xbf16>
    %cst_11 = arith.constant dense<0.000000e+00> : vector<288x512xf32>
    %18 = tpu.matmul %15, %17, %cst_11 {dimension_numbers = #tpu.dot_dimension_numbers<[1], [0], [0], [1], [0, 0, 1, 1], [], []>} : vector<288x72xbf16>, vector<72x512xbf16>, vector<288x512xf32> -> vector<288x512xf32>
    %19 = arith.addf %13, %18 : vector<288x512xf32>
    %c0_12 = arith.constant 0 : index
    %c0_13 = arith.constant 0 : index
    %20 = vector.load %arg3[%c0_12, %c0_13] : memref<1x512xf32, #tpu.memory_space<vmem>>, vector<1x512xf32>
    %21 = vector.broadcast %20 : vector<1x512xf32> to vector<288x512xf32>
    %22 = arith.addf %19, %21 : vector<288x512xf32>
    %cst_14 = arith.constant 0.000000e+00 : f32
    %23 = vector.broadcast %cst_14 : f32 to vector<288x512xf32>
    %24 = arith.maximumf %22, %23 : vector<288x512xf32>
    %25 = arith.truncf %24 : vector<288x512xf32> to vector<288x512xbf16>
    %c0_15 = arith.constant 0 : index
    %c0_16 = arith.constant 0 : index
    %26 = vector.load %arg4[%c0_15, %c0_16] : memref<512x128xbf16, #tpu.memory_space<vmem>>, vector<512x128xbf16>
    %cst_17 = arith.constant dense<0.000000e+00> : vector<288x128xf32>
    %27 = tpu.matmul %25, %26, %cst_17 {dimension_numbers = #tpu.dot_dimension_numbers<[1], [0], [0], [1], [0, 0, 1, 1], [], []>} : vector<288x512xbf16>, vector<512x128xbf16>, vector<288x128xf32> -> vector<288x128xf32>
    %28 = vector.shape_cast %27 : vector<288x128xf32> to vector<18x16x128xf32>
    %cst_18 = arith.constant dense<0.000000e+00> : vector<18x128xf32>
    %29 = vector.multi_reduction <add>, %28, %cst_18 [1] : vector<18x16x128xf32> to vector<18x128xf32>
    %c0_19 = arith.constant 0 : index
    %c0_20 = arith.constant 0 : index
    %30 = vector.load %arg5[%c0_19, %c0_20] : memref<1x128xf32, #tpu.memory_space<vmem>>, vector<1x128xf32>
    %31 = vector.broadcast %30 : vector<1x128xf32> to vector<18x128xf32>
    %32 = arith.addf %29, %31 : vector<18x128xf32>
    %c0_21 = arith.constant 0 : index
    %c0_22 = arith.constant 0 : index
    %33 = vector.load %arg6[%c0_21, %c0_22] : memref<18x128xf32, #tpu.memory_space<vmem>>, vector<18x128xf32>
    tpu.vector_store %arg6[%c0_21, %c0_22], %32 {strides = array<i32>} : memref<18x128xf32, #tpu.memory_space<vmem>>, vector<18x128xf32>,
    return
  }
  func.func @transform_0(%arg0: i32) -> (i32, i32, i32) {
    %c0_i32 = arith.constant 0 : i32
    %c0_i32_0 = arith.constant 0 : i32
    %c0_i32_1 = arith.constant 0 : i32
    %c0_i32_2 = arith.constant 0 : i32
    return %c0_i32, %c0_i32_0, %c0_i32_1 : i32, i32, i32
  }
  func.func @transform_1(%arg0: i32) -> (i32, i32, i32) {
    %c0_i32 = arith.constant 0 : i32
    %c0_i32_0 = arith.constant 0 : i32
    %c0_i32_1 = arith.constant 0 : i32
    %c0_i32_2 = arith.constant 0 : i32
    return %c0_i32, %c0_i32_0, %c0_i32_1 : i32, i32, i32
  }
  func.func @transform_2(%arg0: i32) -> (i32, i32) {
    %c0_i32 = arith.constant 0 : i32
    %c0_i32_0 = arith.constant 0 : i32
    %c0_i32_1 = arith.constant 0 : i32
    return %c0_i32, %c0_i32_0 : i32, i32
  }
  func.func @transform_3(%arg0: i32) -> (i32, i32) {
    %c0_i32 = arith.constant 0 : i32
    %c0_i32_0 = arith.constant 0 : i32
    %c0_i32_1 = arith.constant 0 : i32
    return %c0_i32, %c0_i32_0 : i32, i32
  }
  func.func @transform_4(%arg0: i32) -> (i32, i32) {
    %c0_i32 = arith.constant 0 : i32
    %c0_i32_0 = arith.constant 0 : i32
    %c0_i32_1 = arith.constant 0 : i32
    return %c0_i32, %c0_i32_0 : i32, i32
  }
  func.func @transform_5(%arg0: i32) -> (i32, i32) {
    %c0_i32 = arith.constant 0 : i32
    %c0_i32_0 = arith.constant 0 : i32
    %c0_i32_1 = arith.constant 0 : i32
    return %c0_i32, %c0_i32_0 : i32, i32
  }
}

</mosaic_0001>

<llo_original>
// kernel: ensemble_forward.1
$region0: #{ensemble_forward.1}
  #allocation0 [shape = 'u32[]', space=smem, size = 0x4, offset = 0x4, fixed_abs, tag = 'smem constant byte address 0x4 - core index']
  #allocation1 [shape = 'u32[144,128]{1,0:T(1,128)}', space=vmem, size = 0x12000, scoped, tag = 'internal scratch']
  %s0 = inlined_call_operand.vmem [shape: bf16[18,18,72], index: 0, kind: input, shape index: {}]
  %s1 = inlined_call_operand.vmem [shape: bf16[3,72,512], index: 1, kind: input, shape index: {}]
  %s2 = inlined_call_operand.vmem [shape: f32[1,512], index: 2, kind: input, shape index: {}]
  %s3 = inlined_call_operand.vmem [shape: bf16[512,128], index: 3, kind: input, shape index: {}]
  %s4 = inlined_call_operand.vmem [shape: f32[1,128], index: 4, kind: input, shape index: {}]
  %s5 = inlined_call_operand.vmem [shape: f32[18,128], index: 5, kind: output, shape index: {}]
  %s6 = sld [smem:[#allocation0]]
  $region30: #{ensemble_forward.1} parent=0
    _
  %s8 = ssub.s32 1, %s6
  %s9 = scalar_select 0, %s8, %s6
  // Predicated region
  $region2: #{ensemble_forward.1} parent=0 // pred_check
    _
  $region3: #{ensemble_forward.1} parent=0 // pred_check_branch
    %11 = sbr.rel (0) target = $region5
  $region4: #{ensemble_forward.1} parent=0 // pred_region
    _
  $region5: #{ensemble_forward.1} parent=0 // pred_fallthru
    _
  // Predicated region
  $region6: #{ensemble_forward.1} parent=0 // pred_check
    _
  $region7: #{ensemble_forward.1} parent=0 // pred_check_branch
    %13 = sbr.rel (0) target = $region9
  $region8: #{ensemble_forward.1} parent=0 // pred_region
    _
  $region9: #{ensemble_forward.1} parent=0 // pred_fallthru
    _
  // Predicated region
  $region10: #{ensemble_forward.1} parent=0 // pred_check
    _
  $region11: #{ensemble_forward.1} parent=0 // pred_check_branch
    %15 = sbr.rel (0) target = $region13
  $region12: #{ensemble_forward.1} parent=0 // pred_region
    _
  $region13: #{ensemble_forward.1} parent=0 // pred_fallthru
    _
  // Predicated region
  $region14: #{ensemble_forward.1} parent=0 // pred_check
    _
  $region15: #{ensemble_forward.1} parent=0 // pred_check_branch
    %17 = sbr.rel (0) target = $region17
  $region16: #{ensemble_forward.1} parent=0 // pred_region
    _
  $region17: #{ensemble_forward.1} parent=0 // pred_fallthru
    _
  // Predicated region
  $region18: #{ensemble_forward.1} parent=0 // pred_check
    _
  $region19: #{ensemble_forward.1} parent=0 // pred_check_branch
    %19 = sbr.rel (0) target = $region21
  $region20: #{ensemble_forward.1} parent=0 // pred_region
    _
  $region21: #{ensemble_forward.1} parent=0 // pred_fallthru
    _
  %v21 = vld [vmem:[%s0] sm:$0xf]
  %v22 = vld [vmem:[%s0 + $0x4] sm:$0xf]
  %v23 = vld [vmem:[%s0 + $0x8] sm:$0x1]
  %v24 = vld [vmem:[%s0 + $0xc] sm:$0xf]
  %v25 = vld [vmem:[%s0 + $0x10] sm:$0xf]
  %v26 = vld [vmem:[%s0 + $0x14] sm:$0x1]
  %v27 = vld [vmem:[%s0 + $0x18] sm:$0xf]
  %v28 = vld [vmem:[%s0 + $0x1c] sm:$0xf]
  %v29 = vld [vmem:[%s0 + $0x20] sm:$0x1]
  %v30 = vld [vmem:[%s0 + $0x24] sm:$0xf]
  %v31 = vld [vmem:[%s0 + $0x28] sm:$0xf]
  %v32 = vld [vmem:[%s0 + $0x2c] sm:$0x1]
  %v33 = vld [vmem:[%s0 + $0x30] sm:$0xf]
  %v34 = vld [vmem:[%s0 + $0x34] sm:$0xf]
  %v35 = vld [vmem:[%s0 + $0x38] sm:$0x1]
  %v36 = vld [vmem:[%s0 + $0x3c] sm:$0xf]
  %v37 = vld [vmem:[%s0 + $0x40] sm:$0xf]
  %v38 = vld [vmem:[%s0 + $0x44] sm:$0x1]
  %v39 = vld [vmem:[%s0 + $0x48] sm:$0xf]
  %v40 = vld [vmem:[%s0 + $0x4c] sm:$0xf]
  %v41 = vld [vmem:[%s0 + $0x50] sm:$0x1]
  %v42 = vld [vmem:[%s0 + $0x54] sm:$0xf]
  %v43 = vld [vmem:[%s0 + $0x58] sm:$0xf]
  %v44 = vld [vmem:[%s0 + $0x5c] sm:$0x1]
  %v45 = vld [vmem:[%s0 + $0x60] sm:$0xf]
  %v46 = vld [vmem:[%s0 + $0x64] sm:$0xf]
  %v47 = vld [vmem:[%s0 + $0x68] sm:$0x1]
  %v48 = vld [vmem:[%s0 + $0x6c] sm:$0xf]
  %v49 = vld [vmem:[%s0 + $0x70] sm:$0xf]
  %v50 = vld [vmem:[%s0 + $0x74] sm:$0x1]
  %v51 = vld [vmem:[%s0 + $0x78] sm:$0xf]
  %v52 = vld [vmem:[%s0 + $0x7c] sm:$0xf]
  %v53 = vld [vmem:[%s0 + $0x80] sm:$0x1]
  %v54 = vld [vmem:[%s0 + $0x84] sm:$0xf]
  %v55 = vld [vmem:[%s0 + $0x88] sm:$0xf]
  %v56 = vld [vmem:[%s0 + $0x8c] sm:$0x1]
  %v57 = vld [vmem:[%s0 + $0x90] sm:$0xf]
  %v58 = vld [vmem:[%s0 + $0x94] sm:$0xf]
  %v59 = vld [vmem:[%s0 + $0x98] sm:$0x1]
  %v60 = vld [vmem:[%s0 + $0x9c] sm:$0xf]
  %v61 = vld [vmem:[%s0 + $0xa0] sm:$0xf]
  %v62 = vld [vmem:[%s0 + $0xa4] sm:$0x1]
  %v63 = vld [vmem:[%s0 + $0xa8] sm:$0xf]
  %v64 = vld [vmem:[%s0 + $0xac] sm:$0xf]
  %v65 = vld [vmem:[%s0 + $0xb0] sm:$0x1]
  %v66 = vld [vmem:[%s0 + $0xb4] sm:$0xf]
  %v67 = vld [vmem:[%s0 + $0xb8] sm:$0xf]
  %v68 = vld [vmem:[%s0 + $0xbc] sm:$0x1]
  %v69 = vld [vmem:[%s0 + $0xc0] sm:$0xf]
  %v70 = vld [vmem:[%s0 + $0xc4] sm:$0xf]
  %v71 = vld [vmem:[%s0 + $0xc8] sm:$0x1]
  %v72 = vld [vmem:[%s0 + $0xcc] sm:$0xf]
  %v73 = vld [vmem:[%s0 + $0xd0] sm:$0xf]
  %v74 = vld [vmem:[%s0 + $0xd4] sm:$0x1]
  %v75 = vld [vmem:[%s1] sm:$0xff]
  %v76 = vld [vmem:[%s1 + $0x8] sm:$0xff]
  %v77 = vld [vmem:[%s1 + $0x10] sm:$0xff]
  %v78 = vld [vmem:[%s1 + $0x18] sm:$0xff]
  %v79 = vld [vmem:[%s1 + $0x20] sm:$0xff]
  %v80 = vld [vmem:[%s1 + $0x28] sm:$0xff]
  %v81 = vld [vmem:[%s1 + $0x30] sm:$0xff]
  %v82 = vld [vmem:[%s1 + $0x38] sm:$0xff]
  %v83 = vld [vmem:[%s1 + $0x40] sm:$0xff]
  %v84 = vld [vmem:[%s1 + $0x48] sm:$0xff]
  %v85 = vld [vmem:[%s1 + $0x50] sm:$0xff]
  %v86 = vld [vmem:[%s1 + $0x58] sm:$0xff]
  %v87 = vld [vmem:[%s1 + $0x60] sm:$0xff]
  %v88 = vld [vmem:[%s1 + $0x68] sm:$0xff]
  %v89 = vld [vmem:[%s1 + $0x70] sm:$0xff]
  %v90 = vld [vmem:[%s1 + $0x78] sm:$0xff]
  %v91 = vld [vmem:[%s1 + $0x80] sm:$0xff]
  %v92 = vld [vmem:[%s1 + $0x88] sm:$0xff]
  %vm93 = vsmask.f32 3328
  %vm94 = vsmask.f32 7440
  %vm95 = vmor %vm93, %vm94
  %v97 = vshrl.u32 %v21, 16
  %v99 = vrot.slane %v97, 4
  %v100 = vshll.u32 %v21, 16
  %v102 = vrot.slane %v100, 5
  %v103 = vor.u32 %v99, %v102
  %v104 = vrot.slane %v103, 4
  %v106 = vshll.u32 %v22, 16
  %v108 = vrot.slane %v106, 5
  %v109 = vsel %vm95, %v104, %v108
  %v110 = vshrl.u32 %v22, 16
  %v112 = vrot.slane %v110, 4
  %v113 = vor.u32 %v112, %v108
  %v114 = vrot.slane %v113, 4
  %v116 = vshll.u32 %v23, 16
  %v118 = vrot.slane %v116, 5
  %v119 = vsel %vm95, %v114, %v118
  %v121 = vshrl.u32 %v24, 16
  %v123 = vrot.slane %v121, 4
  %v124 = vshll.u32 %v24, 16
  %v126 = vrot.slane %v124, 5
  %v127 = vor.u32 %v123, %v126
  %v128 = vrot.slane %v127, 4
  %v130 = vshll.u32 %v25, 16
  %v132 = vrot.slane %v130, 5
  %v133 = vsel %vm95, %v128, %v132
  %v134 = vshrl.u32 %v25, 16
  %v136 = vrot.slane %v134, 4
  %v137 = vor.u32 %v136, %v132
  %v138 = vrot.slane %v137, 4
  %v140 = vshll.u32 %v26, 16
  %v142 = vrot.slane %v140, 5
  %v143 = vsel %vm95, %v138, %v142
  %v145 = vshrl.u32 %v27, 16
  %v147 = vrot.slane %v145, 4
  %v148 = vshll.u32 %v27, 16
  %v150 = vrot.slane %v148, 5
  %v151 = vor.u32 %v147, %v150
  %v152 = vrot.slane %v151, 4
  %v154 = vshll.u32 %v28, 16
  %v156 = vrot.slane %v154, 5
  %v157 = vsel %vm95, %v152, %v156
  %v158 = vshrl.u32 %v28, 16
  %v160 = vrot.slane %v158, 4
  %v161 = vor.u32 %v160, %v156
  %v162 = vrot.slane %v161, 4
  %v164 = vshll.u32 %v29, 16
  %v166 = vrot.slane %v164, 5
  %v167 = vsel %vm95, %v162, %v166
  %v169 = vshrl.u32 %v30, 16
  %v171 = vrot.slane %v169, 4
  %v172 = vshll.u32 %v30, 16
  %v174 = vrot.slane %v172, 5
  %v175 = vor.u32 %v171, %v174
  %v176 = vrot.slane %v175, 4
  %v178 = vshll.u32 %v31, 16
  %v180 = vrot.slane %v178, 5
  %v181 = vsel %vm95, %v176, %v180
  %v182 = vshrl.u32 %v31, 16
  %v184 = vrot.slane %v182, 4
  %v185 = vor.u32 %v184, %v180
  %v186 = vrot.slane %v185, 4
  %v188 = vshll.u32 %v32, 16
  %v190 = vrot.slane %v188, 5
  %v191 = vsel %vm95, %v186, %v190
  %v193 = vshrl.u32 %v33, 16
  %v195 = vrot.slane %v193, 4
  %v196 = vshll.u32 %v33, 16
  %v198 = vrot.slane %v196, 5
  %v199 = vor.u32 %v195, %v198
  %v200 = vrot.slane %v199, 4
  %v202 = vshll.u32 %v34, 16
  %v204 = vrot.slane %v202, 5
  %v205 = vsel %vm95, %v200, %v204
  %v206 = vshrl.u32 %v34, 16
  %v208 = vrot.slane %v206, 4
  %v209 = vor.u32 %v208, %v204
  %v210 = vrot.slane %v209, 4
  %v212 = vshll.u32 %v35, 16
  %v214 = vrot.slane %v212, 5
  %v215 = vsel %vm95, %v210, %v214
  %v217 = vshrl.u32 %v36, 16
  %v219 = vrot.slane %v217, 4
  %v220 = vshll.u32 %v36, 16
  %v222 = vrot.slane %v220, 5
  %v223 = vor.u32 %v219, %v222
  %v224 = vrot.slane %v223, 4
  %v226 = vshll.u32 %v37, 16
  %v228 = vrot.slane %v226, 5
  %v229 = vsel %vm95, %v224, %v228
  %v230 = vshrl.u32 %v37, 16
  %v232 = vrot.slane %v230, 4
  %v233 = vor.u32 %v232, %v228
  %v234 = vrot.slane %v233, 4
  %v236 = vshll.u32 %v38, 16
  %v238 = vrot.slane %v236, 5
  %v239 = vsel %vm95, %v234, %v238
  %v241 = vshrl.u32 %v39, 16
  %v243 = vrot.slane %v241, 4
  %v244 = vshll.u32 %v39, 16
  %v246 = vrot.slane %v244, 5
  %v247 = vor.u32 %v243, %v246
  %v248 = vrot.slane %v247, 4
  %v250 = vshll.u32 %v40, 16
  %v252 = vrot.slane %v250, 5
  %v253 = vsel %vm95, %v248, %v252
  %v254 = vshrl.u32 %v40, 16
  %v256 = vrot.slane %v254, 4
  %v257 = vor.u32 %v256, %v252
  %v258 = vrot.slane %v257, 4
  %v260 = vshll.u32 %v41, 16
  %v262 = vrot.slane %v260, 5
  %v263 = vsel %vm95, %v258, %v262
  %v265 = vshrl.u32 %v42, 16
  %v267 = vrot.slane %v265, 4
  %v268 = vshll.u32 %v42, 16
  %v270 = vrot.slane %v268, 5
  %v271 = vor.u32 %v267, %v270
  %v272 = vrot.slane %v271, 4
  %v274 = vshll.u32 %v43, 16
  %v276 = vrot.slane %v274, 5
  %v277 = vsel %vm95, %v272, %v276
  %v278 = vshrl.u32 %v43, 16
  %v280 = vrot.slane %v278, 4
  %v281 = vor.u32 %v280, %v276
  %v282 = vrot.slane %v281, 4
  %v284 = vshll.u32 %v44, 16
  %v286 = vrot.slane %v284, 5
  %v287 = vsel %vm95, %v282, %v286
  %v289 = vshrl.u32 %v45, 16
  %v291 = vrot.slane %v289, 4
  %v292 = vshll.u32 %v45, 16
  %v294 = vrot.slane %v292, 5
  %v295 = vor.u32 %v291, %v294
  %v296 = vrot.slane %v295, 4
  %v298 = vshll.u32 %v46, 16
  %v300 = vrot.slane %v298, 5
  %v301 = vsel %vm95, %v296, %v300
  %v302 = vshrl.u32 %v46, 16
  %v304 = vrot.slane %v302, 4
  %v305 = vor.u32 %v304, %v300
  %v306 = vrot.slane %v305, 4
  %v308 = vshll.u32 %v47, 16
  %v310 = vrot.slane %v308, 5
  %v311 = vsel %vm95, %v306, %v310
  %v313 = vshrl.u32 %v48, 16
  %v315 = vrot.slane %v313, 4
  %v316 = vshll.u32 %v48, 16
  %v318 = vrot.slane %v316, 5
  %v319 = vor.u32 %v315, %v318
  %v320 = vrot.slane %v319, 4
  %v322 = vshll.u32 %v49, 16
  %v324 = vrot.slane %v322, 5
  %v325 = vsel %vm95, %v320, %v324
  %v326 = vshrl.u32 %v49, 16
  %v328 = vrot.slane %v326, 4
  %v329 = vor.u32 %v328, %v324
  %v330 = vrot.slane %v329, 4
  %v332 = vshll.u32 %v50, 16
  %v334 = vrot.slane %v332, 5
  %v335 = vsel %vm95, %v330, %v334
  %v337 = vshrl.u32 %v51, 16
  %v339 = vrot.slane %v337, 4
  %v340 = vshll.u32 %v51, 16
  %v342 = vrot.slane %v340, 5
  %v343 = vor.u32 %v339, %v342
  %v344 = vrot.slane %v343, 4
  %v346 = vshll.u32 %v52, 16
  %v348 = vrot.slane %v346, 5
  %v349 = vsel %vm95, %v344, %v348
  %v350 = vshrl.u32 %v52, 16
  %v352 = vrot.slane %v350, 4
  %v353 = vor.u32 %v352, %v348
  %v354 = vrot.slane %v353, 4
  %v356 = vshll.u32 %v53, 16
  %v358 = vrot.slane %v356, 5
  %v359 = vsel %vm95, %v354, %v358
  %v361 = vshrl.u32 %v54, 16
  %v363 = vrot.slane %v361, 4
  %v364 = vshll.u32 %v54, 16
  %v366 = vrot.slane %v364, 5
  %v367 = vor.u32 %v363, %v366
  %v368 = vrot.slane %v367, 4
  %v370 = vshll.u32 %v55, 16
  %v372 = vrot.slane %v370, 5
  %v373 = vsel %vm95, %v368, %v372
  %v374 = vshrl.u32 %v55, 16
  %v376 = vrot.slane %v374, 4
  %v377 = vor.u32 %v376, %v372
  %v378 = vrot.slane %v377, 4
  %v380 = vshll.u32 %v56, 16
  %v382 = vrot.slane %v380, 5
  %v383 = vsel %vm95, %v378, %v382
  %v385 = vshrl.u32 %v57, 16
  %v387 = vrot.slane %v385, 4
  %v388 = vshll.u32 %v57, 16
  %v390 = vrot.slane %v388, 5
  %v391 = vor.u32 %v387, %v390
  %v392 = vrot.slane %v391, 4
  %v394 = vshll.u32 %v58, 16
  %v396 = vrot.slane %v394, 5
  %v397 = vsel %vm95, %v392, %v396
  %v398 = vshrl.u32 %v58, 16
  %v400 = vrot.slane %v398, 4
  %v401 = vor.u32 %v400, %v396
  %v402 = vrot.slane %v401, 4
  %v404 = vshll.u32 %v59, 16
  %v406 = vrot.slane %v404, 5
  %v407 = vsel %vm95, %v402, %v406
  %v409 = vshrl.u32 %v60, 16
  %v411 = vrot.slane %v409, 4
  %v412 = vshll.u32 %v60, 16
  %v414 = vrot.slane %v412, 5
  %v415 = vor.u32 %v411, %v414
  %v416 = vrot.slane %v415, 4
  %v418 = vshll.u32 %v61, 16
  %v420 = vrot.slane %v418, 5
  %v421 = vsel %vm95, %v416, %v420
  %v422 = vshrl.u32 %v61, 16
  %v424 = vrot.slane %v422, 4
  %v425 = vor.u32 %v424, %v420
  %v426 = vrot.slane %v425, 4
  %v428 = vshll.u32 %v62, 16
  %v430 = vrot.slane %v428, 5
  %v431 = vsel %vm95, %v426, %v430
  %v433 = vshrl.u32 %v63, 16
  %v435 = vrot.slane %v433, 4
  %v436 = vshll.u32 %v63, 16
  %v438 = vrot.slane %v436, 5
  %v439 = vor.u32 %v435, %v438
  %v440 = vrot.slane %v439, 4
  %v442 = vshll.u32 %v64, 16
  %v444 = vrot.slane %v442, 5
  %v445 = vsel %vm95, %v440, %v444
  %v446 = vshrl.u32 %v64, 16
  %v448 = vrot.slane %v446, 4
  %v449 = vor.u32 %v448, %v444
  %v450 = vrot.slane %v449, 4
  %v452 = vshll.u32 %v65, 16
  %v454 = vrot.slane %v452, 5
  %v455 = vsel %vm95, %v450, %v454
  %v457 = vshrl.u32 %v66, 16
  %v459 = vrot.slane %v457, 4
  %v460 = vshll.u32 %v66, 16
  %v462 = vrot.slane %v460, 5
  %v463 = vor.u32 %v459, %v462
  %v464 = vrot.slane %v463, 4
  %v466 = vshll.u32 %v67, 16
  %v468 = vrot.slane %v466, 5
  %v469 = vsel %vm95, %v464, %v468
  %v470 = vshrl.u32 %v67, 16
  %v472 = vrot.slane %v470, 4
  %v473 = vor.u32 %v472, %v468
  %v474 = vrot.slane %v473, 4
  %v476 = vshll.u32 %v68, 16
  %v478 = vrot.slane %v476, 5
  %v479 = vsel %vm95, %v474, %v478
  %v481 = vshrl.u32 %v69, 16
  %v483 = vrot.slane %v481, 4
  %v484 = vshll.u32 %v69, 16
  %v486 = vrot.slane %v484, 5
  %v487 = vor.u32 %v483, %v486
  %v488 = vrot.slane %v487, 4
  %v490 = vshll.u32 %v70, 16
  %v492 = vrot.slane %v490, 5
  %v493 = vsel %vm95, %v488, %v492
  %v494 = vshrl.u32 %v70, 16
  %v496 = vrot.slane %v494, 4
  %v497 = vor.u32 %v496, %v492
  %v498 = vrot.slane %v497, 4
  %v500 = vshll.u32 %v71, 16
  %v502 = vrot.slane %v500, 5
  %v503 = vsel %vm95, %v498, %v502
  %v505 = vshrl.u32 %v72, 16
  %v507 = vrot.slane %v505, 4
  %v508 = vshll.u32 %v72, 16
  %v510 = vrot.slane %v508, 5
  %v511 = vor.u32 %v507, %v510
  %v512 = vrot.slane %v511, 4
  %v514 = vshll.u32 %v73, 16
  %v516 = vrot.slane %v514, 5
  %v517 = vsel %vm95, %v512, %v516
  %v518 = vshrl.u32 %v73, 16
  %v520 = vrot.slane %v518, 4
  %v521 = vor.u32 %v520, %v516
  %v522 = vrot.slane %v521, 4
  %v524 = vshll.u32 %v74, 16
  %v526 = vrot.slane %v524, 5
  %v527 = vsel %vm95, %v522, %v526
  %s528 = scalar_lea.vmem %s1, 144
  %v529 = vld [vmem:[%s528] sm:$0xff]
  %v530 = vld [vmem:[%s528 + $0x8] sm:$0xff]
  %v531 = vld [vmem:[%s528 + $0x10] sm:$0xff]
  %v532 = vld [vmem:[%s528 + $0x18] sm:$0xff]
  %v533 = vld [vmem:[%s528 + $0x20] sm:$0xff]
  %v534 = vld [vmem:[%s528 + $0x28] sm:$0xff]
  %v535 = vld [vmem:[%s528 + $0x30] sm:$0xff]
  %v536 = vld [vmem:[%s528 + $0x38] sm:$0xff]
  %v537 = vld [vmem:[%s528 + $0x40] sm:$0xff]
  %v538 = vld [vmem:[%s528 + $0x48] sm:$0xff]
  %v539 = vld [vmem:[%s528 + $0x50] sm:$0xff]
  %v540 = vld [vmem:[%s528 + $0x58] sm:$0xff]
  %v541 = vld [vmem:[%s528 + $0x60] sm:$0xff]
  %v542 = vld [vmem:[%s528 + $0x68] sm:$0xff]
  %v543 = vld [vmem:[%s528 + $0x70] sm:$0xff]
  %v544 = vld [vmem:[%s528 + $0x78] sm:$0xff]
  %v545 = vld [vmem:[%s528 + $0x80] sm:$0xff]
  %v546 = vld [vmem:[%s528 + $0x88] sm:$0xff]
  %v547 = vunpack.c.l.b16 %v109
  %v548 = vunpack.c.l.b16 %v119
  %v549 = vunpack.c.l.b16 %v133
  %v550 = vunpack.c.l.b16 %v143
  %v551 = vunpack.c.l.b16 %v157
  %v552 = vunpack.c.l.b16 %v167
  %v553 = vunpack.c.l.b16 %v181
  %v554 = vunpack.c.l.b16 %v191
  %v555 = vunpack.c.l.b16 %v205
  %v556 = vunpack.c.l.b16 %v215
  %v557 = vunpack.c.l.b16 %v229
  %v558 = vunpack.c.l.b16 %v239
  %v559 = vunpack.c.l.b16 %v253
  %v560 = vunpack.c.l.b16 %v263
  %v561 = vunpack.c.l.b16 %v277
  %v562 = vunpack.c.l.b16 %v287
  %v563 = vunpack.c.l.b16 %v301
  %v564 = vunpack.c.l.b16 %v311
  %v565 = vunpack.c.l.b16 %v325
  %v566 = vunpack.c.l.b16 %v335
  %v567 = vunpack.c.l.b16 %v349
  %v568 = vunpack.c.l.b16 %v359
  %v569 = vunpack.c.l.b16 %v373
  %v570 = vunpack.c.l.b16 %v383
  %v571 = vunpack.c.l.b16 %v397
  %v572 = vunpack.c.l.b16 %v407
  %v573 = vunpack.c.l.b16 %v421
  %v574 = vunpack.c.l.b16 %v431
  %v575 = vunpack.c.l.b16 %v445
  %v576 = vunpack.c.l.b16 %v455
  %v577 = vunpack.c.l.b16 %v469
  %v578 = vunpack.c.l.b16 %v479
  %v579 = vunpack.c.l.b16 %v493
  %v580 = vunpack.c.l.b16 %v503
  %v581 = vunpack.c.l.b16 %v517
  %v582 = vunpack.c.l.b16 %v527
  %v583 = vpack.c.b16 %v548, %v547
  %v584 = vpack.c.b16 %v550, %v549
  %v585 = vpack.c.b16 %v552, %v551
  %v586 = vpack.c.b16 %v554, %v553
  %v587 = vpack.c.b16 %v556, %v555
  %v588 = vpack.c.b16 %v558, %v557
  %v589 = vpack.c.b16 %v560, %v559
  %v590 = vpack.c.b16 %v562, %v561
  %v591 = vpack.c.b16 %v564, %v563
  %v592 = vpack.c.b16 %v566, %v565
  %v593 = vpack.c.b16 %v568, %v567
  %v594 = vpack.c.b16 %v570, %v569
  %v595 = vpack.c.b16 %v572, %v571
  %v596 = vpack.c.b16 %v574, %v573
  %v597 = vpack.c.b16 %v576, %v575
  %v598 = vpack.c.b16 %v578, %v577
  %v599 = vpack.c.b16 %v580, %v579
  %v600 = vpack.c.b16 %v582, %v581
  %v619 = vunpack.c.l.b16 %v529
  %v620 = vunpack.c.h.b16 %v529
  %v621 = vunpack.c.l.b16 %v530
  %v622 = vunpack.c.h.b16 %v530
  %v623 = vunpack.c.l.b16 %v531
  %v624 = vunpack.c.h.b16 %v531
  %v625 = vunpack.c.l.b16 %v532
  %v626 = vunpack.c.h.b16 %v532
  %v627 = vunpack.c.l.b16 %v533
  %v628 = vunpack.c.h.b16 %v533
  %v629 = vunpack.c.l.b16 %v534
  %v630 = vunpack.c.h.b16 %v534
  %v631 = vunpack.c.l.b16 %v535
  %v632 = vunpack.c.h.b16 %v535
  %v633 = vunpack.c.l.b16 %v536
  %v634 = vunpack.c.h.b16 %v536
  %v635 = vunpack.c.l.b16 %v537
  %v636 = vunpack.c.h.b16 %v537
  %v637 = vunpack.c.l.b16 %v538
  %v638 = vunpack.c.h.b16 %v538
  %v639 = vunpack.c.l.b16 %v539
  %v640 = vunpack.c.h.b16 %v539
  %v641 = vunpack.c.l.b16 %v540
  %v642 = vunpack.c.h.b16 %v540
  %v643 = vunpack.c.l.b16 %v541
  %v644 = vunpack.c.h.b16 %v541
  %v645 = vunpack.c.l.b16 %v542
  %v646 = vunpack.c.h.b16 %v542
  %v647 = vunpack.c.l.b16 %v543
  %v648 = vunpack.c.h.b16 %v543
  %v649 = vunpack.c.l.b16 %v544
  %v650 = vunpack.c.h.b16 %v544
  %v651 = vunpack.c.l.b16 %v545
  %v652 = vunpack.c.h.b16 %v545
  %v653 = vunpack.c.l.b16 %v546
  %v654 = vunpack.c.h.b16 %v546
  %v655 = vpack.c.b16 %v623, %v619
  %v656 = vpack.c.b16 %v624, %v620
  %v657 = vpack.c.b16 %v625, %v621
  %v658 = vpack.c.b16 %v626, %v622
  %v659 = vpack.c.b16 %v631, %v627
  %v660 = vpack.c.b16 %v632, %v628
  %v661 = vpack.c.b16 %v633, %v629
  %v662 = vpack.c.b16 %v634, %v630
  %v663 = vpack.c.b16 %v639, %v635
  %v664 = vpack.c.b16 %v640, %v636
  %v665 = vpack.c.b16 %v641, %v637
  %v666 = vpack.c.b16 %v642, %v638
  %v667 = vpack.c.b16 %v647, %v643
  %v668 = vpack.c.b16 %v648, %v644
  %v669 = vpack.c.b16 %v649, %v645
  %v670 = vpack.c.b16 %v650, %v646
  %v671 = vpack.c.b16 %v651, %v651
  %v672 = vpack.c.b16 %v652, %v652
  %v673 = vpack.c.b16 %v653, %v653
  %v674 = vpack.c.b16 %v654, %v654
  %vm691 = vcmask 588800
  %v693 = vsel %vm691, %v583, 0
  %v696 = vsel %vm691, %v584, 0
  %v699 = vsel %vm691, %v585, 0
  %v702 = vsel %vm691, %v586, 0
  %v705 = vsel %vm691, %v587, 0
  %v708 = vsel %vm691, %v588, 0
  %v711 = vsel %vm691, %v589, 0
  %v714 = vsel %vm691, %v590, 0
  %v717 = vsel %vm691, %v591, 0
  %v720 = vsel %vm691, %v592, 0
  %v723 = vsel %vm691, %v593, 0
  %v726 = vsel %vm691, %v594, 0
  %v729 = vsel %vm691, %v595, 0
  %v732 = vsel %vm691, %v596, 0
  %v735 = vsel %vm691, %v597, 0
  %v738 = vsel %vm691, %v598, 0
  %v741 = vsel %vm691, %v599, 0
  %v744 = vsel %vm691, %v600, 0
  %vm746 = vcmask 1043456
  %v748 = vsel %vm746, %v671, 0
  %v751 = vsel %vm746, %v672, 0
  %v754 = vsel %vm746, %v673, 0
  %v757 = vsel %vm746, %v674, 0
  %759 = vmatprep.subr.bf16.mxu0 %v656
  %760 = vmatpush1.bf16.msra.mxu0 %v655
  %761 = vmatprep.subr.bf16.mxu0 %v660
  %762 = vmatpush1.bf16.msra.mxu0 %v659
  %763 = vmatprep.subr.bf16.mxu0 %v664
  %764 = vmatpush1.bf16.msra.mxu0 %v663
  %765 = vmatprep.subr.bf16.mxu0 %v668
  %766 = vmatpush1.bf16.msra.mxu0 %v667
  %767 = vmatprep.subr.bf16.mxu0 %v751
  %768 = vmatpush1.bf16.msra.mxu0 %v748
  %769 = vmatprep.subr.bf16.mxu0 0
  %770 = vmatpush1.bf16.msra.mxu0 0
  %771 = vmatprep.subr.bf16.mxu0 0
  %772 = vmatpush1.bf16.msra.mxu0 0
  %773 = vmatprep.subr.bf16.mxu0 0
  %774 = vmatpush1.bf16.msra.mxu0 0
  %775 = vmatprep.subr.bf16.mxu0 0
  %776 = vmatpush1.bf16.msra.mxu0 0
  %777 = vmatprep.subr.bf16.mxu0 0
  %778 = vmatpush1.bf16.msra.mxu0 0
  %779 = vmatprep.subr.bf16.mxu0 0
  %780 = vmatpush1.bf16.msra.mxu0 0
  %781 = vmatprep.subr.bf16.mxu0 0
  %782 = vmatpush1.bf16.msra.mxu0 0
  %783 = vmatprep.subr.bf16.mxu0 0
  %784 = vmatpush1.bf16.msra.mxu0 0
  %785 = vmatprep.subr.bf16.mxu0 0
  %786 = vmatpush1.bf16.msra.mxu0 0
  %787 = vmatprep.subr.bf16.mxu0 0
  %788 = vmatpush1.bf16.msra.mxu0 0
  %789 = vmatprep.subr.bf16.mxu0 0
  %790 = vmatpush1.bf16.msra.mxu0 0
  %791 = vmatprep.mubr.bf16.mxu0 0
  %792 = vmatmul.mubr.bf16.gmra.mrb[0].mxu0 %v693
  %v793 = vpop.f32.mrb[0].mxu0
  %v794 = vadd.f32 0.0, %v793
  %v795 = vpop.f32.mrb[0].mxu0
  %v796 = vadd.f32 0.0, %v795
  %v797 = vpop.f32.mrb[0].mxu0
  %v798 = vadd.f32 0.0, %v797
  %v799 = vpop.f32.mrb[0].mxu0
  %v800 = vadd.f32 0.0, %v799
  %801 = vmatprep.mubr.bf16.mxu0 0
  %802 = vmatmul.mubr.bf16.gmra.mrb[0].mxu0 %v696
  %v803 = vpop.f32.mrb[0].mxu0
  %v804 = vadd.f32 0.0, %v803
  %v805 = vpop.f32.mrb[0].mxu0
  %v806 = vadd.f32 0.0, %v805
  %v807 = vpop.f32.mrb[0].mxu0
  %v808 = vadd.f32 0.0, %v807
  %v809 = vpop.f32.mrb[0].mxu0
  %v810 = vadd.f32 0.0, %v809
  %811 = vmatprep.mubr.bf16.mxu0 0
  %812 = vmatmul.mubr.bf16.gmra.mrb[0].mxu0 %v699
  %v813 = vpop.f32.mrb[0].mxu0
  %v814 = vadd.f32 0.0, %v813
  %v815 = vpop.f32.mrb[0].mxu0
  %v816 = vadd.f32 0.0, %v815
  %v817 = vpop.f32.mrb[0].mxu0
  %v818 = vadd.f32 0.0, %v817
  %v819 = vpop.f32.mrb[0].mxu0
  %v820 = vadd.f32 0.0, %v819
  %821 = vmatprep.mubr.bf16.mxu0 0
  %822 = vmatmul.mubr.bf16.gmra.mrb[0].mxu0 %v702
  %v823 = vpop.f32.mrb[0].mxu0
  %v824 = vadd.f32 0.0, %v823
  %v825 = vpop.f32.mrb[0].mxu0
  %v826 = vadd.f32 0.0, %v825
  %v827 = vpop.f32.mrb[0].mxu0
  %v828 = vadd.f32 0.0, %v827
  %v829 = vpop.f32.mrb[0].mxu0
  %v830 = vadd.f32 0.0, %v829
  %831 = vmatprep.mubr.bf16.mxu0 0
  %832 = vmatmul.mubr.bf16.gmra.mrb[0].mxu0 %v705
  %v833 = vpop.f32.mrb[0].mxu0
  %v834 = vadd.f32 0.0, %v833
  %v835 = vpop.f32.mrb[0].mxu0
  %v836 = vadd.f32 0.0, %v835
  %v837 = vpop.f32.mrb[0].mxu0
  %v838 = vadd.f32 0.0, %v837
  %v839 = vpop.f32.mrb[0].mxu0
  %v840 = vadd.f32 0.0, %v839
  %841 = vmatprep.mubr.bf16.mxu0 0
  %842 = vmatmul.mubr.bf16.gmra.mrb[0].mxu0 %v708
  %v843 = vpop.f32.mrb[0].mxu0
  %v844 = vadd.f32 0.0, %v843
  %v845 = vpop.f32.mrb[0].mxu0
  %v846 = vadd.f32 0.0, %v845
  %v847 = vpop.f32.mrb[0].mxu0
  %v848 = vadd.f32 0.0, %v847
  %v849 = vpop.f32.mrb[0].mxu0
  %v850 = vadd.f32 0.0, %v849
  %851 = vmatprep.mubr.bf16.mxu0 0
  %852 = vmatmul.mubr.bf16.gmra.mrb[0].mxu0 %v711
  %v853 = vpop.f32.mrb[0].mxu0
  %v854 = vadd.f32 0.0, %v853
  %v855 = vpop.f32.mrb[0].mxu0
  %v856 = vadd.f32 0.0, %v855
  %v857 = vpop.f32.mrb[0].mxu0
  %v858 = vadd.f32 0.0, %v857
  %v859 = vpop.f32.mrb[0].mxu0
  %v860 = vadd.f32 0.0, %v859
  %861 = vmatprep.mubr.bf16.mxu0 0
  %862 = vmatmul.mubr.bf16.gmra.mrb[0].mxu0 %v714
  %v863 = vpop.f32.mrb[0].mxu0
  %v864 = vadd.f32 0.0, %v863
  %v865 = vpop.f32.mrb[0].mxu0
  %v866 = vadd.f32 0.0, %v865
  %v867 = vpop.f32.mrb[0].mxu0
  %v868 = vadd.f32 0.0, %v867
  %v869 = vpop.f32.mrb[0].mxu0
  %v870 = vadd.f32 0.0, %v869
  %871 = vmatprep.mubr.bf16.mxu0 0
  %872 = vmatmul.mubr.bf16.gmra.mrb[0].mxu0 %v717
  %v873 = vpop.f32.mrb[0].mxu0
  %v874 = vadd.f32 0.0, %v873
  %v875 = vpop.f32.mrb[0].mxu0
  %v876 = vadd.f32 0.0, %v875
  %v877 = vpop.f32.mrb[0].mxu0
  %v878 = vadd.f32 0.0, %v877
  %v879 = vpop.f32.mrb[0].mxu0
  %v880 = vadd.f32 0.0, %v879
  %881 = vmatprep.mubr.bf16.mxu0 0
  %882 = vmatmul.mubr.bf16.gmra.mrb[0].mxu0 %v720
  %v883 = vpop.f32.mrb[0].mxu0
  %v884 = vadd.f32 0.0, %v883
  %v885 = vpop.f32.mrb[0].mxu0
  %v886 = vadd.f32 0.0, %v885
  %v887 = vpop.f32.mrb[0].mxu0
  %v888 = vadd.f32 0.0, %v887
  %v889 = vpop.f32.mrb[0].mxu0
  %v890 = vadd.f32 0.0, %v889
  %891 = vmatprep.mubr.bf16.mxu0 0
  %892 = vmatmul.mubr.bf16.gmra.mrb[0].mxu0 %v723
  %v893 = vpop.f32.mrb[0].mxu0
  %v894 = vadd.f32 0.0, %v893
  %v895 = vpop.f32.mrb[0].mxu0
  %v896 = vadd.f32 0.0, %v895
  %v897 = vpop.f32.mrb[0].mxu0
  %v898 = vadd.f32 0.0, %v897
  %v899 = vpop.f32.mrb[0].mxu0
  %v900 = vadd.f32 0.0, %v899
  %901 = vmatprep.mubr.bf16.mxu0 0
  %902 = vmatmul.mubr.bf16.gmra.mrb[0].mxu0 %v726
  %v903 = vpop.f32.mrb[0].mxu0
  %v904 = vadd.f32 0.0, %v903
  %v905 = vpop.f32.mrb[0].mxu0
  %v906 = vadd.f32 0.0, %v905
  %v907 = vpop.f32.mrb[0].mxu0
  %v908 = vadd.f32 0.0, %v907
  %v909 = vpop.f32.mrb[0].mxu0
  %v910 = vadd.f32 0.0, %v909
  %911 = vmatprep.mubr.bf16.mxu0 0
  %912 = vmatmul.mubr.bf16.gmra.mrb[0].mxu0 %v729
  %v913 = vpop.f32.mrb[0].mxu0
  %v914 = vadd.f32 0.0, %v913
  %v915 = vpop.f32.mrb[0].mxu0
  %v916 = vadd.f32 0.0, %v915
  %v917 = vpop.f32.mrb[0].mxu0
  %v918 = vadd.f32 0.0, %v917
  %v919 = vpop.f32.mrb[0].mxu0
  %v920 = vadd.f32 0.0, %v919
  %921 = vmatprep.mubr.bf16.mxu0 0
  %922 = vmatmul.mubr.bf16.gmra.mrb[0].mxu0 %v732
  %v923 = vpop.f32.mrb[0].mxu0
  %v924 = vadd.f32 0.0, %v923
  %v925 = vpop.f32.mrb[0].mxu0
  %v926 = vadd.f32 0.0, %v925
  %v927 = vpop.f32.mrb[0].mxu0
  %v928 = vadd.f32 0.0, %v927
  %v929 = vpop.f32.mrb[0].mxu0
  %v930 = vadd.f32 0.0, %v929
  %931 = vmatprep.mubr.bf16.mxu0 0
  %932 = vmatmul.mubr.bf16.gmra.mrb[0].mxu0 %v735
  %v933 = vpop.f32.mrb[0].mxu0
  %v934 = vadd.f32 0.0, %v933
  %v935 = vpop.f32.mrb[0].mxu0
  %v936 = vadd.f32 0.0, %v935
  %v937 = vpop.f32.mrb[0].mxu0
  %v938 = vadd.f32 0.0, %v937
  %v939 = vpop.f32.mrb[0].mxu0
  %v940 = vadd.f32 0.0, %v939
  %941 = vmatprep.mubr.bf16.mxu0 0
  %942 = vmatmul.mubr.bf16.gmra.mrb[0].mxu0 %v738
  %v943 = vpop.f32.mrb[0].mxu0
  %v944 = vadd.f32 0.0, %v943
  %v945 = vpop.f32.mrb[0].mxu0
  %v946 = vadd.f32 0.0, %v945
  %v947 = vpop.f32.mrb[0].mxu0
  %v948 = vadd.f32 0.0, %v947
  %v949 = vpop.f32.mrb[0].mxu0
  %v950 = vadd.f32 0.0, %v949
  %951 = vmatprep.mubr.bf16.mxu0 0
  %952 = vmatmul.mubr.bf16.gmra.mrb[0].mxu0 %v741
  %v953 = vpop.f32.mrb[0].mxu0
  %v954 = vadd.f32 0.0, %v953
  %v955 = vpop.f32.mrb[0].mxu0
  %v956 = vadd.f32 0.0, %v955
  %v957 = vpop.f32.mrb[0].mxu0
  %v958 = vadd.f32 0.0, %v957
  %v959 = vpop.f32.mrb[0].mxu0
  %v960 = vadd.f32 0.0, %v959
  %961 = vmatprep.mubr.bf16.mxu0 0
  %962 = vmatmul.mubr.bf16.gmra.mrb[0].mxu0 %v744
  %v963 = vpop.f32.mrb[0].mxu0
  %v964 = vadd.f32 0.0, %v963
  %v965 = vpop.f32.mrb[0].mxu0
  %v966 = vadd.f32 0.0, %v965
  %v967 = vpop.f32.mrb[0].mxu0
  %v968 = vadd.f32 0.0, %v967
  %v969 = vpop.f32.mrb[0].mxu0
  %v970 = vadd.f32 0.0, %v969
  %971 = vdwg.mxu0
  %972 = vmatprep.subr.bf16.mxu0 %v658
  %973 = vmatpush1.bf16.msra.mxu0 %v657
  %974 = vmatprep.subr.bf16.mxu0 %v662
  %975 = vmatpush1.bf16.msra.mxu0 %v661
  %976 = vmatprep.subr.bf16.mxu0 %v666
  %977 = vmatpush1.bf16.msra.mxu0 %v665
  %978 = vmatprep.subr.bf16.mxu0 %v670
  %979 = vmatpush1.bf16.msra.mxu0 %v669
  %980 = vmatprep.subr.bf16.mxu0 %v757
  %981 = vmatpush1.bf16.msra.mxu0 %v754
  %982 = vmatprep.subr.bf16.mxu0 0
  %983 = vmatpush1.bf16.msra.mxu0 0
  %984 = vmatprep.subr.bf16.mxu0 0
  %985 = vmatpush1.bf16.msra.mxu0 0
  %986 = vmatprep.subr.bf16.mxu0 0
  %987 = vmatpush1.bf16.msra.mxu0 0
  %988 = vmatprep.subr.bf16.mxu0 0
  %989 = vmatpush1.bf16.msra.mxu0 0
  %990 = vmatprep.subr.bf16.mxu0 0
  %991 = vmatpush1.bf16.msra.mxu0 0
  %992 = vmatprep.subr.bf16.mxu0 0
  %993 = vmatpush1.bf16.msra.mxu0 0
  %994 = vmatprep.subr.bf16.mxu0 0
  %995 = vmatpush1.bf16.msra.mxu0 0
  %996 = vmatprep.subr.bf16.mxu0 0
  %997 = vmatpush1.bf16.msra.mxu0 0
  %998 = vmatprep.subr.bf16.mxu0 0
  %999 = vmatpush1.bf16.msra.mxu0 0
  %1000 = vmatprep.subr.bf16.mxu0 0
  %1001 = vmatpush1.bf16.msra.mxu0 0
  %1002 = vmatprep.subr.bf16.mxu0 0
  %1003 = vmatpush1.bf16.msra.mxu0 0
  %1004 = vmatprep.mubr.bf16.mxu0 0
  %1005 = vmatmul.mubr.bf16.gmra.mrb[0].mxu0 %v693
  %v1006 = vpop.f32.mrb[0].mxu0
  %v1007 = vadd.f32 0.0, %v1006
  %v1008 = vpop.f32.mrb[0].mxu0
  %v1009 = vadd.f32 0.0, %v1008
  %v1010 = vpop.f32.mrb[0].mxu0
  %v1011 = vadd.f32 0.0, %v1010
  %v1012 = vpop.f32.mrb[0].mxu0
  %v1013 = vadd.f32 0.0, %v1012
  %1014 = vmatprep.mubr.bf16.mxu0 0
  %1015 = vmatmul.mubr.bf16.gmra.mrb[0].mxu0 %v696
  %v1016 = vpop.f32.mrb[0].mxu0
  %v1017 = vadd.f32 0.0, %v1016
  %v1018 = vpop.f32.mrb[0].mxu0
  %v1019 = vadd.f32 0.0, %v1018
  %v1020 = vpop.f32.mrb[0].mxu0
  %v1021 = vadd.f32 0.0, %v1020
  %v1022 = vpop.f32.mrb[0].mxu0
  %v1023 = vadd.f32 0.0, %v1022
  %1024 = vmatprep.mubr.bf16.mxu0 0
  %1025 = vmatmul.mubr.bf16.gmra.mrb[0].mxu0 %v699
  %v1026 = vpop.f32.mrb[0].mxu0
  %v1027 = vadd.f32 0.0, %v1026
  %v1028 = vpop.f32.mrb[0].mxu0
  %v1029 = vadd.f32 0.0, %v1028
  %v1030 = vpop.f32.mrb[0].mxu0
  %v1031 = vadd.f32 0.0, %v1030
  %v1032 = vpop.f32.mrb[0].mxu0
  %v1033 = vadd.f32 0.0, %v1032
  %1034 = vmatprep.mubr.bf16.mxu0 0
  %1035 = vmatmul.mubr.bf16.gmra.mrb[0].mxu0 %v702
  %v1036 = vpop.f32.mrb[0].mxu0
  %v1037 = vadd.f32 0.0, %v1036
  %v1038 = vpop.f32.mrb[0].mxu0
  %v1039 = vadd.f32 0.0, %v1038
  %v1040 = vpop.f32.mrb[0].mxu0
  %v1041 = vadd.f32 0.0, %v1040
  %v1042 = vpop.f32.mrb[0].mxu0
  %v1043 = vadd.f32 0.0, %v1042
  %1044 = vmatprep.mubr.bf16.mxu0 0
  %1045 = vmatmul.mubr.bf16.gmra.mrb[0].mxu0 %v705
  %v1046 = vpop.f32.mrb[0].mxu0
  %v1047 = vadd.f32 0.0, %v1046
  %v1048 = vpop.f32.mrb[0].mxu0
  %v1049 = vadd.f32 0.0, %v1048
  %v1050 = vpop.f32.mrb[0].mxu0
  %v1051 = vadd.f32 0.0, %v1050
  %v1052 = vpop.f32.mrb[0].mxu0
  %v1053 = vadd.f32 0.0, %v1052
  %1054 = vmatprep.mubr.bf16.mxu0 0
  %1055 = vmatmul.mubr.bf16.gmra.mrb[0].mxu0 %v708
  %v1056 = vpop.f32.mrb[0].mxu0
  %v1057 = vadd.f32 0.0, %v1056
  %v1058 = vpop.f32.mrb[0].mxu0
  %v1059 = vadd.f32 0.0, %v1058
  %v1060 = vpop.f32.mrb[0].mxu0
  %v1061 = vadd.f32 0.0, %v1060
  %v1062 = vpop.f32.mrb[0].mxu0
  %v1063 = vadd.f32 0.0, %v1062
  %1064 = vmatprep.mubr.bf16.mxu0 0
  %1065 = vmatmul.mubr.bf16.gmra.mrb[0].mxu0 %v711
  %v1066 = vpop.f32.mrb[0].mxu0
  %v1067 = vadd.f32 0.0, %v1066
  %v1068 = vpop.f32.mrb[0].mxu0
  %v1069 = vadd.f32 0.0, %v1068
  %v1070 = vpop.f32.mrb[0].mxu0
  %v1071 = vadd.f32 0.0, %v1070
  %v1072 = vpop.f32.mrb[0].mxu0
  %v1073 = vadd.f32 0.0, %v1072
  %1074 = vmatprep.mubr.bf16.mxu0 0
  %1075 = vmatmul.mubr.bf16.gmra.mrb[0].mxu0 %v714
  %v1076 = vpop.f32.mrb[0].mxu0
  %v1077 = vadd.f32 0.0, %v1076
  %v1078 = vpop.f32.mrb[0].mxu0
  %v1079 = vadd.f32 0.0, %v1078
  %v1080 = vpop.f32.mrb[0].mxu0
  %v1081 = vadd.f32 0.0, %v1080
  %v1082 = vpop.f32.mrb[0].mxu0
  %v1083 = vadd.f32 0.0, %v1082
  %1084 = vmatprep.mubr.bf16.mxu0 0
  %1085 = vmatmul.mubr.bf16.gmra.mrb[0].mxu0 %v717
  %v1086 = vpop.f32.mrb[0].mxu0
  %v1087 = vadd.f32 0.0, %v1086
  %v1088 = vpop.f32.mrb[0].mxu0
  %v1089 = vadd.f32 0.0, %v1088
  %v1090 = vpop.f32.mrb[0].mxu0
  %v1091 = vadd.f32 0.0, %v1090
  %v1092 = vpop.f32.mrb[0].mxu0
  %v1093 = vadd.f32 0.0, %v1092
  %1094 = vmatprep.mubr.bf16.mxu0 0
  %1095 = vmatmul.mubr.bf16.gmra.mrb[0].mxu0 %v720
  %v1096 = vpop.f32.mrb[0].mxu0
  %v1097 = vadd.f32 0.0, %v1096
  %v1098 = vpop.f32.mrb[0].mxu0
  %v1099 = vadd.f32 0.0, %v1098
  %v1100 = vpop.f32.mrb[0].mxu0
  %v1101 = vadd.f32 0.0, %v1100
  %v1102 = vpop.f32.mrb[0].mxu0
  %v1103 = vadd.f32 0.0, %v1102
  %1104 = vmatprep.mubr.bf16.mxu0 0
  %1105 = vmatmul.mubr.bf16.gmra.mrb[0].mxu0 %v723
  %v1106 = vpop.f32.mrb[0].mxu0
  %v1107 = vadd.f32 0.0, %v1106
  %v1108 = vpop.f32.mrb[0].mxu0
  %v1109 = vadd.f32 0.0, %v1108
  %v1110 = vpop.f32.mrb[0].mxu0
  %v1111 = vadd.f32 0.0, %v1110
  %v1112 = vpop.f32.mrb[0].mxu0
  %v1113 = vadd.f32 0.0, %v1112
  %1114 = vmatprep.mubr.bf16.mxu0 0
  %1115 = vmatmul.mubr.bf16.gmra.mrb[0].mxu0 %v726
  %v1116 = vpop.f32.mrb[0].mxu0
  %v1117 = vadd.f32 0.0, %v1116
  %v1118 = vpop.f32.mrb[0].mxu0
  %v1119 = vadd.f32 0.0, %v1118
  %v1120 = vpop.f32.mrb[0].mxu0
  %v1121 = vadd.f32 0.0, %v1120
  %v1122 = vpop.f32.mrb[0].mxu0
  %v1123 = vadd.f32 0.0, %v1122
  %1124 = vmatprep.mubr.bf16.mxu0 0
  %1125 = vmatmul.mubr.bf16.gmra.mrb[0].mxu0 %v729
  %v1126 = vpop.f32.mrb[0].mxu0
  %v1127 = vadd.f32 0.0, %v1126
  %v1128 = vpop.f32.mrb[0].mxu0
  %v1129 = vadd.f32 0.0, %v1128
  %v1130 = vpop.f32.mrb[0].mxu0
  %v1131 = vadd.f32 0.0, %v1130
  %v1132 = vpop.f32.mrb[0].mxu0
  %v1133 = vadd.f32 0.0, %v1132
  %1134 = vmatprep.mubr.bf16.mxu0 0
  %1135 = vmatmul.mubr.bf16.gmra.mrb[0].mxu0 %v732
  %v1136 = vpop.f32.mrb[0].mxu0
  %v1137 = vadd.f32 0.0, %v1136
  %v1138 = vpop.f32.mrb[0].mxu0
  %v1139 = vadd.f32 0.0, %v1138
  %v1140 = vpop.f32.mrb[0].mxu0
  %v1141 = vadd.f32 0.0, %v1140
  %v1142 = vpop.f32.mrb[0].mxu0
  %v1143 = vadd.f32 0.0, %v1142
  %1144 = vmatprep.mubr.bf16.mxu0 0
  %1145 = vmatmul.mubr.bf16.gmra.mrb[0].mxu0 %v735
  %v1146 = vpop.f32.mrb[0].mxu0
  %v1147 = vadd.f32 0.0, %v1146
  %v1148 = vpop.f32.mrb[0].mxu0
  %v1149 = vadd.f32 0.0, %v1148
  %v1150 = vpop.f32.mrb[0].mxu0
  %v1151 = vadd.f32 0.0, %v1150
  %v1152 = vpop.f32.mrb[0].mxu0
  %v1153 = vadd.f32 0.0, %v1152
  %1154 = vmatprep.mubr.bf16.mxu0 0
  %1155 = vmatmul.mubr.bf16.gmra.mrb[0].mxu0 %v738
  %v1156 = vpop.f32.mrb[0].mxu0
  %v1157 = vadd.f32 0.0, %v1156
  %v1158 = vpop.f32.mrb[0].mxu0
  %v1159 = vadd.f32 0.0, %v1158
  %v1160 = vpop.f32.mrb[0].mxu0
  %v1161 = vadd.f32 0.0, %v1160
  %v1162 = vpop.f32.mrb[0].mxu0
  %v1163 = vadd.f32 0.0, %v1162
  %1164 = vmatprep.mubr.bf16.mxu0 0
  %1165 = vmatmul.mubr.bf16.gmra.mrb[0].mxu0 %v741
  %v1166 = vpop.f32.mrb[0].mxu0
  %v1167 = vadd.f32 0.0, %v1166
  %v1168 = vpop.f32.mrb[0].mxu0
  %v1169 = vadd.f32 0.0, %v1168
  %v1170 = vpop.f32.mrb[0].mxu0
  %v1171 = vadd.f32 0.0, %v1170
  %v1172 = vpop.f32.mrb[0].mxu0
  %v1173 = vadd.f32 0.0, %v1172
  %1174 = vmatprep.mubr.bf16.mxu0 0
  %1175 = vmatmul.mubr.bf16.gmra.mrb[0].mxu0 %v744
  %v1176 = vpop.f32.mrb[0].mxu0
  %v1177 = vadd.f32 0.0, %v1176
  %v1178 = vpop.f32.mrb[0].mxu0
  %v1179 = vadd.f32 0.0, %v1178
  %v1180 = vpop.f32.mrb[0].mxu0
  %v1181 = vadd.f32 0.0, %v1180
  %v1182 = vpop.f32.mrb[0].mxu0
  %v1183 = vadd.f32 0.0, %v1182
  %1184 = vdwg.mxu0
  %v1221 = vunpack.c.l.b16 %v21
  %v1222 = vunpack.c.l.b16 %v22
  %v1223 = vunpack.c.l.b16 %v24
  %v1224 = vunpack.c.l.b16 %v25
  %v1225 = vunpack.c.l.b16 %v27
  %v1226 = vunpack.c.l.b16 %v28
  %v1227 = vunpack.c.l.b16 %v30
  %v1228 = vunpack.c.l.b16 %v31
  %v1229 = vunpack.c.l.b16 %v33
  %v1230 = vunpack.c.l.b16 %v34
  %v1231 = vunpack.c.l.b16 %v36
  %v1232 = vunpack.c.l.b16 %v37
  %v1233 = vunpack.c.l.b16 %v39
  %v1234 = vunpack.c.l.b16 %v40
  %v1235 = vunpack.c.l.b16 %v42
  %v1236 = vunpack.c.l.b16 %v43
  %v1237 = vunpack.c.l.b16 %v45
  %v1238 = vunpack.c.l.b16 %v46
  %v1239 = vunpack.c.l.b16 %v48
  %v1240 = vunpack.c.l.b16 %v49
  %v1241 = vunpack.c.l.b16 %v51
  %v1242 = vunpack.c.l.b16 %v52
  %v1243 = vunpack.c.l.b16 %v54
  %v1244 = vunpack.c.l.b16 %v55
  %v1245 = vunpack.c.l.b16 %v57
  %v1246 = vunpack.c.l.b16 %v58
  %v1247 = vunpack.c.l.b16 %v60
  %v1248 = vunpack.c.l.b16 %v61
  %v1249 = vunpack.c.l.b16 %v63
  %v1250 = vunpack.c.l.b16 %v64
  %v1251 = vunpack.c.l.b16 %v66
  %v1252 = vunpack.c.l.b16 %v67
  %v1253 = vunpack.c.l.b16 %v69
  %v1254 = vunpack.c.l.b16 %v70
  %v1255 = vunpack.c.l.b16 %v72
  %v1256 = vunpack.c.l.b16 %v73
  %v1257 = vpack.c.b16 %v1222, %v1221
  %v1258 = vpack.c.b16 %v1224, %v1223
  %v1259 = vpack.c.b16 %v1226, %v1225
  %v1260 = vpack.c.b16 %v1228, %v1227
  %v1261 = vpack.c.b16 %v1230, %v1229
  %v1262 = vpack.c.b16 %v1232, %v1231
  %v1263 = vpack.c.b16 %v1234, %v1233
  %v1264 = vpack.c.b16 %v1236, %v1235
  %v1265 = vpack.c.b16 %v1238, %v1237
  %v1266 = vpack.c.b16 %v1240, %v1239
  %v1267 = vpack.c.b16 %v1242, %v1241
  %v1268 = vpack.c.b16 %v1244, %v1243
  %v1269 = vpack.c.b16 %v1246, %v1245
  %v1270 = vpack.c.b16 %v1248, %v1247
  %v1271 = vpack.c.b16 %v1250, %v1249
  %v1272 = vpack.c.b16 %v1252, %v1251
  %v1273 = vpack.c.b16 %v1254, %v1253
  %v1274 = vpack.c.b16 %v1256, %v1255
  %v1293 = vunpack.c.l.b16 %v75
  %v1294 = vunpack.c.h.b16 %v75
  %v1295 = vunpack.c.l.b16 %v76
  %v1296 = vunpack.c.h.b16 %v76
  %v1297 = vunpack.c.l.b16 %v77
  %v1298 = vunpack.c.h.b16 %v77
  %v1299 = vunpack.c.l.b16 %v78
  %v1300 = vunpack.c.h.b16 %v78
  %v1301 = vunpack.c.l.b16 %v79
  %v1302 = vunpack.c.h.b16 %v79
  %v1303 = vunpack.c.l.b16 %v80
  %v1304 = vunpack.c.h.b16 %v80
  %v1305 = vunpack.c.l.b16 %v81
  %v1306 = vunpack.c.h.b16 %v81
  %v1307 = vunpack.c.l.b16 %v82
  %v1308 = vunpack.c.h.b16 %v82
  %v1309 = vunpack.c.l.b16 %v83
  %v1310 = vunpack.c.h.b16 %v83
  %v1311 = vunpack.c.l.b16 %v84
  %v1312 = vunpack.c.h.b16 %v84
  %v1313 = vunpack.c.l.b16 %v85
  %v1314 = vunpack.c.h.b16 %v85
  %v1315 = vunpack.c.l.b16 %v86
  %v1316 = vunpack.c.h.b16 %v86
  %v1317 = vunpack.c.l.b16 %v87
  %v1318 = vunpack.c.h.b16 %v87
  %v1319 = vunpack.c.l.b16 %v88
  %v1320 = vunpack.c.h.b16 %v88
  %v1321 = vunpack.c.l.b16 %v89
  %v1322 = vunpack.c.h.b16 %v89
  %v1323 = vunpack.c.l.b16 %v90
  %v1324 = vunpack.c.h.b16 %v90
  %v1325 = vunpack.c.l.b16 %v91
  %v1326 = vunpack.c.h.b16 %v91
  %v1327 = vunpack.c.l.b16 %v92
  %v1328 = vunpack.c.h.b16 %v92
  %v1329 = vpack.c.b16 %v1297, %v1293
  %v1330 = vpack.c.b16 %v1298, %v1294
  %v1331 = vpack.c.b16 %v1299, %v1295
  %v1332 = vpack.c.b16 %v1300, %v1296
  %v1333 = vpack.c.b16 %v1305, %v1301
  %v1334 = vpack.c.b16 %v1306, %v1302
  %v1335 = vpack.c.b16 %v1307, %v1303
  %v1336 = vpack.c.b16 %v1308, %v1304
  %v1337 = vpack.c.b16 %v1313, %v1309
  %v1338 = vpack.c.b16 %v1314, %v1310
  %v1339 = vpack.c.b16 %v1315, %v1311
  %v1340 = vpack.c.b16 %v1316, %v1312
  %v1341 = vpack.c.b16 %v1321, %v1317
  %v1342 = vpack.c.b16 %v1322, %v1318
  %v1343 = vpack.c.b16 %v1323, %v1319
  %v1344 = vpack.c.b16 %v1324, %v1320
  %v1345 = vpack.c.b16 %v1325, %v1325
  %v1346 = vpack.c.b16 %v1326, %v1326
  %v1347 = vpack.c.b16 %v1327, %v1327
  %v1348 = vpack.c.b16 %v1328, %v1328
  %v1366 = vsel %vm691, %v1257, 0
  %v1369 = vsel %vm691, %v1258, 0
  %v1372 = vsel %vm691, %v1259, 0
  %v1375 = vsel %vm691, %v1260, 0
  %v1378 = vsel %vm691, %v1261, 0
  %v1381 = vsel %vm691, %v1262, 0
  %v1384 = vsel %vm691, %v1263, 0
  %v1387 = vsel %vm691, %v1264, 0
  %v1390 = vsel %vm691, %v1265, 0
  %v1393 = vsel %vm691, %v1266, 0
  %v1396 = vsel %vm691, %v1267, 0
  %v1399 = vsel %vm691, %v1268, 0
  %v1402 = vsel %vm691, %v1269, 0
  %v1405 = vsel %vm691, %v1270, 0
  %v1408 = vsel %vm691, %v1271, 0
  %v1411 = vsel %vm691, %v1272, 0
  %v1414 = vsel %vm691, %v1273, 0
  %v1417 = vsel %vm691, %v1274, 0
  %v1420 = vsel %vm746, %v1345, 0
  %v1423 = vsel %vm746, %v1346, 0
  %v1426 = vsel %vm746, %v1347, 0
  %v1429 = vsel %vm746, %v1348, 0
  %1431 = vmatprep.subr.bf16.mxu0 %v1330
  %1432 = vmatpush1.bf16.msra.mxu0 %v1329
  %1433 = vmatprep.subr.bf16.mxu0 %v1334
  %1434 = vmatpush1.bf16.msra.mxu0 %v1333
  %1435 = vmatprep.subr.bf16.mxu0 %v1338
  %1436 = vmatpush1.bf16.msra.mxu0 %v1337
  %1437 = vmatprep.subr.bf16.mxu0 %v1342
  %1438 = vmatpush1.bf16.msra.mxu0 %v1341
  %1439 = vmatprep.subr.bf16.mxu0 %v1423
  %1440 = vmatpush1.bf16.msra.mxu0 %v1420
  %1441 = vmatprep.subr.bf16.mxu0 0
  %1442 = vmatpush1.bf16.msra.mxu0 0
  %1443 = vmatprep.subr.bf16.mxu0 0
  %1444 = vmatpush1.bf16.msra.mxu0 0
  %1445 = vmatprep.subr.bf16.mxu0 0
  %1446 = vmatpush1.bf16.msra.mxu0 0
  %1447 = vmatprep.subr.bf16.mxu0 0
  %1448 = vmatpush1.bf16.msra.mxu0 0
  %1449 = vmatprep.subr.bf16.mxu0 0
  %1450 = vmatpush1.bf16.msra.mxu0 0
  %1451 = vmatprep.subr.bf16.mxu0 0
  %1452 = vmatpush1.bf16.msra.mxu0 0
  %1453 = vmatprep.subr.bf16.mxu0 0
  %1454 = vmatpush1.bf16.msra.mxu0 0
  %1455 = vmatprep.subr.bf16.mxu0 0
  %1456 = vmatpush1.bf16.msra.mxu0 0
  %1457 = vmatprep.subr.bf16.mxu0 0
  %1458 = vmatpush1.bf16.msra.mxu0 0
  %1459 = vmatprep.subr.bf16.mxu0 0
  %1460 = vmatpush1.bf16.msra.mxu0 0
  %1461 = vmatprep.subr.bf16.mxu0 0
  %1462 = vmatpush1.bf16.msra.mxu0 0
  %1463 = vmatprep.mubr.bf16.mxu0 0
  %1464 = vmatmul.mubr.bf16.gmra.mrb[0].mxu0 %v1366
  %v1465 = vpop.f32.mrb[0].mxu0
  %v1466 = vadd.f32 %v794, %v1465
  %v1467 = vpop.f32.mrb[0].mxu0
  %v1468 = vadd.f32 %v796, %v1467
  %v1469 = vpop.f32.mrb[0].mxu0
  %v1470 = vadd.f32 %v798, %v1469
  %v1471 = vpop.f32.mrb[0].mxu0
  %v1472 = vadd.f32 %v800, %v1471
  %1473 = vmatprep.mubr.bf16.mxu0 0
  %1474 = vmatmul.mubr.bf16.gmra.mrb[0].mxu0 %v1369
  %v1475 = vpop.f32.mrb[0].mxu0
  %v1476 = vadd.f32 %v804, %v1475
  %v1477 = vpop.f32.mrb[0].mxu0
  %v1478 = vadd.f32 %v806, %v1477
  %v1479 = vpop.f32.mrb[0].mxu0
  %v1480 = vadd.f32 %v808, %v1479
  %v1481 = vpop.f32.mrb[0].mxu0
  %v1482 = vadd.f32 %v810, %v1481
  %1483 = vmatprep.mubr.bf16.mxu0 0
  %1484 = vmatmul.mubr.bf16.gmra.mrb[0].mxu0 %v1372
  %v1485 = vpop.f32.mrb[0].mxu0
  %v1486 = vadd.f32 %v814, %v1485
  %v1487 = vpop.f32.mrb[0].mxu0
  %v1488 = vadd.f32 %v816, %v1487
  %v1489 = vpop.f32.mrb[0].mxu0
  %v1490 = vadd.f32 %v818, %v1489
  %v1491 = vpop.f32.mrb[0].mxu0
  %v1492 = vadd.f32 %v820, %v1491
  %1493 = vmatprep.mubr.bf16.mxu0 0
  %1494 = vmatmul.mubr.bf16.gmra.mrb[0].mxu0 %v1375
  %v1495 = vpop.f32.mrb[0].mxu0
  %v1496 = vadd.f32 %v824, %v1495
  %v1497 = vpop.f32.mrb[0].mxu0
  %v1498 = vadd.f32 %v826, %v1497
  %v1499 = vpop.f32.mrb[0].mxu0
  %v1500 = vadd.f32 %v828, %v1499
  %v1501 = vpop.f32.mrb[0].mxu0
  %v1502 = vadd.f32 %v830, %v1501
  %1503 = vmatprep.mubr.bf16.mxu0 0
  %1504 = vmatmul.mubr.bf16.gmra.mrb[0].mxu0 %v1378
  %v1505 = vpop.f32.mrb[0].mxu0
  %v1506 = vadd.f32 %v834, %v1505
  %v1507 = vpop.f32.mrb[0].mxu0
  %v1508 = vadd.f32 %v836, %v1507
  %v1509 = vpop.f32.mrb[0].mxu0
  %v1510 = vadd.f32 %v838, %v1509
  %v1511 = vpop.f32.mrb[0].mxu0
  %v1512 = vadd.f32 %v840, %v1511
  %1513 = vmatprep.mubr.bf16.mxu0 0
  %1514 = vmatmul.mubr.bf16.gmra.mrb[0].mxu0 %v1381
  %v1515 = vpop.f32.mrb[0].mxu0
  %v1516 = vadd.f32 %v844, %v1515
  %v1517 = vpop.f32.mrb[0].mxu0
  %v1518 = vadd.f32 %v846, %v1517
  %v1519 = vpop.f32.mrb[0].mxu0
  %v1520 = vadd.f32 %v848, %v1519
  %v1521 = vpop.f32.mrb[0].mxu0
  %v1522 = vadd.f32 %v850, %v1521
  %1523 = vmatprep.mubr.bf16.mxu0 0
  %1524 = vmatmul.mubr.bf16.gmra.mrb[0].mxu0 %v1384
  %v1525 = vpop.f32.mrb[0].mxu0
  %v1526 = vadd.f32 %v854, %v1525
  %v1527 = vpop.f32.mrb[0].mxu0
  %v1528 = vadd.f32 %v856, %v1527
  %v1529 = vpop.f32.mrb[0].mxu0
  %v1530 = vadd.f32 %v858, %v1529
  %v1531 = vpop.f32.mrb[0].mxu0
  %v1532 = vadd.f32 %v860, %v1531
  %1533 = vmatprep.mubr.bf16.mxu0 0
  %1534 = vmatmul.mubr.bf16.gmra.mrb[0].mxu0 %v1387
  %v1535 = vpop.f32.mrb[0].mxu0
  %v1536 = vadd.f32 %v864, %v1535
  %v1537 = vpop.f32.mrb[0].mxu0
  %v1538 = vadd.f32 %v866, %v1537
  %v1539 = vpop.f32.mrb[0].mxu0
  %v1540 = vadd.f32 %v868, %v1539
  %v1541 = vpop.f32.mrb[0].mxu0
  %v1542 = vadd.f32 %v870, %v1541
  %1543 = vmatprep.mubr.bf16.mxu0 0
  %1544 = vmatmul.mubr.bf16.gmra.mrb[0].mxu0 %v1390
  %v1545 = vpop.f32.mrb[0].mxu0
  %v1546 = vadd.f32 %v874, %v1545
  %v1547 = vpop.f32.mrb[0].mxu0
  %v1548 = vadd.f32 %v876, %v1547
  %v1549 = vpop.f32.mrb[0].mxu0
  %v1550 = vadd.f32 %v878, %v1549
  %v1551 = vpop.f32.mrb[0].mxu0
  %v1552 = vadd.f32 %v880, %v1551
  %1553 = vmatprep.mubr.bf16.mxu0 0
  %1554 = vmatmul.mubr.bf16.gmra.mrb[0].mxu0 %v1393
  %v1555 = vpop.f32.mrb[0].mxu0
  %v1556 = vadd.f32 %v884, %v1555
  %v1557 = vpop.f32.mrb[0].mxu0
  %v1558 = vadd.f32 %v886, %v1557
  %v1559 = vpop.f32.mrb[0].mxu0
  %v1560 = vadd.f32 %v888, %v1559
  %v1561 = vpop.f32.mrb[0].mxu0
  %v1562 = vadd.f32 %v890, %v1561
  %1563 = vmatprep.mubr.bf16.mxu0 0
  %1564 = vmatmul.mubr.bf16.gmra.mrb[0].mxu0 %v1396
  %v1565 = vpop.f32.mrb[0].mxu0
  %v1566 = vadd.f32 %v894, %v1565
  %v1567 = vpop.f32.mrb[0].mxu0
  %v1568 = vadd.f32 %v896, %v1567
  %v1569 = vpop.f32.mrb[0].mxu0
  %v1570 = vadd.f32 %v898, %v1569
  %v1571 = vpop.f32.mrb[0].mxu0
  %v1572 = vadd.f32 %v900, %v1571
  %1573 = vmatprep.mubr.bf16.mxu0 0
  %1574 = vmatmul.mubr.bf16.gmra.mrb[0].mxu0 %v1399
  %v1575 = vpop.f32.mrb[0].mxu0
  %v1576 = vadd.f32 %v904, %v1575
  %v1577 = vpop.f32.mrb[0].mxu0
  %v1578 = vadd.f32 %v906, %v1577
  %v1579 = vpop.f32.mrb[0].mxu0
  %v1580 = vadd.f32 %v908, %v1579
  %v1581 = vpop.f32.mrb[0].mxu0
  %v1582 = vadd.f32 %v910, %v1581
  %1583 = vmatprep.mubr.bf16.mxu0 0
  %1584 = vmatmul.mubr.bf16.gmra.mrb[0].mxu0 %v1402
  %v1585 = vpop.f32.mrb[0].mxu0
  %v1586 = vadd.f32 %v914, %v1585
  %v1587 = vpop.f32.mrb[0].mxu0
  %v1588 = vadd.f32 %v916, %v1587
  %v1589 = vpop.f32.mrb[0].mxu0
  %v1590 = vadd.f32 %v918, %v1589
  %v1591 = vpop.f32.mrb[0].mxu0
  %v1592 = vadd.f32 %v920, %v1591
  %1593 = vmatprep.mubr.bf16.mxu0 0
  %1594 = vmatmul.mubr.bf16.gmra.mrb[0].mxu0 %v1405
  %v1595 = vpop.f32.mrb[0].mxu0
  %v1596 = vadd.f32 %v924, %v1595
  %v1597 = vpop.f32.mrb[0].mxu0
  %v1598 = vadd.f32 %v926, %v1597
  %v1599 = vpop.f32.mrb[0].mxu0
  %v1600 = vadd.f32 %v928, %v1599
  %v1601 = vpop.f32.mrb[0].mxu0
  %v1602 = vadd.f32 %v930, %v1601
  %1603 = vmatprep.mubr.bf16.mxu0 0
  %1604 = vmatmul.mubr.bf16.gmra.mrb[0].mxu0 %v1408
  %v1605 = vpop.f32.mrb[0].mxu0
  %v1606 = vadd.f32 %v934, %v1605
  %v1607 = vpop.f32.mrb[0].mxu0
  %v1608 = vadd.f32 %v936, %v1607
  %v1609 = vpop.f32.mrb[0].mxu0
  %v1610 = vadd.f32 %v938, %v1609
  %v1611 = vpop.f32.mrb[0].mxu0
  %v1612 = vadd.f32 %v940, %v1611
  %1613 = vmatprep.mubr.bf16.mxu0 0
  %1614 = vmatmul.mubr.bf16.gmra.mrb[0].mxu0 %v1411
  %v1615 = vpop.f32.mrb[0].mxu0
  %v1616 = vadd.f32 %v944, %v1615
  %v1617 = vpop.f32.mrb[0].mxu0
  %v1618 = vadd.f32 %v946, %v1617
  %v1619 = vpop.f32.mrb[0].mxu0
  %v1620 = vadd.f32 %v948, %v1619
  %v1621 = vpop.f32.mrb[0].mxu0
  %v1622 = vadd.f32 %v950, %v1621
  %1623 = vmatprep.mubr.bf16.mxu0 0
  %1624 = vmatmul.mubr.bf16.gmra.mrb[0].mxu0 %v1414
  %v1625 = vpop.f32.mrb[0].mxu0
  %v1626 = vadd.f32 %v954, %v1625
  %v1627 = vpop.f32.mrb[0].mxu0
  %v1628 = vadd.f32 %v956, %v1627
  %v1629 = vpop.f32.mrb[0].mxu0
  %v1630 = vadd.f32 %v958, %v1629
  %v1631 = vpop.f32.mrb[0].mxu0
  %v1632 = vadd.f32 %v960, %v1631
  %1633 = vmatprep.mubr.bf16.mxu0 0
  %1634 = vmatmul.mubr.bf16.gmra.mrb[0].mxu0 %v1417
  %v1635 = vpop.f32.mrb[0].mxu0
  %v1636 = vadd.f32 %v964, %v1635
  %v1637 = vpop.f32.mrb[0].mxu0
  %v1638 = vadd.f32 %v966, %v1637
  %v1639 = vpop.f32.mrb[0].mxu0
  %v1640 = vadd.f32 %v968, %v1639
  %v1641 = vpop.f32.mrb[0].mxu0
  %v1642 = vadd.f32 %v970, %v1641
  %1643 = vdwg.mxu0
  %1644 = vmatprep.subr.bf16.mxu0 %v1332
  %1645 = vmatpush1.bf16.msra.mxu0 %v1331
  %1646 = vmatprep.subr.bf16.mxu0 %v1336
  %1647 = vmatpush1.bf16.msra.mxu0 %v1335
  %1648 = vmatprep.subr.bf16.mxu0 %v1340
  %1649 = vmatpush1.bf16.msra.mxu0 %v1339
  %1650 = vmatprep.subr.bf16.mxu0 %v1344
  %1651 = vmatpush1.bf16.msra.mxu0 %v1343
  %1652 = vmatprep.subr.bf16.mxu0 %v1429
  %1653 = vmatpush1.bf16.msra.mxu0 %v1426
  %1654 = vmatprep.subr.bf16.mxu0 0
  %1655 = vmatpush1.bf16.msra.mxu0 0
  %1656 = vmatprep.subr.bf16.mxu0 0
  %1657 = vmatpush1.bf16.msra.mxu0 0
  %1658 = vmatprep.subr.bf16.mxu0 0
  %1659 = vmatpush1.bf16.msra.mxu0 0
  %1660 = vmatprep.subr.bf16.mxu0 0
  %1661 = vmatpush1.bf16.msra.mxu0 0
  %1662 = vmatprep.subr.bf16.mxu0 0
  %1663 = vmatpush1.bf16.msra.mxu0 0
  %1664 = vmatprep.subr.bf16.mxu0 0
  %1665 = vmatpush1.bf16.msra.mxu0 0
  %1666 = vmatprep.subr.bf16.mxu0 0
  %1667 = vmatpush1.bf16.msra.mxu0 0
  %1668 = vmatprep.subr.bf16.mxu0 0
  %1669 = vmatpush1.bf16.msra.mxu0 0
  %1670 = vmatprep.subr.bf16.mxu0 0
  %1671 = vmatpush1.bf16.msra.mxu0 0
  %1672 = vmatprep.subr.bf16.mxu0 0
  %1673 = vmatpush1.bf16.msra.mxu0 0
  %1674 = vmatprep.subr.bf16.mxu0 0
  %1675 = vmatpush1.bf16.msra.mxu0 0
  %1676 = vmatprep.mubr.bf16.mxu0 0
  %1677 = vmatmul.mubr.bf16.gmra.mrb[0].mxu0 %v1366
  %v1678 = vpop.f32.mrb[0].mxu0
  %v1679 = vadd.f32 %v1007, %v1678
  %v1680 = vpop.f32.mrb[0].mxu0
  %v1681 = vadd.f32 %v1009, %v1680
  %v1682 = vpop.f32.mrb[0].mxu0
  %v1683 = vadd.f32 %v1011, %v1682
  %v1684 = vpop.f32.mrb[0].mxu0
  %v1685 = vadd.f32 %v1013, %v1684
  %1686 = vmatprep.mubr.bf16.mxu0 0
  %1687 = vmatmul.mubr.bf16.gmra.mrb[0].mxu0 %v1369
  %v1688 = vpop.f32.mrb[0].mxu0
  %v1689 = vadd.f32 %v1017, %v1688
  %v1690 = vpop.f32.mrb[0].mxu0
  %v1691 = vadd.f32 %v1019, %v1690
  %v1692 = vpop.f32.mrb[0].mxu0
  %v1693 = vadd.f32 %v1021, %v1692
  %v1694 = vpop.f32.mrb[0].mxu0
  %v1695 = vadd.f32 %v1023, %v1694
  %1696 = vmatprep.mubr.bf16.mxu0 0
  %1697 = vmatmul.mubr.bf16.gmra.mrb[0].mxu0 %v1372
  %v1698 = vpop.f32.mrb[0].mxu0
  %v1699 = vadd.f32 %v1027, %v1698
  %v1700 = vpop.f32.mrb[0].mxu0
  %v1701 = vadd.f32 %v1029, %v1700
  %v1702 = vpop.f32.mrb[0].mxu0
  %v1703 = vadd.f32 %v1031, %v1702
  %v1704 = vpop.f32.mrb[0].mxu0
  %v1705 = vadd.f32 %v1033, %v1704
  %1706 = vmatprep.mubr.bf16.mxu0 0
  %1707 = vmatmul.mubr.bf16.gmra.mrb[0].mxu0 %v1375
  %v1708 = vpop.f32.mrb[0].mxu0
  %v1709 = vadd.f32 %v1037, %v1708
  %v1710 = vpop.f32.mrb[0].mxu0
  %v1711 = vadd.f32 %v1039, %v1710
  %v1712 = vpop.f32.mrb[0].mxu0
  %v1713 = vadd.f32 %v1041, %v1712
  %v1714 = vpop.f32.mrb[0].mxu0
  %v1715 = vadd.f32 %v1043, %v1714
  %1716 = vmatprep.mubr.bf16.mxu0 0
  %1717 = vmatmul.mubr.bf16.gmra.mrb[0].mxu0 %v1378
  %v1718 = vpop.f32.mrb[0].mxu0
  %v1719 = vadd.f32 %v1047, %v1718
  %v1720 = vpop.f32.mrb[0].mxu0
  %v1721 = vadd.f32 %v1049, %v1720
  %v1722 = vpop.f32.mrb[0].mxu0
  %v1723 = vadd.f32 %v1051, %v1722
  %v1724 = vpop.f32.mrb[0].mxu0
  %v1725 = vadd.f32 %v1053, %v1724
  %1726 = vmatprep.mubr.bf16.mxu0 0
  %1727 = vmatmul.mubr.bf16.gmra.mrb[0].mxu0 %v1381
  %v1728 = vpop.f32.mrb[0].mxu0
  %v1729 = vadd.f32 %v1057, %v1728
  %v1730 = vpop.f32.mrb[0].mxu0
  %v1731 = vadd.f32 %v1059, %v1730
  %v1732 = vpop.f32.mrb[0].mxu0
  %v1733 = vadd.f32 %v1061, %v1732
  %v1734 = vpop.f32.mrb[0].mxu0
  %v1735 = vadd.f32 %v1063, %v1734
  %1736 = vmatprep.mubr.bf16.mxu0 0
  %1737 = vmatmul.mubr.bf16.gmra.mrb[0].mxu0 %v1384
  %v1738 = vpop.f32.mrb[0].mxu0
  %v1739 = vadd.f32 %v1067, %v1738
  %v1740 = vpop.f32.mrb[0].mxu0
  %v1741 = vadd.f32 %v1069, %v1740
  %v1742 = vpop.f32.mrb[0].mxu0
  %v1743 = vadd.f32 %v1071, %v1742
  %v1744 = vpop.f32.mrb[0].mxu0
  %v1745 = vadd.f32 %v1073, %v1744
  %1746 = vmatprep.mubr.bf16.mxu0 0
  %1747 = vmatmul.mubr.bf16.gmra.mrb[0].mxu0 %v1387
  %v1748 = vpop.f32.mrb[0].mxu0
  %v1749 = vadd.f32 %v1077, %v1748
  %v1750 = vpop.f32.mrb[0].mxu0
  %v1751 = vadd.f32 %v1079, %v1750
  %v1752 = vpop.f32.mrb[0].mxu0
  %v1753 = vadd.f32 %v1081, %v1752
  %v1754 = vpop.f32.mrb[0].mxu0
  %v1755 = vadd.f32 %v1083, %v1754
  %1756 = vmatprep.mubr.bf16.mxu0 0
  %1757 = vmatmul.mubr.bf16.gmra.mrb[0].mxu0 %v1390
  %v1758 = vpop.f32.mrb[0].mxu0
  %v1759 = vadd.f32 %v1087, %v1758
  %v1760 = vpop.f32.mrb[0].mxu0
  %v1761 = vadd.f32 %v1089, %v1760
  %v1762 = vpop.f32.mrb[0].mxu0
  %v1763 = vadd.f32 %v1091, %v1762
  %v1764 = vpop.f32.mrb[0].mxu0
  %v1765 = vadd.f32 %v1093, %v1764
  %1766 = vmatprep.mubr.bf16.mxu0 0
  %1767 = vmatmul.mubr.bf16.gmra.mrb[0].mxu0 %v1393
  %v1768 = vpop.f32.mrb[0].mxu0
  %v1769 = vadd.f32 %v1097, %v1768
  %v1770 = vpop.f32.mrb[0].mxu0
  %v1771 = vadd.f32 %v1099, %v1770
  %v1772 = vpop.f32.mrb[0].mxu0
  %v1773 = vadd.f32 %v1101, %v1772
  %v1774 = vpop.f32.mrb[0].mxu0
  %v1775 = vadd.f32 %v1103, %v1774
  %1776 = vmatprep.mubr.bf16.mxu0 0
  %1777 = vmatmul.mubr.bf16.gmra.mrb[0].mxu0 %v1396
  %v1778 = vpop.f32.mrb[0].mxu0
  %v1779 = vadd.f32 %v1107, %v1778
  %v1780 = vpop.f32.mrb[0].mxu0
  %v1781 = vadd.f32 %v1109, %v1780
  %v1782 = vpop.f32.mrb[0].mxu0
  %v1783 = vadd.f32 %v1111, %v1782
  %v1784 = vpop.f32.mrb[0].mxu0
  %v1785 = vadd.f32 %v1113, %v1784
  %1786 = vmatprep.mubr.bf16.mxu0 0
  %1787 = vmatmul.mubr.bf16.gmra.mrb[0].mxu0 %v1399
  %v1788 = vpop.f32.mrb[0].mxu0
  %v1789 = vadd.f32 %v1117, %v1788
  %v1790 = vpop.f32.mrb[0].mxu0
  %v1791 = vadd.f32 %v1119, %v1790
  %v1792 = vpop.f32.mrb[0].mxu0
  %v1793 = vadd.f32 %v1121, %v1792
  %v1794 = vpop.f32.mrb[0].mxu0
  %v1795 = vadd.f32 %v1123, %v1794
  %1796 = vmatprep.mubr.bf16.mxu0 0
  %1797 = vmatmul.mubr.bf16.gmra.mrb[0].mxu0 %v1402
  %v1798 = vpop.f32.mrb[0].mxu0
  %v1799 = vadd.f32 %v1127, %v1798
  %v1800 = vpop.f32.mrb[0].mxu0
  %v1801 = vadd.f32 %v1129, %v1800
  %v1802 = vpop.f32.mrb[0].mxu0
  %v1803 = vadd.f32 %v1131, %v1802
  %v1804 = vpop.f32.mrb[0].mxu0
  %v1805 = vadd.f32 %v1133, %v1804
  %1806 = vmatprep.mubr.bf16.mxu0 0
  %1807 = vmatmul.mubr.bf16.gmra.mrb[0].mxu0 %v1405
  %v1808 = vpop.f32.mrb[0].mxu0
  %v1809 = vadd.f32 %v1137, %v1808
  %v1810 = vpop.f32.mrb[0].mxu0
  %v1811 = vadd.f32 %v1139, %v1810
  %v1812 = vpop.f32.mrb[0].mxu0
  %v1813 = vadd.f32 %v1141, %v1812
  %v1814 = vpop.f32.mrb[0].mxu0
  %v1815 = vadd.f32 %v1143, %v1814
  %1816 = vmatprep.mubr.bf16.mxu0 0
  %1817 = vmatmul.mubr.bf16.gmra.mrb[0].mxu0 %v1408
  %v1818 = vpop.f32.mrb[0].mxu0
  %v1819 = vadd.f32 %v1147, %v1818
  %v1820 = vpop.f32.mrb[0].mxu0
  %v1821 = vadd.f32 %v1149, %v1820
  %v1822 = vpop.f32.mrb[0].mxu0
  %v1823 = vadd.f32 %v1151, %v1822
  %v1824 = vpop.f32.mrb[0].mxu0
  %v1825 = vadd.f32 %v1153, %v1824
  %1826 = vmatprep.mubr.bf16.mxu0 0
  %1827 = vmatmul.mubr.bf16.gmra.mrb[0].mxu0 %v1411
  %v1828 = vpop.f32.mrb[0].mxu0
  %v1829 = vadd.f32 %v1157, %v1828
  %v1830 = vpop.f32.mrb[0].mxu0
  %v1831 = vadd.f32 %v1159, %v1830
  %v1832 = vpop.f32.mrb[0].mxu0
  %v1833 = vadd.f32 %v1161, %v1832
  %v1834 = vpop.f32.mrb[0].mxu0
  %v1835 = vadd.f32 %v1163, %v1834
  %1836 = vmatprep.mubr.bf16.mxu0 0
  %1837 = vmatmul.mubr.bf16.gmra.mrb[0].mxu0 %v1414
  %v1838 = vpop.f32.mrb[0].mxu0
  %v1839 = vadd.f32 %v1167, %v1838
  %v1840 = vpop.f32.mrb[0].mxu0
  %v1841 = vadd.f32 %v1169, %v1840
  %v1842 = vpop.f32.mrb[0].mxu0
  %v1843 = vadd.f32 %v1171, %v1842
  %v1844 = vpop.f32.mrb[0].mxu0
  %v1845 = vadd.f32 %v1173, %v1844
  %1846 = vmatprep.mubr.bf16.mxu0 0
  %1847 = vmatmul.mubr.bf16.gmra.mrb[0].mxu0 %v1417
  %v1848 = vpop.f32.mrb[0].mxu0
  %v1849 = vadd.f32 %v1177, %v1848
  %v1850 = vpop.f32.mrb[0].mxu0
  %v1851 = vadd.f32 %v1179, %v1850
  %v1852 = vpop.f32.mrb[0].mxu0
  %v1853 = vadd.f32 %v1181, %v1852
  %v1854 = vpop.f32.mrb[0].mxu0
  %v1855 = vadd.f32 %v1183, %v1854
  %1856 = vdwg.mxu0
  %vm1875 = vcmask 1042432
  %vm1876 = vcmask 1046532
  %vm1877 = vmor %vm1875, %vm1876
  %v1878 = vrot.slane %v21, 5
  %v1879 = vrot.slane %v1878, 4
  %v1880 = vrot.slane %v22, 5
  %v1881 = vsel %vm1877, %v1879, %v1880
  %v1882 = vrot.slane %v1880, 4
  %v1883 = vrot.slane %v23, 5
  %v1884 = vsel %vm1877, %v1882, %v1883
  %v1885 = vrot.slane %v24, 5
  %v1886 = vrot.slane %v1885, 4
  %v1887 = vrot.slane %v25, 5
  %v1888 = vsel %vm1877, %v1886, %v1887
  %v1889 = vrot.slane %v1887, 4
  %v1890 = vrot.slane %v26, 5
  %v1891 = vsel %vm1877, %v1889, %v1890
  %v1892 = vrot.slane %v27, 5
  %v1893 = vrot.slane %v1892, 4
  %v1894 = vrot.slane %v28, 5
  %v1895 = vsel %vm1877, %v1893, %v1894
  %v1896 = vrot.slane %v1894, 4
  %v1897 = vrot.slane %v29, 5
  %v1898 = vsel %vm1877, %v1896, %v1897
  %v1899 = vrot.slane %v30, 5
  %v1900 = vrot.slane %v1899, 4
  %v1901 = vrot.slane %v31, 5
  %v1902 = vsel %vm1877, %v1900, %v1901
  %v1903 = vrot.slane %v1901, 4
  %v1904 = vrot.slane %v32, 5
  %v1905 = vsel %vm1877, %v1903, %v1904
  %v1906 = vrot.slane %v33, 5
  %v1907 = vrot.slane %v1906, 4
  %v1908 = vrot.slane %v34, 5
  %v1909 = vsel %vm1877, %v1907, %v1908
  %v1910 = vrot.slane %v1908, 4
  %v1911 = vrot.slane %v35, 5
  %v1912 = vsel %vm1877, %v1910, %v1911
  %v1913 = vrot.slane %v36, 5
  %v1914 = vrot.slane %v1913, 4
  %v1915 = vrot.slane %v37, 5
  %v1916 = vsel %vm1877, %v1914, %v1915
  %v1917 = vrot.slane %v1915, 4
  %v1918 = vrot.slane %v38, 5
  %v1919 = vsel %vm1877, %v1917, %v1918
  %v1920 = vrot.slane %v39, 5
  %v1921 = vrot.slane %v1920, 4
  %v1922 = vrot.slane %v40, 5
  %v1923 = vsel %vm1877, %v1921, %v1922
  %v1924 = vrot.slane %v1922, 4
  %v1925 = vrot.slane %v41, 5
  %v1926 = vsel %vm1877, %v1924, %v1925
  %v1927 = vrot.slane %v42, 5
  %v1928 = vrot.slane %v1927, 4
  %v1929 = vrot.slane %v43, 5
  %v1930 = vsel %vm1877, %v1928, %v1929
  %v1931 = vrot.slane %v1929, 4
  %v1932 = vrot.slane %v44, 5
  %v1933 = vsel %vm1877, %v1931, %v1932
  %v1934 = vrot.slane %v45, 5
  %v1935 = vrot.slane %v1934, 4
  %v1936 = vrot.slane %v46, 5
  %v1937 = vsel %vm1877, %v1935, %v1936
  %v1938 = vrot.slane %v1936, 4
  %v1939 = vrot.slane %v47, 5
  %v1940 = vsel %vm1877, %v1938, %v1939
  %v1941 = vrot.slane %v48, 5
  %v1942 = vrot.slane %v1941, 4
  %v1943 = vrot.slane %v49, 5
  %v1944 = vsel %vm1877, %v1942, %v1943
  %v1945 = vrot.slane %v1943, 4
  %v1946 = vrot.slane %v50, 5
  %v1947 = vsel %vm1877, %v1945, %v1946
  %v1948 = vrot.slane %v51, 5
  %v1949 = vrot.slane %v1948, 4
  %v1950 = vrot.slane %v52, 5
  %v1951 = vsel %vm1877, %v1949, %v1950
  %v1952 = vrot.slane %v1950, 4
  %v1953 = vrot.slane %v53, 5
  %v1954 = vsel %vm1877, %v1952, %v1953
  %v1955 = vrot.slane %v54, 5
  %v1956 = vrot.slane %v1955, 4
  %v1957 = vrot.slane %v55, 5
  %v1958 = vsel %vm1877, %v1956, %v1957
  %v1959 = vrot.slane %v1957, 4
  %v1960 = vrot.slane %v56, 5
  %v1961 = vsel %vm1877, %v1959, %v1960
  %v1962 = vrot.slane %v57, 5
  %v1963 = vrot.slane %v1962, 4
  %v1964 = vrot.slane %v58, 5
  %v1965 = vsel %vm1877, %v1963, %v1964
  %v1966 = vrot.slane %v1964, 4
  %v1967 = vrot.slane %v59, 5
  %v1968 = vsel %vm1877, %v1966, %v1967
  %v1969 = vrot.slane %v60, 5
  %v1970 = vrot.slane %v1969, 4
  %v1971 = vrot.slane %v61, 5
  %v1972 = vsel %vm1877, %v1970, %v1971
  %v1973 = vrot.slane %v1971, 4
  %v1974 = vrot.slane %v62, 5
  %v1975 = vsel %vm1877, %v1973, %v1974
  %v1976 = vrot.slane %v63, 5
  %v1977 = vrot.slane %v1976, 4
  %v1978 = vrot.slane %v64, 5
  %v1979 = vsel %vm1877, %v1977, %v1978
  %v1980 = vrot.slane %v1978, 4
  %v1981 = vrot.slane %v65, 5
  %v1982 = vsel %vm1877, %v1980, %v1981
  %v1983 = vrot.slane %v66, 5
  %v1984 = vrot.slane %v1983, 4
  %v1985 = vrot.slane %v67, 5
  %v1986 = vsel %vm1877, %v1984, %v1985
  %v1987 = vrot.slane %v1985, 4
  %v1988 = vrot.slane %v68, 5
  %v1989 = vsel %vm1877, %v1987, %v1988
  %v1990 = vrot.slane %v69, 5
  %v1991 = vrot.slane %v1990, 4
  %v1992 = vrot.slane %v70, 5
  %v1993 = vsel %vm1877, %v1991, %v1992
  %v1994 = vrot.slane %v1992, 4
  %v1995 = vrot.slane %v71, 5
  %v1996 = vsel %vm1877, %v1994, %v1995
  %v1997 = vrot.slane %v72, 5
  %v1998 = vrot.slane %v1997, 4
  %v1999 = vrot.slane %v73, 5
  %v2000 = vsel %vm1877, %v1998, %v1999
  %v2001 = vrot.slane %v1999, 4
  %v2002 = vrot.slane %v74, 5
  %v2003 = vsel %vm1877, %v2001, %v2002
  %s2004 = scalar_lea.vmem %s1, 288
  %v2005 = vld [vmem:[%s2004] sm:$0xff]
  %v2006 = vld [vmem:[%s2004 + $0x8] sm:$0xff]
  %v2007 = vld [vmem:[%s2004 + $0x10] sm:$0xff]
  %v2008 = vld [vmem:[%s2004 + $0x18] sm:$0xff]
  %v2009 = vld [vmem:[%s2004 + $0x20] sm:$0xff]
  %v2010 = vld [vmem:[%s2004 + $0x28] sm:$0xff]
  %v2011 = vld [vmem:[%s2004 + $0x30] sm:$0xff]
  %v2012 = vld [vmem:[%s2004 + $0x38] sm:$0xff]
  %v2013 = vld [vmem:[%s2004 + $0x40] sm:$0xff]
  %v2014 = vld [vmem:[%s2004 + $0x48] sm:$0xff]
  %v2015 = vld [vmem:[%s2004 + $0x50] sm:$0xff]
  %v2016 = vld [vmem:[%s2004 + $0x58] sm:$0xff]
  %v2017 = vld [vmem:[%s2004 + $0x60] sm:$0xff]
  %v2018 = vld [vmem:[%s2004 + $0x68] sm:$0xff]
  %v2019 = vld [vmem:[%s2004 + $0x70] sm:$0xff]
  %v2020 = vld [vmem:[%s2004 + $0x78] sm:$0xff]
  %v2021 = vld [vmem:[%s2004 + $0x80] sm:$0xff]
  %v2022 = vld [vmem:[%s2004 + $0x88] sm:$0xff]
  %v2023 = vunpack.c.l.b16 %v1881
  %v2024 = vunpack.c.l.b16 %v1884
  %v2025 = vunpack.c.l.b16 %v1888
  %v2026 = vunpack.c.l.b16 %v1891
  %v2027 = vunpack.c.l.b16 %v1895
  %v2028 = vunpack.c.l.b16 %v1898
  %v2029 = vunpack.c.l.b16 %v1902
  %v2030 = vunpack.c.l.b16 %v1905
  %v2031 = vunpack.c.l.b16 %v1909
  %v2032 = vunpack.c.l.b16 %v1912
  %v2033 = vunpack.c.l.b16 %v1916
  %v2034 = vunpack.c.l.b16 %v1919
  %v2035 = vunpack.c.l.b16 %v1923
  %v2036 = vunpack.c.l.b16 %v1926
  %v2037 = vunpack.c.l.b16 %v1930
  %v2038 = vunpack.c.l.b16 %v1933
  %v2039 = vunpack.c.l.b16 %v1937
  %v2040 = vunpack.c.l.b16 %v1940
  %v2041 = vunpack.c.l.b16 %v1944
  %v2042 = vunpack.c.l.b16 %v1947
  %v2043 = vunpack.c.l.b16 %v1951
  %v2044 = vunpack.c.l.b16 %v1954
  %v2045 = vunpack.c.l.b16 %v1958
  %v2046 = vunpack.c.l.b16 %v1961
  %v2047 = vunpack.c.l.b16 %v1965
  %v2048 = vunpack.c.l.b16 %v1968
  %v2049 = vunpack.c.l.b16 %v1972
  %v2050 = vunpack.c.l.b16 %v1975
  %v2051 = vunpack.c.l.b16 %v1979
  %v2052 = vunpack.c.l.b16 %v1982
  %v2053 = vunpack.c.l.b16 %v1986
  %v2054 = vunpack.c.l.b16 %v1989
  %v2055 = vunpack.c.l.b16 %v1993
  %v2056 = vunpack.c.l.b16 %v1996
  %v2057 = vunpack.c.l.b16 %v2000
  %v2058 = vunpack.c.l.b16 %v2003
  %v2059 = vpack.c.b16 %v2024, %v2023
  %v2060 = vpack.c.b16 %v2026, %v2025
  %v2061 = vpack.c.b16 %v2028, %v2027
  %v2062 = vpack.c.b16 %v2030, %v2029
  %v2063 = vpack.c.b16 %v2032, %v2031
  %v2064 = vpack.c.b16 %v2034, %v2033
  %v2065 = vpack.c.b16 %v2036, %v2035
  %v2066 = vpack.c.b16 %v2038, %v2037
  %v2067 = vpack.c.b16 %v2040, %v2039
  %v2068 = vpack.c.b16 %v2042, %v2041
  %v2069 = vpack.c.b16 %v2044, %v2043
  %v2070 = vpack.c.b16 %v2046, %v2045
  %v2071 = vpack.c.b16 %v2048, %v2047
  %v2072 = vpack.c.b16 %v2050, %v2049
  %v2073 = vpack.c.b16 %v2052, %v2051
  %v2074 = vpack.c.b16 %v2054, %v2053
  %v2075 = vpack.c.b16 %v2056, %v2055
  %v2076 = vpack.c.b16 %v2058, %v2057
  %v2095 = vunpack.c.l.b16 %v2005
  %v2096 = vunpack.c.h.b16 %v2005
  %v2097 = vunpack.c.l.b16 %v2006
  %v2098 = vunpack.c.h.b16 %v2006
  %v2099 = vunpack.c.l.b16 %v2007
  %v2100 = vunpack.c.h.b16 %v2007
  %v2101 = vunpack.c.l.b16 %v2008
  %v2102 = vunpack.c.h.b16 %v2008
  %v2103 = vunpack.c.l.b16 %v2009
  %v2104 = vunpack.c.h.b16 %v2009
  %v2105 = vunpack.c.l.b16 %v2010
  %v2106 = vunpack.c.h.b16 %v2010
  %v2107 = vunpack.c.l.b16 %v2011
  %v2108 = vunpack.c.h.b16 %v2011
  %v2109 = vunpack.c.l.b16 %v2012
  %v2110 = vunpack.c.h.b16 %v2012
  %v2111 = vunpack.c.l.b16 %v2013
  %v2112 = vunpack.c.h.b16 %v2013
  %v2113 = vunpack.c.l.b16 %v2014
  %v2114 = vunpack.c.h.b16 %v2014
  %v2115 = vunpack.c.l.b16 %v2015
  %v2116 = vunpack.c.h.b16 %v2015
  %v2117 = vunpack.c.l.b16 %v2016
  %v2118 = vunpack.c.h.b16 %v2016
  %v2119 = vunpack.c.l.b16 %v2017
  %v2120 = vunpack.c.h.b16 %v2017
  %v2121 = vunpack.c.l.b16 %v2018
  %v2122 = vunpack.c.h.b16 %v2018
  %v2123 = vunpack.c.l.b16 %v2019
  %v2124 = vunpack.c.h.b16 %v2019
  %v2125 = vunpack.c.l.b16 %v2020
  %v2126 = vunpack.c.h.b16 %v2020
  %v2127 = vunpack.c.l.b16 %v2021
  %v2128 = vunpack.c.h.b16 %v2021
  %v2129 = vunpack.c.l.b16 %v2022
  %v2130 = vunpack.c.h.b16 %v2022
  %v2131 = vpack.c.b16 %v2099, %v2095
  %v2132 = vpack.c.b16 %v2100, %v2096
  %v2133 = vpack.c.b16 %v2101, %v2097
  %v2134 = vpack.c.b16 %v2102, %v2098
  %v2135 = vpack.c.b16 %v2107, %v2103
  %v2136 = vpack.c.b16 %v2108, %v2104
  %v2137 = vpack.c.b16 %v2109, %v2105
  %v2138 = vpack.c.b16 %v2110, %v2106
  %v2139 = vpack.c.b16 %v2115, %v2111
  %v2140 = vpack.c.b16 %v2116, %v2112
  %v2141 = vpack.c.b16 %v2117, %v2113
  %v2142 = vpack.c.b16 %v2118, %v2114
  %v2143 = vpack.c.b16 %v2123, %v2119
  %v2144 = vpack.c.b16 %v2124, %v2120
  %v2145 = vpack.c.b16 %v2125, %v2121
  %v2146 = vpack.c.b16 %v2126, %v2122
  %v2147 = vpack.c.b16 %v2127, %v2127
  %v2148 = vpack.c.b16 %v2128, %v2128
  %v2149 = vpack.c.b16 %v2129, %v2129
  %v2150 = vpack.c.b16 %v2130, %v2130
  %v2168 = vsel %vm691, %v2059, 0
  %v2171 = vsel %vm691, %v2060, 0
  %v2174 = vsel %vm691, %v2061, 0
  %v2177 = vsel %vm691, %v2062, 0
  %v2180 = vsel %vm691, %v2063, 0
  %v2183 = vsel %vm691, %v2064, 0
  %v2186 = vsel %vm691, %v2065, 0
  %v2189 = vsel %vm691, %v2066, 0
  %v2192 = vsel %vm691, %v2067, 0
  %v2195 = vsel %vm691, %v2068, 0
  %v2198 = vsel %vm691, %v2069, 0
  %v2201 = vsel %vm691, %v2070, 0
  %v2204 = vsel %vm691, %v2071, 0
  %v2207 = vsel %vm691, %v2072, 0
  %v2210 = vsel %vm691, %v2073, 0
  %v2213 = vsel %vm691, %v2074, 0
  %v2216 = vsel %vm691, %v2075, 0
  %v2219 = vsel %vm691, %v2076, 0
  %v2222 = vsel %vm746, %v2147, 0
  %v2225 = vsel %vm746, %v2148, 0
  %v2228 = vsel %vm746, %v2149, 0
  %v2231 = vsel %vm746, %v2150, 0
  %2233 = vmatprep.subr.bf16.mxu0 %v2132
  %2234 = vmatpush1.bf16.msra.mxu0 %v2131
  %2235 = vmatprep.subr.bf16.mxu0 %v2136
  %2236 = vmatpush1.bf16.msra.mxu0 %v2135
  %2237 = vmatprep.subr.bf16.mxu0 %v2140
  %2238 = vmatpush1.bf16.msra.mxu0 %v2139
  %2239 = vmatprep.subr.bf16.mxu0 %v2144
  %2240 = vmatpush1.bf16.msra.mxu0 %v2143
  %2241 = vmatprep.subr.bf16.mxu0 %v2225
  %2242 = vmatpush1.bf16.msra.mxu0 %v2222
  %2243 = vmatprep.subr.bf16.mxu0 0
  %2244 = vmatpush1.bf16.msra.mxu0 0
  %2245 = vmatprep.subr.bf16.mxu0 0
  %2246 = vmatpush1.bf16.msra.mxu0 0
  %2247 = vmatprep.subr.bf16.mxu0 0
  %2248 = vmatpush1.bf16.msra.mxu0 0
  %2249 = vmatprep.subr.bf16.mxu0 0
  %2250 = vmatpush1.bf16.msra.mxu0 0
  %2251 = vmatprep.subr.bf16.mxu0 0
  %2252 = vmatpush1.bf16.msra.mxu0 0
  %2253 = vmatprep.subr.bf16.mxu0 0
  %2254 = vmatpush1.bf16.msra.mxu0 0
  %2255 = vmatprep.subr.bf16.mxu0 0
  %2256 = vmatpush1.bf16.msra.mxu0 0
  %2257 = vmatprep.subr.bf16.mxu0 0
  %2258 = vmatpush1.bf16.msra.mxu0 0
  %2259 = vmatprep.subr.bf16.mxu0 0
  %2260 = vmatpush1.bf16.msra.mxu0 0
  %2261 = vmatprep.subr.bf16.mxu0 0
  %2262 = vmatpush1.bf16.msra.mxu0 0
  %2263 = vmatprep.subr.bf16.mxu0 0
  %2264 = vmatpush1.bf16.msra.mxu0 0
  %2265 = vmatprep.mubr.bf16.mxu0 0
  %2266 = vmatmul.mubr.bf16.gmra.mrb[0].mxu0 %v2168
  %v2267 = vpop.f32.mrb[0].mxu0
  %v2268 = vadd.f32 0.0, %v2267
  %v2269 = vpop.f32.mrb[0].mxu0
  %v2270 = vadd.f32 0.0, %v2269
  %v2271 = vpop.f32.mrb[0].mxu0
  %v2272 = vadd.f32 0.0, %v2271
  %v2273 = vpop.f32.mrb[0].mxu0
  %v2274 = vadd.f32 0.0, %v2273
  %2275 = vmatprep.mubr.bf16.mxu0 0
  %2276 = vmatmul.mubr.bf16.gmra.mrb[0].mxu0 %v2171
  %v2277 = vpop.f32.mrb[0].mxu0
  %v2278 = vadd.f32 0.0, %v2277
  %v2279 = vpop.f32.mrb[0].mxu0
  %v2280 = vadd.f32 0.0, %v2279
  %v2281 = vpop.f32.mrb[0].mxu0
  %v2282 = vadd.f32 0.0, %v2281
  %v2283 = vpop.f32.mrb[0].mxu0
  %v2284 = vadd.f32 0.0, %v2283
  %2285 = vmatprep.mubr.bf16.mxu0 0
  %2286 = vmatmul.mubr.bf16.gmra.mrb[0].mxu0 %v2174
  %v2287 = vpop.f32.mrb[0].mxu0
  %v2288 = vadd.f32 0.0, %v2287
  %v2289 = vpop.f32.mrb[0].mxu0
  %v2290 = vadd.f32 0.0, %v2289
  %v2291 = vpop.f32.mrb[0].mxu0
  %v2292 = vadd.f32 0.0, %v2291
  %v2293 = vpop.f32.mrb[0].mxu0
  %v2294 = vadd.f32 0.0, %v2293
  %2295 = vmatprep.mubr.bf16.mxu0 0
  %2296 = vmatmul.mubr.bf16.gmra.mrb[0].mxu0 %v2177
  %v2297 = vpop.f32.mrb[0].mxu0
  %v2298 = vadd.f32 0.0, %v2297
  %v2299 = vpop.f32.mrb[0].mxu0
  %v2300 = vadd.f32 0.0, %v2299
  %v2301 = vpop.f32.mrb[0].mxu0
  %v2302 = vadd.f32 0.0, %v2301
  %v2303 = vpop.f32.mrb[0].mxu0
  %v2304 = vadd.f32 0.0, %v2303
  %2305 = vmatprep.mubr.bf16.mxu0 0
  %2306 = vmatmul.mubr.bf16.gmra.mrb[0].mxu0 %v2180
  %v2307 = vpop.f32.mrb[0].mxu0
  %v2308 = vadd.f32 0.0, %v2307
  %v2309 = vpop.f32.mrb[0].mxu0
  %v2310 = vadd.f32 0.0, %v2309
  %v2311 = vpop.f32.mrb[0].mxu0
  %v2312 = vadd.f32 0.0, %v2311
  %v2313 = vpop.f32.mrb[0].mxu0
  %v2314 = vadd.f32 0.0, %v2313
  %2315 = vmatprep.mubr.bf16.mxu0 0
  %2316 = vmatmul.mubr.bf16.gmra.mrb[0].mxu0 %v2183
  %v2317 = vpop.f32.mrb[0].mxu0
  %v2318 = vadd.f32 0.0, %v2317
  %v2319 = vpop.f32.mrb[0].mxu0
  %v2320 = vadd.f32 0.0, %v2319
  %v2321 = vpop.f32.mrb[0].mxu0
  %v2322 = vadd.f32 0.0, %v2321
  %v2323 = vpop.f32.mrb[0].mxu0
  %v2324 = vadd.f32 0.0, %v2323
  %2325 = vmatprep.mubr.bf16.mxu0 0
  %2326 = vmatmul.mubr.bf16.gmra.mrb[0].mxu0 %v2186
  %v2327 = vpop.f32.mrb[0].mxu0
  %v2328 = vadd.f32 0.0, %v2327
  %v2329 = vpop.f32.mrb[0].mxu0
  %v2330 = vadd.f32 0.0, %v2329
  %v2331 = vpop.f32.mrb[0].mxu0
  %v2332 = vadd.f32 0.0, %v2331
  %v2333 = vpop.f32.mrb[0].mxu0
  %v2334 = vadd.f32 0.0, %v2333
  %2335 = vmatprep.mubr.bf16.mxu0 0
  %2336 = vmatmul.mubr.bf16.gmra.mrb[0].mxu0 %v2189
  %v2337 = vpop.f32.mrb[0].mxu0
  %v2338 = vadd.f32 0.0, %v2337
  %v2339 = vpop.f32.mrb[0].mxu0
  %v2340 = vadd.f32 0.0, %v2339
  %v2341 = vpop.f32.mrb[0].mxu0
  %v2342 = vadd.f32 0.0, %v2341
  %v2343 = vpop.f32.mrb[0].mxu0
  %v2344 = vadd.f32 0.0, %v2343
  %2345 = vmatprep.mubr.bf16.mxu0 0
  %2346 = vmatmul.mubr.bf16.gmra.mrb[0].mxu0 %v2192
  %v2347 = vpop.f32.mrb[0].mxu0
  %v2348 = vadd.f32 0.0, %v2347
  %v2349 = vpop.f32.mrb[0].mxu0
  %v2350 = vadd.f32 0.0, %v2349
  %v2351 = vpop.f32.mrb[0].mxu0
  %v2352 = vadd.f32 0.0, %v2351
  %v2353 = vpop.f32.mrb[0].mxu0
  %v2354 = vadd.f32 0.0, %v2353
  %2355 = vmatprep.mubr.bf16.mxu0 0
  %2356 = vmatmul.mubr.bf16.gmra.mrb[0].mxu0 %v2195
  %v2357 = vpop.f32.mrb[0].mxu0
  %v2358 = vadd.f32 0.0, %v2357
  %v2359 = vpop.f32.mrb[0].mxu0
  %v2360 = vadd.f32 0.0, %v2359
  %v2361 = vpop.f32.mrb[0].mxu0
  %v2362 = vadd.f32 0.0, %v2361
  %v2363 = vpop.f32.mrb[0].mxu0
  %v2364 = vadd.f32 0.0, %v2363
  %2365 = vmatprep.mubr.bf16.mxu0 0
  %2366 = vmatmul.mubr.bf16.gmra.mrb[0].mxu0 %v2198
  %v2367 = vpop.f32.mrb[0].mxu0
  %v2368 = vadd.f32 0.0, %v2367
  %v2369 = vpop.f32.mrb[0].mxu0
  %v2370 = vadd.f32 0.0, %v2369
  %v2371 = vpop.f32.mrb[0].mxu0
  %v2372 = vadd.f32 0.0, %v2371
  %v2373 = vpop.f32.mrb[0].mxu0
  %v2374 = vadd.f32 0.0, %v2373
  %2375 = vmatprep.mubr.bf16.mxu0 0
  %2376 = vmatmul.mubr.bf16.gmra.mrb[0].mxu0 %v2201
  %v2377 = vpop.f32.mrb[0].mxu0
  %v2378 = vadd.f32 0.0, %v2377
  %v2379 = vpop.f32.mrb[0].mxu0
  %v2380 = vadd.f32 0.0, %v2379
  %v2381 = vpop.f32.mrb[0].mxu0
  %v2382 = vadd.f32 0.0, %v2381
  %v2383 = vpop.f32.mrb[0].mxu0
  %v2384 = vadd.f32 0.0, %v2383
  %2385 = vmatprep.mubr.bf16.mxu0 0
  %2386 = vmatmul.mubr.bf16.gmra.mrb[0].mxu0 %v2204
  %v2387 = vpop.f32.mrb[0].mxu0
  %v2388 = vadd.f32 0.0, %v2387
  %v2389 = vpop.f32.mrb[0].mxu0
  %v2390 = vadd.f32 0.0, %v2389
  %v2391 = vpop.f32.mrb[0].mxu0
  %v2392 = vadd.f32 0.0, %v2391
  %v2393 = vpop.f32.mrb[0].mxu0
  %v2394 = vadd.f32 0.0, %v2393
  %2395 = vmatprep.mubr.bf16.mxu0 0
  %2396 = vmatmul.mubr.bf16.gmra.mrb[0].mxu0 %v2207
  %v2397 = vpop.f32.mrb[0].mxu0
  %v2398 = vadd.f32 0.0, %v2397
  %v2399 = vpop.f32.mrb[0].mxu0
  %v2400 = vadd.f32 0.0, %v2399
  %v2401 = vpop.f32.mrb[0].mxu0
  %v2402 = vadd.f32 0.0, %v2401
  %v2403 = vpop.f32.mrb[0].mxu0
  %v2404 = vadd.f32 0.0, %v2403
  %2405 = vmatprep.mubr.bf16.mxu0 0
  %2406 = vmatmul.mubr.bf16.gmra.mrb[0].mxu0 %v2210
  %v2407 = vpop.f32.mrb[0].mxu0
  %v2408 = vadd.f32 0.0, %v2407
  %v2409 = vpop.f32.mrb[0].mxu0
  %v2410 = vadd.f32 0.0, %v2409
  %v2411 = vpop.f32.mrb[0].mxu0
  %v2412 = vadd.f32 0.0, %v2411
  %v2413 = vpop.f32.mrb[0].mxu0
  %v2414 = vadd.f32 0.0, %v2413
  %2415 = vmatprep.mubr.bf16.mxu0 0
  %2416 = vmatmul.mubr.bf16.gmra.mrb[0].mxu0 %v2213
  %v2417 = vpop.f32.mrb[0].mxu0
  %v2418 = vadd.f32 0.0, %v2417
  %v2419 = vpop.f32.mrb[0].mxu0
  %v2420 = vadd.f32 0.0, %v2419
  %v2421 = vpop.f32.mrb[0].mxu0
  %v2422 = vadd.f32 0.0, %v2421
  %v2423 = vpop.f32.mrb[0].mxu0
  %v2424 = vadd.f32 0.0, %v2423
  %2425 = vmatprep.mubr.bf16.mxu0 0
  %2426 = vmatmul.mubr.bf16.gmra.mrb[0].mxu0 %v2216
  %v2427 = vpop.f32.mrb[0].mxu0
  %v2428 = vadd.f32 0.0, %v2427
  %v2429 = vpop.f32.mrb[0].mxu0
  %v2430 = vadd.f32 0.0, %v2429
  %v2431 = vpop.f32.mrb[0].mxu0
  %v2432 = vadd.f32 0.0, %v2431
  %v2433 = vpop.f32.mrb[0].mxu0
  %v2434 = vadd.f32 0.0, %v2433
  %2435 = vmatprep.mubr.bf16.mxu0 0
  %2436 = vmatmul.mubr.bf16.gmra.mrb[0].mxu0 %v2219
  %v2437 = vpop.f32.mrb[0].mxu0
  %v2438 = vadd.f32 0.0, %v2437
  %v2439 = vpop.f32.mrb[0].mxu0
  %v2440 = vadd.f32 0.0, %v2439
  %v2441 = vpop.f32.mrb[0].mxu0
  %v2442 = vadd.f32 0.0, %v2441
  %v2443 = vpop.f32.mrb[0].mxu0
  %v2444 = vadd.f32 0.0, %v2443
  %2445 = vdwg.mxu0
  %2446 = vmatprep.subr.bf16.mxu0 %v2134
  %2447 = vmatpush1.bf16.msra.mxu0 %v2133
  %2448 = vmatprep.subr.bf16.mxu0 %v2138
  %2449 = vmatpush1.bf16.msra.mxu0 %v2137
  %2450 = vmatprep.subr.bf16.mxu0 %v2142
  %2451 = vmatpush1.bf16.msra.mxu0 %v2141
  %2452 = vmatprep.subr.bf16.mxu0 %v2146
  %2453 = vmatpush1.bf16.msra.mxu0 %v2145
  %2454 = vmatprep.subr.bf16.mxu0 %v2231
  %2455 = vmatpush1.bf16.msra.mxu0 %v2228
  %2456 = vmatprep.subr.bf16.mxu0 0
  %2457 = vmatpush1.bf16.msra.mxu0 0
  %2458 = vmatprep.subr.bf16.mxu0 0
  %2459 = vmatpush1.bf16.msra.mxu0 0
  %2460 = vmatprep.subr.bf16.mxu0 0
  %2461 = vmatpush1.bf16.msra.mxu0 0
  %2462 = vmatprep.subr.bf16.mxu0 0
  %2463 = vmatpush1.bf16.msra.mxu0 0
  %2464 = vmatprep.subr.bf16.mxu0 0
  %2465 = vmatpush1.bf16.msra.mxu0 0
  %2466 = vmatprep.subr.bf16.mxu0 0
  %2467 = vmatpush1.bf16.msra.mxu0 0
  %2468 = vmatprep.subr.bf16.mxu0 0
  %2469 = vmatpush1.bf16.msra.mxu0 0
  %2470 = vmatprep.subr.bf16.mxu0 0
  %2471 = vmatpush1.bf16.msra.mxu0 0
  %2472 = vmatprep.subr.bf16.mxu0 0
  %2473 = vmatpush1.bf16.msra.mxu0 0
  %2474 = vmatprep.subr.bf16.mxu0 0
  %2475 = vmatpush1.bf16.msra.mxu0 0
  %2476 = vmatprep.subr.bf16.mxu0 0
  %2477 = vmatpush1.bf16.msra.mxu0 0
  %2478 = vmatprep.mubr.bf16.mxu0 0
  %2479 = vmatmul.mubr.bf16.gmra.mrb[0].mxu0 %v2168
  %v2480 = vpop.f32.mrb[0].mxu0
  %v2481 = vadd.f32 0.0, %v2480
  %v2482 = vpop.f32.mrb[0].mxu0
  %v2483 = vadd.f32 0.0, %v2482
  %v2484 = vpop.f32.mrb[0].mxu0
  %v2485 = vadd.f32 0.0, %v2484
  %v2486 = vpop.f32.mrb[0].mxu0
  %v2487 = vadd.f32 0.0, %v2486
  %2488 = vmatprep.mubr.bf16.mxu0 0
  %2489 = vmatmul.mubr.bf16.gmra.mrb[0].mxu0 %v2171
  %v2490 = vpop.f32.mrb[0].mxu0
  %v2491 = vadd.f32 0.0, %v2490
  %v2492 = vpop.f32.mrb[0].mxu0
  %v2493 = vadd.f32 0.0, %v2492
  %v2494 = vpop.f32.mrb[0].mxu0
  %v2495 = vadd.f32 0.0, %v2494
  %v2496 = vpop.f32.mrb[0].mxu0
  %v2497 = vadd.f32 0.0, %v2496
  %2498 = vmatprep.mubr.bf16.mxu0 0
  %2499 = vmatmul.mubr.bf16.gmra.mrb[0].mxu0 %v2174
  %v2500 = vpop.f32.mrb[0].mxu0
  %v2501 = vadd.f32 0.0, %v2500
  %v2502 = vpop.f32.mrb[0].mxu0
  %v2503 = vadd.f32 0.0, %v2502
  %v2504 = vpop.f32.mrb[0].mxu0
  %v2505 = vadd.f32 0.0, %v2504
  %v2506 = vpop.f32.mrb[0].mxu0
  %v2507 = vadd.f32 0.0, %v2506
  %2508 = vmatprep.mubr.bf16.mxu0 0
  %2509 = vmatmul.mubr.bf16.gmra.mrb[0].mxu0 %v2177
  %v2510 = vpop.f32.mrb[0].mxu0
  %v2511 = vadd.f32 0.0, %v2510
  %v2512 = vpop.f32.mrb[0].mxu0
  %v2513 = vadd.f32 0.0, %v2512
  %v2514 = vpop.f32.mrb[0].mxu0
  %v2515 = vadd.f32 0.0, %v2514
  %v2516 = vpop.f32.mrb[0].mxu0
  %v2517 = vadd.f32 0.0, %v2516
  %2518 = vmatprep.mubr.bf16.mxu0 0
  %2519 = vmatmul.mubr.bf16.gmra.mrb[0].mxu0 %v2180
  %v2520 = vpop.f32.mrb[0].mxu0
  %v2521 = vadd.f32 0.0, %v2520
  %v2522 = vpop.f32.mrb[0].mxu0
  %v2523 = vadd.f32 0.0, %v2522
  %v2524 = vpop.f32.mrb[0].mxu0
  %v2525 = vadd.f32 0.0, %v2524
  %v2526 = vpop.f32.mrb[0].mxu0
  %v2527 = vadd.f32 0.0, %v2526
  %2528 = vmatprep.mubr.bf16.mxu0 0
  %2529 = vmatmul.mubr.bf16.gmra.mrb[0].mxu0 %v2183
  %v2530 = vpop.f32.mrb[0].mxu0
  %v2531 = vadd.f32 0.0, %v2530
  %v2532 = vpop.f32.mrb[0].mxu0
  %v2533 = vadd.f32 0.0, %v2532
  %v2534 = vpop.f32.mrb[0].mxu0
  %v2535 = vadd.f32 0.0, %v2534
  %v2536 = vpop.f32.mrb[0].mxu0
  %v2537 = vadd.f32 0.0, %v2536
  %2538 = vmatprep.mubr.bf16.mxu0 0
  %2539 = vmatmul.mubr.bf16.gmra.mrb[0].mxu0 %v2186
  %v2540 = vpop.f32.mrb[0].mxu0
  %v2541 = vadd.f32 0.0, %v2540
  %v2542 = vpop.f32.mrb[0].mxu0
  %v2543 = vadd.f32 0.0, %v2542
  %v2544 = vpop.f32.mrb[0].mxu0
  %v2545 = vadd.f32 0.0, %v2544
  %v2546 = vpop.f32.mrb[0].mxu0
  %v2547 = vadd.f32 0.0, %v2546
  %2548 = vmatprep.mubr.bf16.mxu0 0
  %2549 = vmatmul.mubr.bf16.gmra.mrb[0].mxu0 %v2189
  %v2550 = vpop.f32.mrb[0].mxu0
  %v2551 = vadd.f32 0.0, %v2550
  %v2552 = vpop.f32.mrb[0].mxu0
  %v2553 = vadd.f32 0.0, %v2552
  %v2554 = vpop.f32.mrb[0].mxu0
  %v2555 = vadd.f32 0.0, %v2554
  %v2556 = vpop.f32.mrb[0].mxu0
  %v2557 = vadd.f32 0.0, %v2556
  %2558 = vmatprep.mubr.bf16.mxu0 0
  %2559 = vmatmul.mubr.bf16.gmra.mrb[0].mxu0 %v2192
  %v2560 = vpop.f32.mrb[0].mxu0
  %v2561 = vadd.f32 0.0, %v2560
  %v2562 = vpop.f32.mrb[0].mxu0
  %v2563 = vadd.f32 0.0, %v2562
  %v2564 = vpop.f32.mrb[0].mxu0
  %v2565 = vadd.f32 0.0, %v2564
  %v2566 = vpop.f32.mrb[0].mxu0
  %v2567 = vadd.f32 0.0, %v2566
  %2568 = vmatprep.mubr.bf16.mxu0 0
  %2569 = vmatmul.mubr.bf16.gmra.mrb[0].mxu0 %v2195
  %v2570 = vpop.f32.mrb[0].mxu0
  %v2571 = vadd.f32 0.0, %v2570
  %v2572 = vpop.f32.mrb[0].mxu0
  %v2573 = vadd.f32 0.0, %v2572
  %v2574 = vpop.f32.mrb[0].mxu0
  %v2575 = vadd.f32 0.0, %v2574
  %v2576 = vpop.f32.mrb[0].mxu0
  %v2577 = vadd.f32 0.0, %v2576
  %2578 = vmatprep.mubr.bf16.mxu0 0
  %2579 = vmatmul.mubr.bf16.gmra.mrb[0].mxu0 %v2198
  %v2580 = vpop.f32.mrb[0].mxu0
  %v2581 = vadd.f32 0.0, %v2580
  %v2582 = vpop.f32.mrb[0].mxu0
  %v2583 = vadd.f32 0.0, %v2582
  %v2584 = vpop.f32.mrb[0].mxu0
  %v2585 = vadd.f32 0.0, %v2584
  %v2586 = vpop.f32.mrb[0].mxu0
  %v2587 = vadd.f32 0.0, %v2586
  %2588 = vmatprep.mubr.bf16.mxu0 0
  %2589 = vmatmul.mubr.bf16.gmra.mrb[0].mxu0 %v2201
  %v2590 = vpop.f32.mrb[0].mxu0
  %v2591 = vadd.f32 0.0, %v2590
  %v2592 = vpop.f32.mrb[0].mxu0
  %v2593 = vadd.f32 0.0, %v2592
  %v2594 = vpop.f32.mrb[0].mxu0
  %v2595 = vadd.f32 0.0, %v2594
  %v2596 = vpop.f32.mrb[0].mxu0
  %v2597 = vadd.f32 0.0, %v2596
  %2598 = vmatprep.mubr.bf16.mxu0 0
  %2599 = vmatmul.mubr.bf16.gmra.mrb[0].mxu0 %v2204
  %v2600 = vpop.f32.mrb[0].mxu0
  %v2601 = vadd.f32 0.0, %v2600
  %v2602 = vpop.f32.mrb[0].mxu0
  %v2603 = vadd.f32 0.0, %v2602
  %v2604 = vpop.f32.mrb[0].mxu0
  %v2605 = vadd.f32 0.0, %v2604
  %v2606 = vpop.f32.mrb[0].mxu0
  %v2607 = vadd.f32 0.0, %v2606
  %2608 = vmatprep.mubr.bf16.mxu0 0
  %2609 = vmatmul.mubr.bf16.gmra.mrb[0].mxu0 %v2207
  %v2610 = vpop.f32.mrb[0].mxu0
  %v2611 = vadd.f32 0.0, %v2610
  %v2612 = vpop.f32.mrb[0].mxu0
  %v2613 = vadd.f32 0.0, %v2612
  %v2614 = vpop.f32.mrb[0].mxu0
  %v2615 = vadd.f32 0.0, %v2614
  %v2616 = vpop.f32.mrb[0].mxu0
  %v2617 = vadd.f32 0.0, %v2616
  %2618 = vmatprep.mubr.bf16.mxu0 0
  %2619 = vmatmul.mubr.bf16.gmra.mrb[0].mxu0 %v2210
  %v2620 = vpop.f32.mrb[0].mxu0
  %v2621 = vadd.f32 0.0, %v2620
  %v2622 = vpop.f32.mrb[0].mxu0
  %v2623 = vadd.f32 0.0, %v2622
  %v2624 = vpop.f32.mrb[0].mxu0
  %v2625 = vadd.f32 0.0, %v2624
  %v2626 = vpop.f32.mrb[0].mxu0
  %v2627 = vadd.f32 0.0, %v2626
  %2628 = vmatprep.mubr.bf16.mxu0 0
  %2629 = vmatmul.mubr.bf16.gmra.mrb[0].mxu0 %v2213
  %v2630 = vpop.f32.mrb[0].mxu0
  %v2631 = vadd.f32 0.0, %v2630
  %v2632 = vpop.f32.mrb[0].mxu0
  %v2633 = vadd.f32 0.0, %v2632
  %v2634 = vpop.f32.mrb[0].mxu0
  %v2635 = vadd.f32 0.0, %v2634
  %v2636 = vpop.f32.mrb[0].mxu0
  %v2637 = vadd.f32 0.0, %v2636
  %2638 = vmatprep.mubr.bf16.mxu0 0
  %2639 = vmatmul.mubr.bf16.gmra.mrb[0].mxu0 %v2216
  %v2640 = vpop.f32.mrb[0].mxu0
  %v2641 = vadd.f32 0.0, %v2640
  %v2642 = vpop.f32.mrb[0].mxu0
  %v2643 = vadd.f32 0.0, %v2642
  %v2644 = vpop.f32.mrb[0].mxu0
  %v2645 = vadd.f32 0.0, %v2644
  %v2646 = vpop.f32.mrb[0].mxu0
  %v2647 = vadd.f32 0.0, %v2646
  %2648 = vmatprep.mubr.bf16.mxu0 0
  %2649 = vmatmul.mubr.bf16.gmra.mrb[0].mxu0 %v2219
  %v2650 = vpop.f32.mrb[0].mxu0
  %v2651 = vadd.f32 0.0, %v2650
  %v2652 = vpop.f32.mrb[0].mxu0
  %v2653 = vadd.f32 0.0, %v2652
  %v2654 = vpop.f32.mrb[0].mxu0
  %v2655 = vadd.f32 0.0, %v2654
  %v2656 = vpop.f32.mrb[0].mxu0
  %v2657 = vadd.f32 0.0, %v2656
  %2658 = vdwg.mxu0
  %v2659 = vadd.f32 %v1466, %v2268
  %v2660 = vadd.f32 %v1468, %v2270
  %v2661 = vadd.f32 %v1679, %v2481
  %v2662 = vadd.f32 %v1681, %v2483
  %v2663 = vadd.f32 %v1470, %v2272
  %v2664 = vadd.f32 %v1472, %v2274
  %v2665 = vadd.f32 %v1683, %v2485
  %v2666 = vadd.f32 %v1685, %v2487
  %v2667 = vadd.f32 %v1476, %v2278
  %v2668 = vadd.f32 %v1478, %v2280
  %v2669 = vadd.f32 %v1689, %v2491
  %v2670 = vadd.f32 %v1691, %v2493
  %v2671 = vadd.f32 %v1480, %v2282
  %v2672 = vadd.f32 %v1482, %v2284
  %v2673 = vadd.f32 %v1693, %v2495
  %v2674 = vadd.f32 %v1695, %v2497
  %v2675 = vadd.f32 %v1486, %v2288
  %v2676 = vadd.f32 %v1488, %v2290
  %v2677 = vadd.f32 %v1699, %v2501
  %v2678 = vadd.f32 %v1701, %v2503
  %v2679 = vadd.f32 %v1490, %v2292
  %v2680 = vadd.f32 %v1492, %v2294
  %v2681 = vadd.f32 %v1703, %v2505
  %v2682 = vadd.f32 %v1705, %v2507
  %v2683 = vadd.f32 %v1496, %v2298
  %v2684 = vadd.f32 %v1498, %v2300
  %v2685 = vadd.f32 %v1709, %v2511
  %v2686 = vadd.f32 %v1711, %v2513
  %v2687 = vadd.f32 %v1500, %v2302
  %v2688 = vadd.f32 %v1502, %v2304
  %v2689 = vadd.f32 %v1713, %v2515
  %v2690 = vadd.f32 %v1715, %v2517
  %v2691 = vadd.f32 %v1506, %v2308
  %v2692 = vadd.f32 %v1508, %v2310
  %v2693 = vadd.f32 %v1719, %v2521
  %v2694 = vadd.f32 %v1721, %v2523
  %v2695 = vadd.f32 %v1510, %v2312
  %v2696 = vadd.f32 %v1512, %v2314
  %v2697 = vadd.f32 %v1723, %v2525
  %v2698 = vadd.f32 %v1725, %v2527
  %v2699 = vadd.f32 %v1516, %v2318
  %v2700 = vadd.f32 %v1518, %v2320
  %v2701 = vadd.f32 %v1729, %v2531
  %v2702 = vadd.f32 %v1731, %v2533
  %v2703 = vadd.f32 %v1520, %v2322
  %v2704 = vadd.f32 %v1522, %v2324
  %v2705 = vadd.f32 %v1733, %v2535
  %v2706 = vadd.f32 %v1735, %v2537
  %v2707 = vadd.f32 %v1526, %v2328
  %v2708 = vadd.f32 %v1528, %v2330
  %v2709 = vadd.f32 %v1739, %v2541
  %v2710 = vadd.f32 %v1741, %v2543
  %v2711 = vadd.f32 %v1530, %v2332
  %v2712 = vadd.f32 %v1532, %v2334
  %v2713 = vadd.f32 %v1743, %v2545
  %v2714 = vadd.f32 %v1745, %v2547
  %v2715 = vadd.f32 %v1536, %v2338
  %v2716 = vadd.f32 %v1538, %v2340
  %v2717 = vadd.f32 %v1749, %v2551
  %v2718 = vadd.f32 %v1751, %v2553
  %v2719 = vadd.f32 %v1540, %v2342
  %v2720 = vadd.f32 %v1542, %v2344
  %v2721 = vadd.f32 %v1753, %v2555
  %v2722 = vadd.f32 %v1755, %v2557
  %v2723 = vadd.f32 %v1546, %v2348
  %v2724 = vadd.f32 %v1548, %v2350
  %v2725 = vadd.f32 %v1759, %v2561
  %v2726 = vadd.f32 %v1761, %v2563
  %v2727 = vadd.f32 %v1550, %v2352
  %v2728 = vadd.f32 %v1552, %v2354
  %v2729 = vadd.f32 %v1763, %v2565
  %v2730 = vadd.f32 %v1765, %v2567
  %v2731 = vadd.f32 %v1556, %v2358
  %v2732 = vadd.f32 %v1558, %v2360
  %v2733 = vadd.f32 %v1769, %v2571
  %v2734 = vadd.f32 %v1771, %v2573
  %v2735 = vadd.f32 %v1560, %v2362
  %v2736 = vadd.f32 %v1562, %v2364
  %v2737 = vadd.f32 %v1773, %v2575
  %v2738 = vadd.f32 %v1775, %v2577
  %v2739 = vadd.f32 %v1566, %v2368
  %v2740 = vadd.f32 %v1568, %v2370
  %v2741 = vadd.f32 %v1779, %v2581
  %v2742 = vadd.f32 %v1781, %v2583
  %v2743 = vadd.f32 %v1570, %v2372
  %v2744 = vadd.f32 %v1572, %v2374
  %v2745 = vadd.f32 %v1783, %v2585
  %v2746 = vadd.f32 %v1785, %v2587
  %v2747 = vadd.f32 %v1576, %v2378
  %v2748 = vadd.f32 %v1578, %v2380
  %v2749 = vadd.f32 %v1789, %v2591
  %v2750 = vadd.f32 %v1791, %v2593
  %v2751 = vadd.f32 %v1580, %v2382
  %v2752 = vadd.f32 %v1582, %v2384
  %v2753 = vadd.f32 %v1793, %v2595
  %v2754 = vadd.f32 %v1795, %v2597
  %v2755 = vadd.f32 %v1586, %v2388
  %v2756 = vadd.f32 %v1588, %v2390
  %v2757 = vadd.f32 %v1799, %v2601
  %v2758 = vadd.f32 %v1801, %v2603
  %v2759 = vadd.f32 %v1590, %v2392
  %v2760 = vadd.f32 %v1592, %v2394
  %v2761 = vadd.f32 %v1803, %v2605
  %v2762 = vadd.f32 %v1805, %v2607
  %v2763 = vadd.f32 %v1596, %v2398
  %v2764 = vadd.f32 %v1598, %v2400
  %v2765 = vadd.f32 %v1809, %v2611
  %v2766 = vadd.f32 %v1811, %v2613
  %v2767 = vadd.f32 %v1600, %v2402
  %v2768 = vadd.f32 %v1602, %v2404
  %v2769 = vadd.f32 %v1813, %v2615
  %v2770 = vadd.f32 %v1815, %v2617
  %v2771 = vadd.f32 %v1606, %v2408
  %v2772 = vadd.f32 %v1608, %v2410
  %v2773 = vadd.f32 %v1819, %v2621
  %v2774 = vadd.f32 %v1821, %v2623
  %v2775 = vadd.f32 %v1610, %v2412
  %v2776 = vadd.f32 %v1612, %v2414
  %v2777 = vadd.f32 %v1823, %v2625
  %v2778 = vadd.f32 %v1825, %v2627
  %v2779 = vadd.f32 %v1616, %v2418
  %v2780 = vadd.f32 %v1618, %v2420
  %v2781 = vadd.f32 %v1829, %v2631
  %v2782 = vadd.f32 %v1831, %v2633
  %v2783 = vadd.f32 %v1620, %v2422
  %v2784 = vadd.f32 %v1622, %v2424
  %v2785 = vadd.f32 %v1833, %v2635
  %v2786 = vadd.f32 %v1835, %v2637
  %v2787 = vadd.f32 %v1626, %v2428
  %v2788 = vadd.f32 %v1628, %v2430
  %v2789 = vadd.f32 %v1839, %v2641
  %v2790 = vadd.f32 %v1841, %v2643
  %v2791 = vadd.f32 %v1630, %v2432
  %v2792 = vadd.f32 %v1632, %v2434
  %v2793 = vadd.f32 %v1843, %v2645
  %v2794 = vadd.f32 %v1845, %v2647
  %v2795 = vadd.f32 %v1636, %v2438
  %v2796 = vadd.f32 %v1638, %v2440
  %v2797 = vadd.f32 %v1849, %v2651
  %v2798 = vadd.f32 %v1851, %v2653
  %v2799 = vadd.f32 %v1640, %v2442
  %v2800 = vadd.f32 %v1642, %v2444
  %v2801 = vadd.f32 %v1853, %v2655
  %v2802 = vadd.f32 %v1855, %v2657
  %v2803 = vld [vmem:[%s2] sm:$0xf]
  %v2805 = vlaneseq
  %v2806 = vshrl.u32 %v2805, 7
  %v2807 = vsub.s32 0, %v2806
  %v2808 = vrot.slane %v2803, %v2807
  %v2809 = vlaneseq
  %v2810 = vshrl.u32 %v2809, 7
  %v2811 = vsub.s32 1, %v2810
  %v2812 = vrot.slane %v2803, %v2811
  %v2813 = vlaneseq
  %v2814 = vshrl.u32 %v2813, 7
  %v2815 = vsub.s32 2, %v2814
  %v2816 = vrot.slane %v2803, %v2815
  %v2817 = vlaneseq
  %v2818 = vshrl.u32 %v2817, 7
  %v2819 = vsub.s32 3, %v2818
  %v2820 = vrot.slane %v2803, %v2819
  %v2825 = vadd.f32 %v2659, %v2808
  %v2826 = vadd.f32 %v2660, %v2812
  %v2827 = vadd.f32 %v2661, %v2816
  %v2828 = vadd.f32 %v2662, %v2820
  %v2829 = vadd.f32 %v2663, %v2808
  %v2830 = vadd.f32 %v2664, %v2812
  %v2831 = vadd.f32 %v2665, %v2816
  %v2832 = vadd.f32 %v2666, %v2820
  %v2833 = vadd.f32 %v2667, %v2808
  %v2834 = vadd.f32 %v2668, %v2812
  %v2835 = vadd.f32 %v2669, %v2816
  %v2836 = vadd.f32 %v2670, %v2820
  %v2837 = vadd.f32 %v2671, %v2808
  %v2838 = vadd.f32 %v2672, %v2812
  %v2839 = vadd.f32 %v2673, %v2816
  %v2840 = vadd.f32 %v2674, %v2820
  %v2841 = vadd.f32 %v2675, %v2808
  %v2842 = vadd.f32 %v2676, %v2812
  %v2843 = vadd.f32 %v2677, %v2816
  %v2844 = vadd.f32 %v2678, %v2820
  %v2845 = vadd.f32 %v2679, %v2808
  %v2846 = vadd.f32 %v2680, %v2812
  %v2847 = vadd.f32 %v2681, %v2816
  %v2848 = vadd.f32 %v2682, %v2820
  %v2849 = vadd.f32 %v2683, %v2808
  %v2850 = vadd.f32 %v2684, %v2812
  %v2851 = vadd.f32 %v2685, %v2816
  %v2852 = vadd.f32 %v2686, %v2820
  %v2853 = vadd.f32 %v2687, %v2808
  %v2854 = vadd.f32 %v2688, %v2812
  %v2855 = vadd.f32 %v2689, %v2816
  %v2856 = vadd.f32 %v2690, %v2820
  %v2857 = vadd.f32 %v2691, %v2808
  %v2858 = vadd.f32 %v2692, %v2812
  %v2859 = vadd.f32 %v2693, %v2816
  %v2860 = vadd.f32 %v2694, %v2820
  %v2861 = vadd.f32 %v2695, %v2808
  %v2862 = vadd.f32 %v2696, %v2812
  %v2863 = vadd.f32 %v2697, %v2816
  %v2864 = vadd.f32 %v2698, %v2820
  %v2865 = vadd.f32 %v2699, %v2808
  %v2866 = vadd.f32 %v2700, %v2812
  %v2867 = vadd.f32 %v2701, %v2816
  %v2868 = vadd.f32 %v2702, %v2820
  %v2869 = vadd.f32 %v2703, %v2808
  %v2870 = vadd.f32 %v2704, %v2812
  %v2871 = vadd.f32 %v2705, %v2816
  %v2872 = vadd.f32 %v2706, %v2820
  %v2873 = vadd.f32 %v2707, %v2808
  %v2874 = vadd.f32 %v2708, %v2812
  %v2875 = vadd.f32 %v2709, %v2816
  %v2876 = vadd.f32 %v2710, %v2820
  %v2877 = vadd.f32 %v2711, %v2808
  %v2878 = vadd.f32 %v2712, %v2812
  %v2879 = vadd.f32 %v2713, %v2816
  %v2880 = vadd.f32 %v2714, %v2820
  %v2881 = vadd.f32 %v2715, %v2808
  %v2882 = vadd.f32 %v2716, %v2812
  %v2883 = vadd.f32 %v2717, %v2816
  %v2884 = vadd.f32 %v2718, %v2820
  %v2885 = vadd.f32 %v2719, %v2808
  %v2886 = vadd.f32 %v2720, %v2812
  %v2887 = vadd.f32 %v2721, %v2816
  %v2888 = vadd.f32 %v2722, %v2820
  %v2889 = vadd.f32 %v2723, %v2808
  %v2890 = vadd.f32 %v2724, %v2812
  %v2891 = vadd.f32 %v2725, %v2816
  %v2892 = vadd.f32 %v2726, %v2820
  %v2893 = vadd.f32 %v2727, %v2808
  %v2894 = vadd.f32 %v2728, %v2812
  %v2895 = vadd.f32 %v2729, %v2816
  %v2896 = vadd.f32 %v2730, %v2820
  %v2897 = vadd.f32 %v2731, %v2808
  %v2898 = vadd.f32 %v2732, %v2812
  %v2899 = vadd.f32 %v2733, %v2816
  %v2900 = vadd.f32 %v2734, %v2820
  %v2901 = vadd.f32 %v2735, %v2808
  %v2902 = vadd.f32 %v2736, %v2812
  %v2903 = vadd.f32 %v2737, %v2816
  %v2904 = vadd.f32 %v2738, %v2820
  %v2905 = vadd.f32 %v2739, %v2808
  %v2906 = vadd.f32 %v2740, %v2812
  %v2907 = vadd.f32 %v2741, %v2816
  %v2908 = vadd.f32 %v2742, %v2820
  %v2909 = vadd.f32 %v2743, %v2808
  %v2910 = vadd.f32 %v2744, %v2812
  %v2911 = vadd.f32 %v2745, %v2816
  %v2912 = vadd.f32 %v2746, %v2820
  %v2913 = vadd.f32 %v2747, %v2808
  %v2914 = vadd.f32 %v2748, %v2812
  %v2915 = vadd.f32 %v2749, %v2816
  %v2916 = vadd.f32 %v2750, %v2820
  %v2917 = vadd.f32 %v2751, %v2808
  %v2918 = vadd.f32 %v2752, %v2812
  %v2919 = vadd.f32 %v2753, %v2816
  %v2920 = vadd.f32 %v2754, %v2820
  %v2921 = vadd.f32 %v2755, %v2808
  %v2922 = vadd.f32 %v2756, %v2812
  %v2923 = vadd.f32 %v2757, %v2816
  %v2924 = vadd.f32 %v2758, %v2820
  %v2925 = vadd.f32 %v2759, %v2808
  %v2926 = vadd.f32 %v2760, %v2812
  %v2927 = vadd.f32 %v2761, %v2816
  %v2928 = vadd.f32 %v2762, %v2820
  %v2929 = vadd.f32 %v2763, %v2808
  %v2930 = vadd.f32 %v2764, %v2812
  %v2931 = vadd.f32 %v2765, %v2816
  %v2932 = vadd.f32 %v2766, %v2820
  %v2933 = vadd.f32 %v2767, %v2808
  %v2934 = vadd.f32 %v2768, %v2812
  %v2935 = vadd.f32 %v2769, %v2816
  %v2936 = vadd.f32 %v2770, %v2820
  %v2937 = vadd.f32 %v2771, %v2808
  %v2938 = vadd.f32 %v2772, %v2812
  %v2939 = vadd.f32 %v2773, %v2816
  %v2940 = vadd.f32 %v2774, %v2820
  %v2941 = vadd.f32 %v2775, %v2808
  %v2942 = vadd.f32 %v2776, %v2812
  %v2943 = vadd.f32 %v2777, %v2816
  %v2944 = vadd.f32 %v2778, %v2820
  %v2945 = vadd.f32 %v2779, %v2808
  %v2946 = vadd.f32 %v2780, %v2812
  %v2947 = vadd.f32 %v2781, %v2816
  %v2948 = vadd.f32 %v2782, %v2820
  %v2949 = vadd.f32 %v2783, %v2808
  %v2950 = vadd.f32 %v2784, %v2812
  %v2951 = vadd.f32 %v2785, %v2816
  %v2952 = vadd.f32 %v2786, %v2820
  %v2953 = vadd.f32 %v2787, %v2808
  %v2954 = vadd.f32 %v2788, %v2812
  %v2955 = vadd.f32 %v2789, %v2816
  %v2956 = vadd.f32 %v2790, %v2820
  %v2957 = vadd.f32 %v2791, %v2808
  %v2958 = vadd.f32 %v2792, %v2812
  %v2959 = vadd.f32 %v2793, %v2816
  %v2960 = vadd.f32 %v2794, %v2820
  %v2961 = vadd.f32 %v2795, %v2808
  %v2962 = vadd.f32 %v2796, %v2812
  %v2963 = vadd.f32 %v2797, %v2816
  %v2964 = vadd.f32 %v2798, %v2820
  %v2965 = vadd.f32 %v2799, %v2808
  %v2966 = vadd.f32 %v2800, %v2812
  %v2967 = vadd.f32 %v2801, %v2816
  %v2968 = vadd.f32 %v2802, %v2820
  %v2969 = vmax.f32 %v2825, 0.0
  %v2970 = vmax.f32 %v2826, 0.0
  %v2971 = vmax.f32 %v2827, 0.0
  %v2972 = vmax.f32 %v2828, 0.0
  %v2973 = vmax.f32 %v2829, 0.0
  %v2974 = vmax.f32 %v2830, 0.0
  %v2975 = vmax.f32 %v2831, 0.0
  %v2976 = vmax.f32 %v2832, 0.0
  %v2977 = vmax.f32 %v2833, 0.0
  %v2978 = vmax.f32 %v2834, 0.0
  %v2979 = vmax.f32 %v2835, 0.0
  %v2980 = vmax.f32 %v2836, 0.0
  %v2981 = vmax.f32 %v2837, 0.0
  %v2982 = vmax.f32 %v2838, 0.0
  %v2983 = vmax.f32 %v2839, 0.0
  %v2984 = vmax.f32 %v2840, 0.0
  %v2985 = vmax.f32 %v2841, 0.0
  %v2986 = vmax.f32 %v2842, 0.0
  %v2987 = vmax.f32 %v2843, 0.0
  %v2988 = vmax.f32 %v2844, 0.0
  %v2989 = vmax.f32 %v2845, 0.0
  %v2990 = vmax.f32 %v2846, 0.0
  %v2991 = vmax.f32 %v2847, 0.0
  %v2992 = vmax.f32 %v2848, 0.0
  %v2993 = vmax.f32 %v2849, 0.0
  %v2994 = vmax.f32 %v2850, 0.0
  %v2995 = vmax.f32 %v2851, 0.0
  %v2996 = vmax.f32 %v2852, 0.0
  %v2997 = vmax.f32 %v2853, 0.0
  %v2998 = vmax.f32 %v2854, 0.0
  %v2999 = vmax.f32 %v2855, 0.0
  %v3000 = vmax.f32 %v2856, 0.0
  %v3001 = vmax.f32 %v2857, 0.0
  %v3002 = vmax.f32 %v2858, 0.0
  %v3003 = vmax.f32 %v2859, 0.0
  %v3004 = vmax.f32 %v2860, 0.0
  %v3005 = vmax.f32 %v2861, 0.0
  %v3006 = vmax.f32 %v2862, 0.0
  %v3007 = vmax.f32 %v2863, 0.0
  %v3008 = vmax.f32 %v2864, 0.0
  %v3009 = vmax.f32 %v2865, 0.0
  %v3010 = vmax.f32 %v2866, 0.0
  %v3011 = vmax.f32 %v2867, 0.0
  %v3012 = vmax.f32 %v2868, 0.0
  %v3013 = vmax.f32 %v2869, 0.0
  %v3014 = vmax.f32 %v2870, 0.0
  %v3015 = vmax.f32 %v2871, 0.0
  %v3016 = vmax.f32 %v2872, 0.0
  %v3017 = vmax.f32 %v2873, 0.0
  %v3018 = vmax.f32 %v2874, 0.0
  %v3019 = vmax.f32 %v2875, 0.0
  %v3020 = vmax.f32 %v2876, 0.0
  %v3021 = vmax.f32 %v2877, 0.0
  %v3022 = vmax.f32 %v2878, 0.0
  %v3023 = vmax.f32 %v2879, 0.0
  %v3024 = vmax.f32 %v2880, 0.0
  %v3025 = vmax.f32 %v2881, 0.0
  %v3026 = vmax.f32 %v2882, 0.0
  %v3027 = vmax.f32 %v2883, 0.0
  %v3028 = vmax.f32 %v2884, 0.0
  %v3029 = vmax.f32 %v2885, 0.0
  %v3030 = vmax.f32 %v2886, 0.0
  %v3031 = vmax.f32 %v2887, 0.0
  %v3032 = vmax.f32 %v2888, 0.0
  %v3033 = vmax.f32 %v2889, 0.0
  %v3034 = vmax.f32 %v2890, 0.0
  %v3035 = vmax.f32 %v2891, 0.0
  %v3036 = vmax.f32 %v2892, 0.0
  %v3037 = vmax.f32 %v2893, 0.0
  %v3038 = vmax.f32 %v2894, 0.0
  %v3039 = vmax.f32 %v2895, 0.0
  %v3040 = vmax.f32 %v2896, 0.0
  %v3041 = vmax.f32 %v2897, 0.0
  %v3042 = vmax.f32 %v2898, 0.0
  %v3043 = vmax.f32 %v2899, 0.0
  %v3044 = vmax.f32 %v2900, 0.0
  %v3045 = vmax.f32 %v2901, 0.0
  %v3046 = vmax.f32 %v2902, 0.0
  %v3047 = vmax.f32 %v2903, 0.0
  %v3048 = vmax.f32 %v2904, 0.0
  %v3049 = vmax.f32 %v2905, 0.0
  %v3050 = vmax.f32 %v2906, 0.0
  %v3051 = vmax.f32 %v2907, 0.0
  %v3052 = vmax.f32 %v2908, 0.0
  %v3053 = vmax.f32 %v2909, 0.0
  %v3054 = vmax.f32 %v2910, 0.0
  %v3055 = vmax.f32 %v2911, 0.0
  %v3056 = vmax.f32 %v2912, 0.0
  %v3057 = vmax.f32 %v2913, 0.0
  %v3058 = vmax.f32 %v2914, 0.0
  %v3059 = vmax.f32 %v2915, 0.0
  %v3060 = vmax.f32 %v2916, 0.0
  %v3061 = vmax.f32 %v2917, 0.0
  %v3062 = vmax.f32 %v2918, 0.0
  %v3063 = vmax.f32 %v2919, 0.0
  %v3064 = vmax.f32 %v2920, 0.0
  %v3065 = vmax.f32 %v2921, 0.0
  %v3066 = vmax.f32 %v2922, 0.0
  %v3067 = vmax.f32 %v2923, 0.0
  %v3068 = vmax.f32 %v2924, 0.0
  %v3069 = vmax.f32 %v2925, 0.0
  %v3070 = vmax.f32 %v2926, 0.0
  %v3071 = vmax.f32 %v2927, 0.0
  %v3072 = vmax.f32 %v2928, 0.0
  %v3073 = vmax.f32 %v2929, 0.0
  %v3074 = vmax.f32 %v2930, 0.0
  %v3075 = vmax.f32 %v2931, 0.0
  %v3076 = vmax.f32 %v2932, 0.0
  %v3077 = vmax.f32 %v2933, 0.0
  %v3078 = vmax.f32 %v2934, 0.0
  %v3079 = vmax.f32 %v2935, 0.0
  %v3080 = vmax.f32 %v2936, 0.0
  %v3081 = vmax.f32 %v2937, 0.0
  %v3082 = vmax.f32 %v2938, 0.0
  %v3083 = vmax.f32 %v2939, 0.0
  %v3084 = vmax.f32 %v2940, 0.0
  %v3085 = vmax.f32 %v2941, 0.0
  %v3086 = vmax.f32 %v2942, 0.0
  %v3087 = vmax.f32 %v2943, 0.0
  %v3088 = vmax.f32 %v2944, 0.0
  %v3089 = vmax.f32 %v2945, 0.0
  %v3090 = vmax.f32 %v2946, 0.0
  %v3091 = vmax.f32 %v2947, 0.0
  %v3092 = vmax.f32 %v2948, 0.0
  %v3093 = vmax.f32 %v2949, 0.0
  %v3094 = vmax.f32 %v2950, 0.0
  %v3095 = vmax.f32 %v2951, 0.0
  %v3096 = vmax.f32 %v2952, 0.0
  %v3097 = vmax.f32 %v2953, 0.0
  %v3098 = vmax.f32 %v2954, 0.0
  %v3099 = vmax.f32 %v2955, 0.0
  %v3100 = vmax.f32 %v2956, 0.0
  %v3101 = vmax.f32 %v2957, 0.0
  %v3102 = vmax.f32 %v2958, 0.0
  %v3103 = vmax.f32 %v2959, 0.0
  %v3104 = vmax.f32 %v2960, 0.0
  %v3105 = vmax.f32 %v2961, 0.0
  %v3106 = vmax.f32 %v2962, 0.0
  %v3107 = vmax.f32 %v2963, 0.0
  %v3108 = vmax.f32 %v2964, 0.0
  %v3109 = vmax.f32 %v2965, 0.0
  %v3110 = vmax.f32 %v2966, 0.0
  %v3111 = vmax.f32 %v2967, 0.0
  %v3112 = vmax.f32 %v2968, 0.0
  %v3113 = vpack.c.bf16 %v2973, %v2969
  %v3114 = vpack.c.bf16 %v2974, %v2970
  %v3115 = vpack.c.bf16 %v2975, %v2971
  %v3116 = vpack.c.bf16 %v2976, %v2972
  %v3117 = vpack.c.bf16 %v2981, %v2977
  %v3118 = vpack.c.bf16 %v2982, %v2978
  %v3119 = vpack.c.bf16 %v2983, %v2979
  %v3120 = vpack.c.bf16 %v2984, %v2980
  %v3121 = vpack.c.bf16 %v2989, %v2985
  %v3122 = vpack.c.bf16 %v2990, %v2986
  %v3123 = vpack.c.bf16 %v2991, %v2987
  %v3124 = vpack.c.bf16 %v2992, %v2988
  %v3125 = vpack.c.bf16 %v2997, %v2993
  %v3126 = vpack.c.bf16 %v2998, %v2994
  %v3127 = vpack.c.bf16 %v2999, %v2995
  %v3128 = vpack.c.bf16 %v3000, %v2996
  %v3129 = vpack.c.bf16 %v3005, %v3001
  %v3130 = vpack.c.bf16 %v3006, %v3002
  %v3131 = vpack.c.bf16 %v3007, %v3003
  %v3132 = vpack.c.bf16 %v3008, %v3004
  %v3133 = vpack.c.bf16 %v3013, %v3009
  %v3134 = vpack.c.bf16 %v3014, %v3010
  %v3135 = vpack.c.bf16 %v3015, %v3011
  %v3136 = vpack.c.bf16 %v3016, %v3012
  %v3137 = vpack.c.bf16 %v3021, %v3017
  %v3138 = vpack.c.bf16 %v3022, %v3018
  %v3139 = vpack.c.bf16 %v3023, %v3019
  %v3140 = vpack.c.bf16 %v3024, %v3020
  %v3141 = vpack.c.bf16 %v3029, %v3025
  %v3142 = vpack.c.bf16 %v3030, %v3026
  %v3143 = vpack.c.bf16 %v3031, %v3027
  %v3144 = vpack.c.bf16 %v3032, %v3028
  %v3145 = vpack.c.bf16 %v3037, %v3033
  %v3146 = vpack.c.bf16 %v3038, %v3034
  %v3147 = vpack.c.bf16 %v3039, %v3035
  %v3148 = vpack.c.bf16 %v3040, %v3036
  %v3149 = vpack.c.bf16 %v3045, %v3041
  %v3150 = vpack.c.bf16 %v3046, %v3042
  %v3151 = vpack.c.bf16 %v3047, %v3043
  %v3152 = vpack.c.bf16 %v3048, %v3044
  %v3153 = vpack.c.bf16 %v3053, %v3049
  %v3154 = vpack.c.bf16 %v3054, %v3050
  %v3155 = vpack.c.bf16 %v3055, %v3051
  %v3156 = vpack.c.bf16 %v3056, %v3052
  %v3157 = vpack.c.bf16 %v3061, %v3057
  %v3158 = vpack.c.bf16 %v3062, %v3058
  %v3159 = vpack.c.bf16 %v3063, %v3059
  %v3160 = vpack.c.bf16 %v3064, %v3060
  %v3161 = vpack.c.bf16 %v3069, %v3065
  %v3162 = vpack.c.bf16 %v3070, %v3066
  %v3163 = vpack.c.bf16 %v3071, %v3067
  %v3164 = vpack.c.bf16 %v3072, %v3068
  %v3165 = vpack.c.bf16 %v3077, %v3073
  %v3166 = vpack.c.bf16 %v3078, %v3074
  %v3167 = vpack.c.bf16 %v3079, %v3075
  %v3168 = vpack.c.bf16 %v3080, %v3076
  %v3169 = vpack.c.bf16 %v3085, %v3081
  %v3170 = vpack.c.bf16 %v3086, %v3082
  %v3171 = vpack.c.bf16 %v3087, %v3083
  %v3172 = vpack.c.bf16 %v3088, %v3084
  %v3173 = vpack.c.bf16 %v3093, %v3089
  %v3174 = vpack.c.bf16 %v3094, %v3090
  %v3175 = vpack.c.bf16 %v3095, %v3091
  %v3176 = vpack.c.bf16 %v3096, %v3092
  %v3177 = vpack.c.bf16 %v3101, %v3097
  %v3178 = vpack.c.bf16 %v3102, %v3098
  %v3179 = vpack.c.bf16 %v3103, %v3099
  %v3180 = vpack.c.bf16 %v3104, %v3100
  %v3181 = vpack.c.bf16 %v3109, %v3105
  %v3182 = vpack.c.bf16 %v3110, %v3106
  %v3183 = vpack.c.bf16 %v3111, %v3107
  %v3184 = vpack.c.bf16 %v3112, %v3108
  %v3185 = vld [vmem:[%s3] sm:$0xf]
  %v3186 = vld [vmem:[%s3 + $0x4] sm:$0xf]
  %v3187 = vld [vmem:[%s3 + $0x8] sm:$0xf]
  %v3188 = vld [vmem:[%s3 + $0xc] sm:$0xf]
  %v3189 = vld [vmem:[%s3 + $0x10] sm:$0xf]
  %v3190 = vld [vmem:[%s3 + $0x14] sm:$0xf]
  %v3191 = vld [vmem:[%s3 + $0x18] sm:$0xf]
  %v3192 = vld [vmem:[%s3 + $0x1c] sm:$0xf]
  %v3193 = vld [vmem:[%s3 + $0x20] sm:$0xf]
  %v3194 = vld [vmem:[%s3 + $0x24] sm:$0xf]
  %v3195 = vld [vmem:[%s3 + $0x28] sm:$0xf]
  %v3196 = vld [vmem:[%s3 + $0x2c] sm:$0xf]
  %v3197 = vld [vmem:[%s3 + $0x30] sm:$0xf]
  %v3198 = vld [vmem:[%s3 + $0x34] sm:$0xf]
  %v3199 = vld [vmem:[%s3 + $0x38] sm:$0xf]
  %v3200 = vld [vmem:[%s3 + $0x3c] sm:$0xf]
  %v3201 = vld [vmem:[%s3 + $0x40] sm:$0xf]
  %v3202 = vld [vmem:[%s3 + $0x44] sm:$0xf]
  %v3203 = vld [vmem:[%s3 + $0x48] sm:$0xf]
  %v3204 = vld [vmem:[%s3 + $0x4c] sm:$0xf]
  %v3205 = vld [vmem:[%s3 + $0x50] sm:$0xf]
  %v3206 = vld [vmem:[%s3 + $0x54] sm:$0xf]
  %v3207 = vld [vmem:[%s3 + $0x58] sm:$0xf]
  %v3208 = vld [vmem:[%s3 + $0x5c] sm:$0xf]
  %v3209 = vld [vmem:[%s3 + $0x60] sm:$0xf]
  %v3210 = vld [vmem:[%s3 + $0x64] sm:$0xf]
  %v3211 = vld [vmem:[%s3 + $0x68] sm:$0xf]
  %v3212 = vld [vmem:[%s3 + $0x6c] sm:$0xf]
  %v3213 = vld [vmem:[%s3 + $0x70] sm:$0xf]
  %v3214 = vld [vmem:[%s3 + $0x74] sm:$0xf]
  %v3215 = vld [vmem:[%s3 + $0x78] sm:$0xf]
  %v3216 = vld [vmem:[%s3 + $0x7c] sm:$0xf]
  %v3217 = vld [vmem:[%s3 + $0x80] sm:$0xf]
  %v3218 = vld [vmem:[%s3 + $0x84] sm:$0xf]
  %v3219 = vld [vmem:[%s3 + $0x88] sm:$0xf]
  %v3220 = vld [vmem:[%s3 + $0x8c] sm:$0xf]
  %v3221 = vld [vmem:[%s3 + $0x90] sm:$0xf]
  %v3222 = vld [vmem:[%s3 + $0x94] sm:$0xf]
  %v3223 = vld [vmem:[%s3 + $0x98] sm:$0xf]
  %v3224 = vld [vmem:[%s3 + $0x9c] sm:$0xf]
  %v3225 = vld [vmem:[%s3 + $0xa0] sm:$0xf]
  %v3226 = vld [vmem:[%s3 + $0xa4] sm:$0xf]
  %v3227 = vld [vmem:[%s3 + $0xa8] sm:$0xf]
  %v3228 = vld [vmem:[%s3 + $0xac] sm:$0xf]
  %v3229 = vld [vmem:[%s3 + $0xb0] sm:$0xf]
  %v3230 = vld [vmem:[%s3 + $0xb4] sm:$0xf]
  %v3231 = vld [vmem:[%s3 + $0xb8] sm:$0xf]
  %v3232 = vld [vmem:[%s3 + $0xbc] sm:$0xf]
  %v3233 = vld [vmem:[%s3 + $0xc0] sm:$0xf]
  %v3234 = vld [vmem:[%s3 + $0xc4] sm:$0xf]
  %v3235 = vld [vmem:[%s3 + $0xc8] sm:$0xf]
  %v3236 = vld [vmem:[%s3 + $0xcc] sm:$0xf]
  %v3237 = vld [vmem:[%s3 + $0xd0] sm:$0xf]
  %v3238 = vld [vmem:[%s3 + $0xd4] sm:$0xf]
  %v3239 = vld [vmem:[%s3 + $0xd8] sm:$0xf]
  %v3240 = vld [vmem:[%s3 + $0xdc] sm:$0xf]
  %v3241 = vld [vmem:[%s3 + $0xe0] sm:$0xf]
  %v3242 = vld [vmem:[%s3 + $0xe4] sm:$0xf]
  %v3243 = vld [vmem:[%s3 + $0xe8] sm:$0xf]
  %v3244 = vld [vmem:[%s3 + $0xec] sm:$0xf]
  %v3245 = vld [vmem:[%s3 + $0xf0] sm:$0xf]
  %v3246 = vld [vmem:[%s3 + $0xf4] sm:$0xf]
  %v3247 = vld [vmem:[%s3 + $0xf8] sm:$0xf]
  %v3248 = vld [vmem:[%s3 + $0xfc] sm:$0xf]
  %v3313 = vunpack.c.l.b16 %v3185
  %v3314 = vunpack.c.l.b16 %v3186
  %v3315 = vunpack.c.l.b16 %v3187
  %v3316 = vunpack.c.l.b16 %v3188
  %v3317 = vunpack.c.l.b16 %v3189
  %v3318 = vunpack.c.l.b16 %v3190
  %v3319 = vunpack.c.l.b16 %v3191
  %v3320 = vunpack.c.l.b16 %v3192
  %v3321 = vunpack.c.l.b16 %v3193
  %v3322 = vunpack.c.l.b16 %v3194
  %v3323 = vunpack.c.l.b16 %v3195
  %v3324 = vunpack.c.l.b16 %v3196
  %v3325 = vunpack.c.l.b16 %v3197
  %v3326 = vunpack.c.l.b16 %v3198
  %v3327 = vunpack.c.l.b16 %v3199
  %v3328 = vunpack.c.l.b16 %v3200
  %v3329 = vunpack.c.l.b16 %v3201
  %v3330 = vunpack.c.l.b16 %v3202
  %v3331 = vunpack.c.l.b16 %v3203
  %v3332 = vunpack.c.l.b16 %v3204
  %v3333 = vunpack.c.l.b16 %v3205
  %v3334 = vunpack.c.l.b16 %v3206
  %v3335 = vunpack.c.l.b16 %v3207
  %v3336 = vunpack.c.l.b16 %v3208
  %v3337 = vunpack.c.l.b16 %v3209
  %v3338 = vunpack.c.l.b16 %v3210
  %v3339 = vunpack.c.l.b16 %v3211
  %v3340 = vunpack.c.l.b16 %v3212
  %v3341 = vunpack.c.l.b16 %v3213
  %v3342 = vunpack.c.l.b16 %v3214
  %v3343 = vunpack.c.l.b16 %v3215
  %v3344 = vunpack.c.l.b16 %v3216
  %v3345 = vunpack.c.l.b16 %v3217
  %v3346 = vunpack.c.l.b16 %v3218
  %v3347 = vunpack.c.l.b16 %v3219
  %v3348 = vunpack.c.l.b16 %v3220
  %v3349 = vunpack.c.l.b16 %v3221
  %v3350 = vunpack.c.l.b16 %v3222
  %v3351 = vunpack.c.l.b16 %v3223
  %v3352 = vunpack.c.l.b16 %v3224
  %v3353 = vunpack.c.l.b16 %v3225
  %v3354 = vunpack.c.l.b16 %v3226
  %v3355 = vunpack.c.l.b16 %v3227
  %v3356 = vunpack.c.l.b16 %v3228
  %v3357 = vunpack.c.l.b16 %v3229
  %v3358 = vunpack.c.l.b16 %v3230
  %v3359 = vunpack.c.l.b16 %v3231
  %v3360 = vunpack.c.l.b16 %v3232
  %v3361 = vunpack.c.l.b16 %v3233
  %v3362 = vunpack.c.l.b16 %v3234
  %v3363 = vunpack.c.l.b16 %v3235
  %v3364 = vunpack.c.l.b16 %v3236
  %v3365 = vunpack.c.l.b16 %v3237
  %v3366 = vunpack.c.l.b16 %v3238
  %v3367 = vunpack.c.l.b16 %v3239
  %v3368 = vunpack.c.l.b16 %v3240
  %v3369 = vunpack.c.l.b16 %v3241
  %v3370 = vunpack.c.l.b16 %v3242
  %v3371 = vunpack.c.l.b16 %v3243
  %v3372 = vunpack.c.l.b16 %v3244
  %v3373 = vunpack.c.l.b16 %v3245
  %v3374 = vunpack.c.l.b16 %v3246
  %v3375 = vunpack.c.l.b16 %v3247
  %v3376 = vunpack.c.l.b16 %v3248
  %v3377 = vpack.c.b16 %v3314, %v3313
  %v3378 = vpack.c.b16 %v3316, %v3315
  %v3379 = vpack.c.b16 %v3318, %v3317
  %v3380 = vpack.c.b16 %v3320, %v3319
  %v3381 = vpack.c.b16 %v3322, %v3321
  %v3382 = vpack.c.b16 %v3324, %v3323
  %v3383 = vpack.c.b16 %v3326, %v3325
  %v3384 = vpack.c.b16 %v3328, %v3327
  %v3385 = vpack.c.b16 %v3330, %v3329
  %v3386 = vpack.c.b16 %v3332, %v3331
  %v3387 = vpack.c.b16 %v3334, %v3333
  %v3388 = vpack.c.b16 %v3336, %v3335
  %v3389 = vpack.c.b16 %v3338, %v3337
  %v3390 = vpack.c.b16 %v3340, %v3339
  %v3391 = vpack.c.b16 %v3342, %v3341
  %v3392 = vpack.c.b16 %v3344, %v3343
  %v3393 = vpack.c.b16 %v3346, %v3345
  %v3394 = vpack.c.b16 %v3348, %v3347
  %v3395 = vpack.c.b16 %v3350, %v3349
  %v3396 = vpack.c.b16 %v3352, %v3351
  %v3397 = vpack.c.b16 %v3354, %v3353
  %v3398 = vpack.c.b16 %v3356, %v3355
  %v3399 = vpack.c.b16 %v3358, %v3357
  %v3400 = vpack.c.b16 %v3360, %v3359
  %v3401 = vpack.c.b16 %v3362, %v3361
  %v3402 = vpack.c.b16 %v3364, %v3363
  %v3403 = vpack.c.b16 %v3366, %v3365
  %v3404 = vpack.c.b16 %v3368, %v3367
  %v3405 = vpack.c.b16 %v3370, %v3369
  %v3406 = vpack.c.b16 %v3372, %v3371
  %v3407 = vpack.c.b16 %v3374, %v3373
  %v3408 = vpack.c.b16 %v3376, %v3375
  %3441 = vmatprep.subr.bf16.mxu0 0
  %3442 = vmatpush1.bf16.msra.mxu0 %v3377
  %3443 = vmatprep.subr.bf16.mxu0 0
  %3444 = vmatpush1.bf16.msra.mxu0 %v3378
  %3445 = vmatprep.subr.bf16.mxu0 0
  %3446 = vmatpush1.bf16.msra.mxu0 %v3379
  %3447 = vmatprep.subr.bf16.mxu0 0
  %3448 = vmatpush1.bf16.msra.mxu0 %v3380
  %3449 = vmatprep.subr.bf16.mxu0 0
  %3450 = vmatpush1.bf16.msra.mxu0 %v3381
  %3451 = vmatprep.subr.bf16.mxu0 0
  %3452 = vmatpush1.bf16.msra.mxu0 %v3382
  %3453 = vmatprep.subr.bf16.mxu0 0
  %3454 = vmatpush1.bf16.msra.mxu0 %v3383
  %3455 = vmatprep.subr.bf16.mxu0 0
  %3456 = vmatpush1.bf16.msra.mxu0 %v3384
  %3457 = vmatprep.subr.bf16.mxu0 0
  %3458 = vmatpush1.bf16.msra.mxu0 %v3385
  %3459 = vmatprep.subr.bf16.mxu0 0
  %3460 = vmatpush1.bf16.msra.mxu0 %v3386
  %3461 = vmatprep.subr.bf16.mxu0 0
  %3462 = vmatpush1.bf16.msra.mxu0 %v3387
  %3463 = vmatprep.subr.bf16.mxu0 0
  %3464 = vmatpush1.bf16.msra.mxu0 %v3388
  %3465 = vmatprep.subr.bf16.mxu0 0
  %3466 = vmatpush1.bf16.msra.mxu0 %v3389
  %3467 = vmatprep.subr.bf16.mxu0 0
  %3468 = vmatpush1.bf16.msra.mxu0 %v3390
  %3469 = vmatprep.subr.bf16.mxu0 0
  %3470 = vmatpush1.bf16.msra.mxu0 %v3391
  %3471 = vmatprep.subr.bf16.mxu0 0
  %3472 = vmatpush1.bf16.msra.mxu0 %v3392
  %3473 = vmatprep.mubr.bf16.mxu0 %v3114
  %3474 = vmatmul.mubr.bf16.gmra.mrb[0].mxu0 %v3113
  %v3475 = vpop.f32.mrb[0].mxu0
  %v3476 = vadd.f32 0.0, %v3475
  %v3477 = vpop.f32.mrb[0].mxu0
  %v3478 = vpop.f32.mrb[0].mxu0
  %v3479 = vadd.f32 0.0, %v3478
  %v3480 = vpop.f32.mrb[0].mxu0
  %3481 = vmatprep.mubr.bf16.mxu0 %v3118
  %3482 = vmatmul.mubr.bf16.gmra.mrb[0].mxu0 %v3117
  %v3483 = vpop.f32.mrb[0].mxu0
  %v3484 = vadd.f32 0.0, %v3483
  %v3485 = vpop.f32.mrb[0].mxu0
  %v3486 = vpop.f32.mrb[0].mxu0
  %v3487 = vadd.f32 0.0, %v3486
  %v3488 = vpop.f32.mrb[0].mxu0
  %3489 = vmatprep.mubr.bf16.mxu0 %v3122
  %3490 = vmatmul.mubr.bf16.gmra.mrb[0].mxu0 %v3121
  %v3491 = vpop.f32.mrb[0].mxu0
  %v3492 = vadd.f32 0.0, %v3491
  %v3493 = vpop.f32.mrb[0].mxu0
  %v3494 = vpop.f32.mrb[0].mxu0
  %v3495 = vadd.f32 0.0, %v3494
  %v3496 = vpop.f32.mrb[0].mxu0
  %3497 = vmatprep.mubr.bf16.mxu0 %v3126
  %3498 = vmatmul.mubr.bf16.gmra.mrb[0].mxu0 %v3125
  %v3499 = vpop.f32.mrb[0].mxu0
  %v3500 = vadd.f32 0.0, %v3499
  %v3501 = vpop.f32.mrb[0].mxu0
  %v3502 = vpop.f32.mrb[0].mxu0
  %v3503 = vadd.f32 0.0, %v3502
  %v3504 = vpop.f32.mrb[0].mxu0
  %3505 = vmatprep.mubr.bf16.mxu0 %v3130
  %3506 = vmatmul.mubr.bf16.gmra.mrb[0].mxu0 %v3129
  %v3507 = vpop.f32.mrb[0].mxu0
  %v3508 = vadd.f32 0.0, %v3507
  %v3509 = vpop.f32.mrb[0].mxu0
  %v3510 = vpop.f32.mrb[0].mxu0
  %v3511 = vadd.f32 0.0, %v3510
  %v3512 = vpop.f32.mrb[0].mxu0
  %3513 = vmatprep.mubr.bf16.mxu0 %v3134
  %3514 = vmatmul.mubr.bf16.gmra.mrb[0].mxu0 %v3133
  %v3515 = vpop.f32.mrb[0].mxu0
  %v3516 = vadd.f32 0.0, %v3515
  %v3517 = vpop.f32.mrb[0].mxu0
  %v3518 = vpop.f32.mrb[0].mxu0
  %v3519 = vadd.f32 0.0, %v3518
  %v3520 = vpop.f32.mrb[0].mxu0
  %3521 = vmatprep.mubr.bf16.mxu0 %v3138
  %3522 = vmatmul.mubr.bf16.gmra.mrb[0].mxu0 %v3137
  %v3523 = vpop.f32.mrb[0].mxu0
  %v3524 = vadd.f32 0.0, %v3523
  %v3525 = vpop.f32.mrb[0].mxu0
  %v3526 = vpop.f32.mrb[0].mxu0
  %v3527 = vadd.f32 0.0, %v3526
  %v3528 = vpop.f32.mrb[0].mxu0
  %3529 = vmatprep.mubr.bf16.mxu0 %v3142
  %3530 = vmatmul.mubr.bf16.gmra.mrb[0].mxu0 %v3141
  %v3531 = vpop.f32.mrb[0].mxu0
  %v3532 = vadd.f32 0.0, %v3531
  %v3533 = vpop.f32.mrb[0].mxu0
  %v3534 = vpop.f32.mrb[0].mxu0
  %v3535 = vadd.f32 0.0, %v3534
  %v3536 = vpop.f32.mrb[0].mxu0
  %3537 = vmatprep.mubr.bf16.mxu0 %v3146
  %3538 = vmatmul.mubr.bf16.gmra.mrb[0].mxu0 %v3145
  %v3539 = vpop.f32.mrb[0].mxu0
  %v3540 = vadd.f32 0.0, %v3539
  %v3541 = vpop.f32.mrb[0].mxu0
  %v3542 = vpop.f32.mrb[0].mxu0
  %v3543 = vadd.f32 0.0, %v3542
  %v3544 = vpop.f32.mrb[0].mxu0
  %3545 = vmatprep.mubr.bf16.mxu0 %v3150
  %3546 = vmatmul.mubr.bf16.gmra.mrb[0].mxu0 %v3149
  %v3547 = vpop.f32.mrb[0].mxu0
  %v3548 = vadd.f32 0.0, %v3547
  %v3549 = vpop.f32.mrb[0].mxu0
  %v3550 = vpop.f32.mrb[0].mxu0
  %v3551 = vadd.f32 0.0, %v3550
  %v3552 = vpop.f32.mrb[0].mxu0
  %3553 = vmatprep.mubr.bf16.mxu0 %v3154
  %3554 = vmatmul.mubr.bf16.gmra.mrb[0].mxu0 %v3153
  %v3555 = vpop.f32.mrb[0].mxu0
  %v3556 = vadd.f32 0.0, %v3555
  %v3557 = vpop.f32.mrb[0].mxu0
  %v3558 = vpop.f32.mrb[0].mxu0
  %v3559 = vadd.f32 0.0, %v3558
  %v3560 = vpop.f32.mrb[0].mxu0
  %3561 = vmatprep.mubr.bf16.mxu0 %v3158
  %3562 = vmatmul.mubr.bf16.gmra.mrb[0].mxu0 %v3157
  %v3563 = vpop.f32.mrb[0].mxu0
  %v3564 = vadd.f32 0.0, %v3563
  %v3565 = vpop.f32.mrb[0].mxu0
  %v3566 = vpop.f32.mrb[0].mxu0
  %v3567 = vadd.f32 0.0, %v3566
  %v3568 = vpop.f32.mrb[0].mxu0
  %3569 = vmatprep.mubr.bf16.mxu0 %v3162
  %3570 = vmatmul.mubr.bf16.gmra.mrb[0].mxu0 %v3161
  %v3571 = vpop.f32.mrb[0].mxu0
  %v3572 = vadd.f32 0.0, %v3571
  %v3573 = vpop.f32.mrb[0].mxu0
  %v3574 = vpop.f32.mrb[0].mxu0
  %v3575 = vadd.f32 0.0, %v3574
  %v3576 = vpop.f32.mrb[0].mxu0
  %3577 = vmatprep.mubr.bf16.mxu0 %v3166
  %3578 = vmatmul.mubr.bf16.gmra.mrb[0].mxu0 %v3165
  %v3579 = vpop.f32.mrb[0].mxu0
  %v3580 = vadd.f32 0.0, %v3579
  %v3581 = vpop.f32.mrb[0].mxu0
  %v3582 = vpop.f32.mrb[0].mxu0
  %v3583 = vadd.f32 0.0, %v3582
  %v3584 = vpop.f32.mrb[0].mxu0
  %3585 = vmatprep.mubr.bf16.mxu0 %v3170
  %3586 = vmatmul.mubr.bf16.gmra.mrb[0].mxu0 %v3169
  %v3587 = vpop.f32.mrb[0].mxu0
  %v3588 = vadd.f32 0.0, %v3587
  %v3589 = vpop.f32.mrb[0].mxu0
  %v3590 = vpop.f32.mrb[0].mxu0
  %v3591 = vadd.f32 0.0, %v3590
  %v3592 = vpop.f32.mrb[0].mxu0
  %3593 = vmatprep.mubr.bf16.mxu0 %v3174
  %3594 = vmatmul.mubr.bf16.gmra.mrb[0].mxu0 %v3173
  %v3595 = vpop.f32.mrb[0].mxu0
  %v3596 = vadd.f32 0.0, %v3595
  %v3597 = vpop.f32.mrb[0].mxu0
  %v3598 = vpop.f32.mrb[0].mxu0
  %v3599 = vadd.f32 0.0, %v3598
  %v3600 = vpop.f32.mrb[0].mxu0
  %3601 = vmatprep.mubr.bf16.mxu0 %v3178
  %3602 = vmatmul.mubr.bf16.gmra.mrb[0].mxu0 %v3177
  %v3603 = vpop.f32.mrb[0].mxu0
  %v3604 = vadd.f32 0.0, %v3603
  %v3605 = vpop.f32.mrb[0].mxu0
  %v3606 = vpop.f32.mrb[0].mxu0
  %v3607 = vadd.f32 0.0, %v3606
  %v3608 = vpop.f32.mrb[0].mxu0
  %3609 = vmatprep.mubr.bf16.mxu0 %v3182
  %3610 = vmatmul.mubr.bf16.gmra.mrb[0].mxu0 %v3181
  %v3611 = vpop.f32.mrb[0].mxu0
  %v3612 = vadd.f32 0.0, %v3611
  %v3613 = vpop.f32.mrb[0].mxu0
  %v3614 = vpop.f32.mrb[0].mxu0
  %v3615 = vadd.f32 0.0, %v3614
  %v3616 = vpop.f32.mrb[0].mxu0
  %3617 = vdwg.mxu0
  %3618 = vmatprep.subr.bf16.mxu0 0
  %3619 = vmatpush1.bf16.msra.mxu0 %v3393
  %3620 = vmatprep.subr.bf16.mxu0 0
  %3621 = vmatpush1.bf16.msra.mxu0 %v3394
  %3622 = vmatprep.subr.bf16.mxu0 0
  %3623 = vmatpush1.bf16.msra.mxu0 %v3395
  %3624 = vmatprep.subr.bf16.mxu0 0
  %3625 = vmatpush1.bf16.msra.mxu0 %v3396
  %3626 = vmatprep.subr.bf16.mxu0 0
  %3627 = vmatpush1.bf16.msra.mxu0 %v3397
  %3628 = vmatprep.subr.bf16.mxu0 0
  %3629 = vmatpush1.bf16.msra.mxu0 %v3398
  %3630 = vmatprep.subr.bf16.mxu0 0
  %3631 = vmatpush1.bf16.msra.mxu0 %v3399
  %3632 = vmatprep.subr.bf16.mxu0 0
  %3633 = vmatpush1.bf16.msra.mxu0 %v3400
  %3634 = vmatprep.subr.bf16.mxu0 0
  %3635 = vmatpush1.bf16.msra.mxu0 %v3401
  %3636 = vmatprep.subr.bf16.mxu0 0
  %3637 = vmatpush1.bf16.msra.mxu0 %v3402
  %3638 = vmatprep.subr.bf16.mxu0 0
  %3639 = vmatpush1.bf16.msra.mxu0 %v3403
  %3640 = vmatprep.subr.bf16.mxu0 0
  %3641 = vmatpush1.bf16.msra.mxu0 %v3404
  %3642 = vmatprep.subr.bf16.mxu0 0
  %3643 = vmatpush1.bf16.msra.mxu0 %v3405
  %3644 = vmatprep.subr.bf16.mxu0 0
  %3645 = vmatpush1.bf16.msra.mxu0 %v3406
  %3646 = vmatprep.subr.bf16.mxu0 0
  %3647 = vmatpush1.bf16.msra.mxu0 %v3407
  %3648 = vmatprep.subr.bf16.mxu0 0
  %3649 = vmatpush1.bf16.msra.mxu0 %v3408
  %3650 = vmatprep.mubr.bf16.mxu0 %v3116
  %3651 = vmatmul.mubr.bf16.gmra.mrb[0].mxu0 %v3115
  %v3652 = vpop.f32.mrb[0].mxu0
  %v3653 = vadd.f32 %v3476, %v3652
  %v3654 = vpop.f32.mrb[0].mxu0
  %v3655 = vpop.f32.mrb[0].mxu0
  %v3656 = vadd.f32 %v3479, %v3655
  %v3657 = vpop.f32.mrb[0].mxu0
  %3658 = vmatprep.mubr.bf16.mxu0 %v3120
  %3659 = vmatmul.mubr.bf16.gmra.mrb[0].mxu0 %v3119
  %v3660 = vpop.f32.mrb[0].mxu0
  %v3661 = vadd.f32 %v3484, %v3660
  %v3662 = vpop.f32.mrb[0].mxu0
  %v3663 = vpop.f32.mrb[0].mxu0
  %v3664 = vadd.f32 %v3487, %v3663
  %v3665 = vpop.f32.mrb[0].mxu0
  %3666 = vmatprep.mubr.bf16.mxu0 %v3124
  %3667 = vmatmul.mubr.bf16.gmra.mrb[0].mxu0 %v3123
  %v3668 = vpop.f32.mrb[0].mxu0
  %v3669 = vadd.f32 %v3492, %v3668
  %v3670 = vpop.f32.mrb[0].mxu0
  %v3671 = vpop.f32.mrb[0].mxu0
  %v3672 = vadd.f32 %v3495, %v3671
  %v3673 = vpop.f32.mrb[0].mxu0
  %3674 = vmatprep.mubr.bf16.mxu0 %v3128
  %3675 = vmatmul.mubr.bf16.gmra.mrb[0].mxu0 %v3127
  %v3676 = vpop.f32.mrb[0].mxu0
  %v3677 = vadd.f32 %v3500, %v3676
  %v3678 = vpop.f32.mrb[0].mxu0
  %v3679 = vpop.f32.mrb[0].mxu0
  %v3680 = vadd.f32 %v3503, %v3679
  %v3681 = vpop.f32.mrb[0].mxu0
  %3682 = vmatprep.mubr.bf16.mxu0 %v3132
  %3683 = vmatmul.mubr.bf16.gmra.mrb[0].mxu0 %v3131
  %v3684 = vpop.f32.mrb[0].mxu0
  %v3685 = vadd.f32 %v3508, %v3684
  %v3686 = vpop.f32.mrb[0].mxu0
  %v3687 = vpop.f32.mrb[0].mxu0
  %v3688 = vadd.f32 %v3511, %v3687
  %v3689 = vpop.f32.mrb[0].mxu0
  %3690 = vmatprep.mubr.bf16.mxu0 %v3136
  %3691 = vmatmul.mubr.bf16.gmra.mrb[0].mxu0 %v3135
  %v3692 = vpop.f32.mrb[0].mxu0
  %v3693 = vadd.f32 %v3516, %v3692
  %v3694 = vpop.f32.mrb[0].mxu0
  %v3695 = vpop.f32.mrb[0].mxu0
  %v3696 = vadd.f32 %v3519, %v3695
  %v3697 = vpop.f32.mrb[0].mxu0
  %3698 = vmatprep.mubr.bf16.mxu0 %v3140
  %3699 = vmatmul.mubr.bf16.gmra.mrb[0].mxu0 %v3139
  %v3700 = vpop.f32.mrb[0].mxu0
  %v3701 = vadd.f32 %v3524, %v3700
  %v3702 = vpop.f32.mrb[0].mxu0
  %v3703 = vpop.f32.mrb[0].mxu0
  %v3704 = vadd.f32 %v3527, %v3703
  %v3705 = vpop.f32.mrb[0].mxu0
  %3706 = vmatprep.mubr.bf16.mxu0 %v3144
  %3707 = vmatmul.mubr.bf16.gmra.mrb[0].mxu0 %v3143
  %v3708 = vpop.f32.mrb[0].mxu0
  %v3709 = vadd.f32 %v3532, %v3708
  %v3710 = vpop.f32.mrb[0].mxu0
  %v3711 = vpop.f32.mrb[0].mxu0
  %v3712 = vadd.f32 %v3535, %v3711
  %v3713 = vpop.f32.mrb[0].mxu0
  %3714 = vmatprep.mubr.bf16.mxu0 %v3148
  %3715 = vmatmul.mubr.bf16.gmra.mrb[0].mxu0 %v3147
  %v3716 = vpop.f32.mrb[0].mxu0
  %v3717 = vadd.f32 %v3540, %v3716
  %v3718 = vpop.f32.mrb[0].mxu0
  %v3719 = vpop.f32.mrb[0].mxu0
  %v3720 = vadd.f32 %v3543, %v3719
  %v3721 = vpop.f32.mrb[0].mxu0
  %3722 = vmatprep.mubr.bf16.mxu0 %v3152
  %3723 = vmatmul.mubr.bf16.gmra.mrb[0].mxu0 %v3151
  %v3724 = vpop.f32.mrb[0].mxu0
  %v3725 = vadd.f32 %v3548, %v3724
  %v3726 = vpop.f32.mrb[0].mxu0
  %v3727 = vpop.f32.mrb[0].mxu0
  %v3728 = vadd.f32 %v3551, %v3727
  %v3729 = vpop.f32.mrb[0].mxu0
  %3730 = vmatprep.mubr.bf16.mxu0 %v3156
  %3731 = vmatmul.mubr.bf16.gmra.mrb[0].mxu0 %v3155
  %v3732 = vpop.f32.mrb[0].mxu0
  %v3733 = vadd.f32 %v3556, %v3732
  %v3734 = vpop.f32.mrb[0].mxu0
  %v3735 = vpop.f32.mrb[0].mxu0
  %v3736 = vadd.f32 %v3559, %v3735
  %v3737 = vpop.f32.mrb[0].mxu0
  %3738 = vmatprep.mubr.bf16.mxu0 %v3160
  %3739 = vmatmul.mubr.bf16.gmra.mrb[0].mxu0 %v3159
  %v3740 = vpop.f32.mrb[0].mxu0
  %v3741 = vadd.f32 %v3564, %v3740
  %v3742 = vpop.f32.mrb[0].mxu0
  %v3743 = vpop.f32.mrb[0].mxu0
  %v3744 = vadd.f32 %v3567, %v3743
  %v3745 = vpop.f32.mrb[0].mxu0
  %3746 = vmatprep.mubr.bf16.mxu0 %v3164
  %3747 = vmatmul.mubr.bf16.gmra.mrb[0].mxu0 %v3163
  %v3748 = vpop.f32.mrb[0].mxu0
  %v3749 = vadd.f32 %v3572, %v3748
  %v3750 = vpop.f32.mrb[0].mxu0
  %v3751 = vpop.f32.mrb[0].mxu0
  %v3752 = vadd.f32 %v3575, %v3751
  %v3753 = vpop.f32.mrb[0].mxu0
  %3754 = vmatprep.mubr.bf16.mxu0 %v3168
  %3755 = vmatmul.mubr.bf16.gmra.mrb[0].mxu0 %v3167
  %v3756 = vpop.f32.mrb[0].mxu0
  %v3757 = vadd.f32 %v3580, %v3756
  %v3758 = vpop.f32.mrb[0].mxu0
  %v3759 = vpop.f32.mrb[0].mxu0
  %v3760 = vadd.f32 %v3583, %v3759
  %v3761 = vpop.f32.mrb[0].mxu0
  %3762 = vmatprep.mubr.bf16.mxu0 %v3172
  %3763 = vmatmul.mubr.bf16.gmra.mrb[0].mxu0 %v3171
  %v3764 = vpop.f32.mrb[0].mxu0
  %v3765 = vadd.f32 %v3588, %v3764
  %v3766 = vpop.f32.mrb[0].mxu0
  %v3767 = vpop.f32.mrb[0].mxu0
  %v3768 = vadd.f32 %v3591, %v3767
  %v3769 = vpop.f32.mrb[0].mxu0
  %3770 = vmatprep.mubr.bf16.mxu0 %v3176
  %3771 = vmatmul.mubr.bf16.gmra.mrb[0].mxu0 %v3175
  %v3772 = vpop.f32.mrb[0].mxu0
  %v3773 = vadd.f32 %v3596, %v3772
  %v3774 = vpop.f32.mrb[0].mxu0
  %v3775 = vpop.f32.mrb[0].mxu0
  %v3776 = vadd.f32 %v3599, %v3775
  %v3777 = vpop.f32.mrb[0].mxu0
  %3778 = vmatprep.mubr.bf16.mxu0 %v3180
  %3779 = vmatmul.mubr.bf16.gmra.mrb[0].mxu0 %v3179
  %v3780 = vpop.f32.mrb[0].mxu0
  %v3781 = vadd.f32 %v3604, %v3780
  %v3782 = vpop.f32.mrb[0].mxu0
  %v3783 = vpop.f32.mrb[0].mxu0
  %v3784 = vadd.f32 %v3607, %v3783
  %v3785 = vpop.f32.mrb[0].mxu0
  %3786 = vmatprep.mubr.bf16.mxu0 %v3184
  %3787 = vmatmul.mubr.bf16.gmra.mrb[0].mxu0 %v3183
  %v3788 = vpop.f32.mrb[0].mxu0
  %v3789 = vadd.f32 %v3612, %v3788
  %v3790 = vpop.f32.mrb[0].mxu0
  %v3791 = vpop.f32.mrb[0].mxu0
  %v3792 = vadd.f32 %v3615, %v3791
  %v3793 = vpop.f32.mrb[0].mxu0
  %3794 = vdwg.mxu0
  %v3795 = vadd.f32 %v3653, %v3656
  %v3796 = vrot.slane %v3795, 4
  %v3797 = vadd.f32 %v3795, %v3796
  %v3798 = vrot.slane %v3797, 2
  %v3799 = vadd.f32 %v3797, %v3798
  %v3800 = vrot.slane %v3799, 1
  %v3801 = vadd.f32 %v3799, %v3800
  %v3802 = vadd.f32 %v3661, %v3664
  %v3803 = vrot.slane %v3802, 4
  %v3804 = vadd.f32 %v3802, %v3803
  %v3805 = vrot.slane %v3804, 2
  %v3806 = vadd.f32 %v3804, %v3805
  %v3807 = vrot.slane %v3806, 1
  %v3808 = vadd.f32 %v3806, %v3807
  %v3809 = vadd.f32 %v3669, %v3672
  %v3810 = vrot.slane %v3809, 4
  %v3811 = vadd.f32 %v3809, %v3810
  %v3812 = vrot.slane %v3811, 2
  %v3813 = vadd.f32 %v3811, %v3812
  %v3814 = vrot.slane %v3813, 1
  %v3815 = vadd.f32 %v3813, %v3814
  %v3816 = vadd.f32 %v3677, %v3680
  %v3817 = vrot.slane %v3816, 4
  %v3818 = vadd.f32 %v3816, %v3817
  %v3819 = vrot.slane %v3818, 2
  %v3820 = vadd.f32 %v3818, %v3819
  %v3821 = vrot.slane %v3820, 1
  %v3822 = vadd.f32 %v3820, %v3821
  %v3823 = vadd.f32 %v3685, %v3688
  %v3824 = vrot.slane %v3823, 4
  %v3825 = vadd.f32 %v3823, %v3824
  %v3826 = vrot.slane %v3825, 2
  %v3827 = vadd.f32 %v3825, %v3826
  %v3828 = vrot.slane %v3827, 1
  %v3829 = vadd.f32 %v3827, %v3828
  %v3830 = vadd.f32 %v3693, %v3696
  %v3831 = vrot.slane %v3830, 4
  %v3832 = vadd.f32 %v3830, %v3831
  %v3833 = vrot.slane %v3832, 2
  %v3834 = vadd.f32 %v3832, %v3833
  %v3835 = vrot.slane %v3834, 1
  %v3836 = vadd.f32 %v3834, %v3835
  %v3837 = vadd.f32 %v3701, %v3704
  %v3838 = vrot.slane %v3837, 4
  %v3839 = vadd.f32 %v3837, %v3838
  %v3840 = vrot.slane %v3839, 2
  %v3841 = vadd.f32 %v3839, %v3840
  %v3842 = vrot.slane %v3841, 1
  %v3843 = vadd.f32 %v3841, %v3842
  %v3844 = vadd.f32 %v3709, %v3712
  %v3845 = vrot.slane %v3844, 4
  %v3846 = vadd.f32 %v3844, %v3845
  %v3847 = vrot.slane %v3846, 2
  %v3848 = vadd.f32 %v3846, %v3847
  %v3849 = vrot.slane %v3848, 1
  %v3850 = vadd.f32 %v3848, %v3849
  %v3851 = vadd.f32 %v3717, %v3720
  %v3852 = vrot.slane %v3851, 4
  %v3853 = vadd.f32 %v3851, %v3852
  %v3854 = vrot.slane %v3853, 2
  %v3855 = vadd.f32 %v3853, %v3854
  %v3856 = vrot.slane %v3855, 1
  %v3857 = vadd.f32 %v3855, %v3856
  %v3858 = vadd.f32 %v3725, %v3728
  %v3859 = vrot.slane %v3858, 4
  %v3860 = vadd.f32 %v3858, %v3859
  %v3861 = vrot.slane %v3860, 2
  %v3862 = vadd.f32 %v3860, %v3861
  %v3863 = vrot.slane %v3862, 1
  %v3864 = vadd.f32 %v3862, %v3863
  %v3865 = vadd.f32 %v3733, %v3736
  %v3866 = vrot.slane %v3865, 4
  %v3867 = vadd.f32 %v3865, %v3866
  %v3868 = vrot.slane %v3867, 2
  %v3869 = vadd.f32 %v3867, %v3868
  %v3870 = vrot.slane %v3869, 1
  %v3871 = vadd.f32 %v3869, %v3870
  %v3872 = vadd.f32 %v3741, %v3744
  %v3873 = vrot.slane %v3872, 4
  %v3874 = vadd.f32 %v3872, %v3873
  %v3875 = vrot.slane %v3874, 2
  %v3876 = vadd.f32 %v3874, %v3875
  %v3877 = vrot.slane %v3876, 1
  %v3878 = vadd.f32 %v3876, %v3877
  %v3879 = vadd.f32 %v3749, %v3752
  %v3880 = vrot.slane %v3879, 4
  %v3881 = vadd.f32 %v3879, %v3880
  %v3882 = vrot.slane %v3881, 2
  %v3883 = vadd.f32 %v3881, %v3882
  %v3884 = vrot.slane %v3883, 1
  %v3885 = vadd.f32 %v3883, %v3884
  %v3886 = vadd.f32 %v3757, %v3760
  %v3887 = vrot.slane %v3886, 4
  %v3888 = vadd.f32 %v3886, %v3887
  %v3889 = vrot.slane %v3888, 2
  %v3890 = vadd.f32 %v3888, %v3889
  %v3891 = vrot.slane %v3890, 1
  %v3892 = vadd.f32 %v3890, %v3891
  %v3893 = vadd.f32 %v3765, %v3768
  %v3894 = vrot.slane %v3893, 4
  %v3895 = vadd.f32 %v3893, %v3894
  %v3896 = vrot.slane %v3895, 2
  %v3897 = vadd.f32 %v3895, %v3896
  %v3898 = vrot.slane %v3897, 1
  %v3899 = vadd.f32 %v3897, %v3898
  %v3900 = vadd.f32 %v3773, %v3776
  %v3901 = vrot.slane %v3900, 4
  %v3902 = vadd.f32 %v3900, %v3901
  %v3903 = vrot.slane %v3902, 2
  %v3904 = vadd.f32 %v3902, %v3903
  %v3905 = vrot.slane %v3904, 1
  %v3906 = vadd.f32 %v3904, %v3905
  %v3907 = vadd.f32 %v3781, %v3784
  %v3908 = vrot.slane %v3907, 4
  %v3909 = vadd.f32 %v3907, %v3908
  %v3910 = vrot.slane %v3909, 2
  %v3911 = vadd.f32 %v3909, %v3910
  %v3912 = vrot.slane %v3911, 1
  %v3913 = vadd.f32 %v3911, %v3912
  %v3914 = vadd.f32 %v3789, %v3792
  %v3915 = vrot.slane %v3914, 4
  %v3916 = vadd.f32 %v3914, %v3915
  %v3917 = vrot.slane %v3916, 2
  %v3918 = vadd.f32 %v3916, %v3917
  %v3919 = vrot.slane %v3918, 1
  %v3920 = vadd.f32 %v3918, %v3919
  %v3921 = vld [vmem:[%s4] sm:$0x1]
  %v3923 = vlaneseq
  %v3924 = vshrl.u32 %v3923, 7
  %v3925 = vsub.s32 0, %v3924
  %v3926 = vrot.slane %v3921, %v3925
  %v3928 = vadd.f32 %v3801, %v3926
  %v3929 = vadd.f32 %v3808, %v3926
  %v3930 = vadd.f32 %v3815, %v3926
  %v3931 = vadd.f32 %v3822, %v3926
  %v3932 = vadd.f32 %v3829, %v3926
  %v3933 = vadd.f32 %v3836, %v3926
  %v3934 = vadd.f32 %v3843, %v3926
  %v3935 = vadd.f32 %v3850, %v3926
  %v3936 = vadd.f32 %v3857, %v3926
  %v3937 = vadd.f32 %v3864, %v3926
  %v3938 = vadd.f32 %v3871, %v3926
  %v3939 = vadd.f32 %v3878, %v3926
  %v3940 = vadd.f32 %v3885, %v3926
  %v3941 = vadd.f32 %v3892, %v3926
  %v3942 = vadd.f32 %v3899, %v3926
  %v3943 = vadd.f32 %v3906, %v3926
  %v3944 = vadd.f32 %v3913, %v3926
  %v3945 = vadd.f32 %v3920, %v3926
  %v3964 = vrot.slane %v3929, 7
  %vm3965 = vcmask 1041409
  %v3966 = vsel %vm3965, %v3964, %v3928
  %v3967 = vrot.slane %v3930, 6
  %vm3968 = vcmask 1042434
  %v3969 = vsel %vm3968, %v3967, %v3966
  %v3970 = vrot.slane %v3931, 5
  %vm3971 = vcmask 1043459
  %v3972 = vsel %vm3971, %v3970, %v3969
  %v3973 = vrot.slane %v3932, 4
  %vm3974 = vcmask 1044484
  %v3975 = vsel %vm3974, %v3973, %v3972
  %v3976 = vrot.slane %v3933, 3
  %vm3977 = vcmask 1045509
  %v3978 = vsel %vm3977, %v3976, %v3975
  %v3979 = vrot.slane %v3934, 2
  %vm3980 = vcmask 1046534
  %v3981 = vsel %vm3980, %v3979, %v3978
  %v3982 = vrot.slane %v3935, 1
  %vm3983 = vcmask 1047559
  %v3984 = vsel %vm3983, %v3982, %v3981
  %v3985 = vrot.slane %v3937, 7
  %v3986 = vsel %vm3965, %v3985, %v3936
  %v3987 = vrot.slane %v3938, 6
  %v3988 = vsel %vm3968, %v3987, %v3986
  %v3989 = vrot.slane %v3939, 5
  %v3990 = vsel %vm3971, %v3989, %v3988
  %v3991 = vrot.slane %v3940, 4
  %v3992 = vsel %vm3974, %v3991, %v3990
  %v3993 = vrot.slane %v3941, 3
  %v3994 = vsel %vm3977, %v3993, %v3992
  %v3995 = vrot.slane %v3942, 2
  %v3996 = vsel %vm3980, %v3995, %v3994
  %v3997 = vrot.slane %v3943, 1
  %v3998 = vsel %vm3983, %v3997, %v3996
  %v3999 = vrot.slane %v3945, 7
  %v4000 = vsel %vm3965, %v3999, %v3944
  %4004 = vst [vmem:[%s5] sm:$0xff] %v3984
  %4005 = vst [vmem:[%s5 + $0x8] sm:$0xff] %v3998
  %4006 = vst [vmem:[%s5 + $0x10] sm:$0x3] %v4000
  // Predicated region
  $region22: #{ensemble_forward.1} parent=0 // pred_check
    _
  $region23: #{ensemble_forward.1} parent=0 // pred_check_branch
    %4008 = sbr.rel (0) target = $region25
  $region24: #{ensemble_forward.1} parent=0 // pred_region
    _
  $region25: #{ensemble_forward.1} parent=0 // pred_fallthru
    _
  // Predicated region
  $region26: #{ensemble_forward.1} parent=0 // pred_check
    _
  $region27: #{ensemble_forward.1} parent=0 // pred_check_branch
    %4010 = sbr.rel (0) target = $region29
  $region28: #{ensemble_forward.1} parent=0 // pred_region
    _
  $region29: #{ensemble_forward.1} parent=0 // pred_fallthru
    _

</llo_original>
